<compile_context>
chip_gen: v7x
topology: tpu7x:2x2x1
jax: 0.10.0
libtpu: 0.0.40
codegen_flags: <defaults>
</compile_context>

<pallas_src>
import functools

import jax
import jax.numpy as jnp
from jax.experimental import pallas as pl
from jax.experimental.pallas import tpu as pltpu

_SQRT_HALF = 0.7071067811865476
_VMEM_LIMIT = 48 * 1024 * 1024      # explicit scoped-VMEM limit (all chips)


def _gelu(y):
    # exact (erf) GELU, matching torch.nn.GELU default
    return 0.5 * y * (1.0 + jax.lax.erf(y * _SQRT_HALF))


def _pick_tile(dim, target, align):
    """Largest tile <= target that is a multiple of `align` and divides `dim`;
    falls back to the full dim (always legal: block == full array dim)."""
    if dim <= target:
        return dim
    t = (target // align) * align
    while t >= align:
        if dim % t == 0:
            return t
        t -= align
    return dim


# ----------------------------- Pallas kernels ------------------------------ #

def _matmul_kernel(x_ref, w_ref, b_ref, o_ref, acc_ref, *, gelu):
    """Tiled matmul with K-axis accumulation: o = act(x @ w + b)."""
    @pl.when(pl.program_id(2) == 0)
    def _():
        acc_ref[...] = jnp.zeros_like(acc_ref)

    x = x_ref[...]
    if x.dtype != jnp.bfloat16:
        x = x.astype(jnp.bfloat16)
    acc_ref[...] += jnp.dot(x, w_ref[...], preferred_element_type=jnp.float32)

    @pl.when(pl.program_id(2) == pl.num_programs(2) - 1)
    def _():
        y = acc_ref[...] + b_ref[...]
        if gelu:
            y = _gelu(y)
        o_ref[...] = y.astype(o_ref.dtype)


def _matmul_res_kernel(x_ref, w_ref, b_ref, res_ref, o_ref, acc_ref):
    """Tiled matmul + bias + fused residual add: o = x @ w + b + res."""
    @pl.when(pl.program_id(2) == 0)
    def _():
        acc_ref[...] = jnp.zeros_like(acc_ref)

    x = x_ref[...]
    if x.dtype != jnp.bfloat16:
        x = x.astype(jnp.bfloat16)
    acc_ref[...] += jnp.dot(x, w_ref[...], preferred_element_type=jnp.float32)

    @pl.when(pl.program_id(2) == pl.num_programs(2) - 1)
    def _():
        o_ref[...] = (acc_ref[...] + b_ref[...] + res_ref[...]).astype(o_ref.dtype)


def _ln_matmul_kernel(x_ref, g_ref, bt_ref, w_ref, b_ref, o_ref, h_ref,
                      *, eps, gelu):
    """Fused LayerNorm(x) @ w + b (+ GELU).  K (= embed dim) kept whole.
    The normalized bf16 rows are cached in h_ref at j==0 and reused for every
    N-tile of the same row tile (N axis is innermost / 'arbitrary')."""
    @pl.when(pl.program_id(1) == 0)
    def _():
        x = x_ref[...].astype(jnp.float32)
        mean = jnp.mean(x, axis=-1, keepdims=True)
        var = jnp.mean(jnp.square(x - mean), axis=-1, keepdims=True)
        h = (x - mean) * jax.lax.rsqrt(var + eps) * g_ref[...] + bt_ref[...]
        h_ref[...] = h.astype(h_ref.dtype)

    y = jnp.dot(h_ref[...], w_ref[...],
                preferred_element_type=jnp.float32) + b_ref[...]
    if gelu:
        y = _gelu(y)
    o_ref[...] = y.astype(o_ref.dtype)


def _attn_proj_kernel(qkv_ref, pw_ref, pb_ref, res_ref, o_ref, attn_ref,
                      *, num_heads, head_dim, scale, seq_real):
    """All heads of one batch element + fused output projection + residual.

    qkv layout is the raw QKV matmul output (S, 3*D) with columns
    [q heads | k heads | v heads].  Each head's output is written straight
    into the VMEM scratch `attn_ref` (no concatenate), then one well-shaped
    (S,D)x(D,D) matmul applies the projection, bias and residual."""
    S, D = attn_ref.shape
    col = jax.lax.broadcasted_iota(jnp.int32, (S, S), 1)
    key_mask = col < seq_real                     # mask padded key columns

    for h in range(num_heads):
        q = qkv_ref[0, :, h * head_dim:(h + 1) * head_dim]
        k = qkv_ref[0, :, D + h * head_dim:D + (h + 1) * head_dim]
        v = qkv_ref[0, :, 2 * D + h * head_dim:2 * D + (h + 1) * head_dim]
        s = jax.lax.dot_general(
            q, k, (((1,), (1,)), ((), ())),
            preferred_element_type=jnp.float32) * scale
        s = jnp.where(key_mask, s, -1e30)
        s = s - jnp.max(s, axis=-1, keepdims=True)
        p = jnp.exp(s)
        p = p * pl.reciprocal(jnp.sum(p, axis=-1, keepdims=True), approx=True)
        o_h = jnp.dot(p.astype(jnp.bfloat16), v,
                      preferred_element_type=jnp.float32)
        # direct per-head store into the VMEM attention buffer
        attn_ref[:, h * head_dim:(h + 1) * head_dim] = o_h.astype(jnp.bfloat16)

    y = jnp.dot(attn_ref[...], pw_ref[...], preferred_element_type=jnp.float32)
    o_ref[0] = (y + pb_ref[...] + res_ref[0]).astype(o_ref.dtype)


# ----------------------------- kernel wrappers ------------------------------ #

def linear(x, w, b, *, residual=None, gelu=False,
           tm=1024, tn=512, tk=1024, out_dtype=jnp.float32):
    """Tiled (M,K)@(K,N)+b, optional fused residual add / exact GELU."""
    M, K = x.shape
    N = w.shape[1]
    tm = _pick_tile(M, tm, 16)
    tn = _pick_tile(N, tn, 128)
    tk = _pick_tile(K, tk, 128)
    grid = (M // tm, N // tn, K // tk)

    bytes_accessed = int(x.size * x.dtype.itemsize + w.size * w.dtype.itemsize
                         + N * 4 + M * N * jnp.dtype(out_dtype).itemsize
                         + (0 if residual is None else M * N * 4))
    cost = pl.CostEstimate(flops=2 * M * N * K, transcendentals=0,
                           bytes_accessed=bytes_accessed)

    in_specs = [
        pl.BlockSpec((tm, tk), lambda i, j, k: (i, k)),
        pl.BlockSpec((tk, tn), lambda i, j, k: (k, j)),
        pl.BlockSpec((1, tn), lambda i, j, k: (0, j)),
    ]
    args = [x, w, b.reshape(1, N)]
    if residual is not None:
        kernel = _matmul_res_kernel
        in_specs.append(pl.BlockSpec((tm, tn), lambda i, j, k: (i, j)))
        args.append(residual)
    else:
        kernel = functools.partial(_matmul_kernel, gelu=gelu)

    return pl.pallas_call(
        kernel,
        grid=grid,
        out_shape=jax.ShapeDtypeStruct((M, N), out_dtype),
        in_specs=in_specs,
        out_specs=pl.BlockSpec((tm, tn), lambda i, j, k: (i, j)),
        scratch_shapes=[pltpu.VMEM((tm, tn), jnp.float32)],
        compiler_params=pltpu.CompilerParams(
            dimension_semantics=("parallel", "parallel", "arbitrary"),
            vmem_limit_bytes=_VMEM_LIMIT),
        cost_estimate=cost,
    )(*args)


def ln_linear(x, g, beta, w, b, *, gelu=False, eps=1e-6,
              tm=1024, tn=512, out_dtype=jnp.bfloat16):
    """Fused LayerNorm + matmul (+ GELU).  K (= normalized dim) kept whole.
    LN result is cached per row-tile and reused across N-tiles."""
    M, K = x.shape
    N = w.shape[1]
    tm = _pick_tile(M, tm, 16)
    tn = _pick_tile(N, tn, 128)
    grid = (M // tm, N // tn)

    bytes_accessed = int(x.size * x.dtype.itemsize + w.size * w.dtype.itemsize
                         + M * N * jnp.dtype(out_dtype).itemsize)
    cost = pl.CostEstimate(flops=2 * M * N * K + 10 * M * K,
                           transcendentals=M * (N if gelu else 1),
                           bytes_accessed=bytes_accessed)

    return pl.pallas_call(
        functools.partial(_ln_matmul_kernel, eps=eps, gelu=gelu),
        grid=grid,
        out_shape=jax.ShapeDtypeStruct((M, N), out_dtype),
        in_specs=[
            pl.BlockSpec((tm, K), lambda i, j: (i, 0)),
            pl.BlockSpec((1, K), lambda i, j: (0, 0)),
            pl.BlockSpec((1, K), lambda i, j: (0, 0)),
            pl.BlockSpec((K, tn), lambda i, j: (0, j)),
            pl.BlockSpec((1, tn), lambda i, j: (0, j)),
        ],
        out_specs=pl.BlockSpec((tm, tn), lambda i, j: (i, j)),
        scratch_shapes=[pltpu.VMEM((tm, K), jnp.bfloat16)],
        compiler_params=pltpu.CompilerParams(
            # N axis must be 'arbitrary' so the LN cache carries across N-tiles
            dimension_semantics=("parallel", "arbitrary"),
            vmem_limit_bytes=_VMEM_LIMIT),
        cost_estimate=cost,
    )(x, g.reshape(1, K), beta.reshape(1, K), w, b.reshape(1, N))


def attention_proj(qkv, proj_w, proj_b, residual, *, num_heads, head_dim,
                   seq_real):
    """softmax(q k^T * scale) v per head, then fused out-projection + residual.
    One grid step per batch element (parallel axis -> both v7x TCs at B>=2)."""
    B, S, threeD = qkv.shape
    D = num_heads * head_dim
    scale = head_dim ** -0.5
    cost = pl.CostEstimate(
        flops=4 * B * num_heads * S * S * head_dim + 2 * B * S * D * D,
        transcendentals=B * num_heads * S * S,
        bytes_accessed=int(qkv.size * qkv.dtype.itemsize
                           + proj_w.size * proj_w.dtype.itemsize
                           + residual.size * 4 + B * S * D * 4))
    return pl.pallas_call(
        functools.partial(_attn_proj_kernel, num_heads=num_heads,
                          head_dim=head_dim, scale=scale, seq_real=seq_real),
        grid=(B,),
        out_shape=jax.ShapeDtypeStruct((B, S, D), jnp.float32),
        in_specs=[
            pl.BlockSpec((1, S, threeD), lambda bi: (bi, 0, 0)),
            pl.BlockSpec((D, D), lambda bi: (0, 0)),
            pl.BlockSpec((1, D), lambda bi: (0, 0)),
            pl.BlockSpec((1, S, D), lambda bi: (bi, 0, 0)),
        ],
        out_specs=pl.BlockSpec((1, S, D), lambda bi: (bi, 0, 0)),
        scratch_shapes=[pltpu.VMEM((S, D), jnp.bfloat16)],
        compiler_params=pltpu.CompilerParams(
            dimension_semantics=("parallel",),
            vmem_limit_bytes=_VMEM_LIMIT),
        cost_estimate=cost,
    )(qkv, proj_w, proj_b.reshape(1, D), residual)


# ------------------------------- ViT forward -------------------------------- #

def vit_forward(x, params, *, patch_size, embed_dim, num_heads, num_classes):
    B, C, H, W = x.shape
    p = patch_size
    D = embed_dim
    nH = num_heads
    dh = D // nH

    # patch embedding: Conv2d(k=p, s=p) == non-overlapping patch extraction
    # (flattened in (C, kh, kw) order, matching conv-weight flattening) + linear.
    # TODO(synk): patch extraction is a pure data-reorg; done in XLA (runs once).
    Hp, Wp = H // p, W // p
    patches = (x.reshape(B, C, Hp, p, Wp, p)
                 .transpose(0, 2, 4, 1, 3, 5)
                 .reshape(B * Hp * Wp, C * p * p))
    tokens = linear(patches, params["patch_w"], params["patch_b"]
                    ).reshape(B, Hp * Wp, D)

    cls = jnp.broadcast_to(params["cls_token"], (B, 1, D))
    x_seq = jnp.concatenate([cls, tokens], axis=1) + params["pos_embed"]
    S = x_seq.shape[1]

    # pad the sequence to a multiple of 16 (bf16 sublane packing); padded key
    # columns are masked inside attention, padded rows are never read out.
    S_pad = -(-S // 16) * 16
    if S_pad != S:
        x_seq = jnp.pad(x_seq, ((0, 0), (0, S_pad - S), (0, 0)))
    M = B * S_pad
    x2 = x_seq.reshape(M, D)                       # f32 residual stream

    for blk in params["blocks"]:
        # attention branch: x = x + proj(attn(LN1(x)))      (LN1 fused into QKV,
        # proj + residual fused into the attention kernel, no head transposes)
        qkv = ln_linear(x2, blk["ln1_g"], blk["ln1_b"],
                        blk["qkv_w"], blk["qkv_b"])          # (M, 3D) bf16
        x2 = attention_proj(qkv.reshape(B, S_pad, 3 * D),
                            blk["proj_w"], blk["proj_b"],
                            x2.reshape(B, S_pad, D),
                            num_heads=nH, head_dim=dh,
                            seq_real=S).reshape(M, D)        # (M, D) f32

        # MLP branch: x = x + fc2(GELU(fc1(LN2(x))))         (LN2+GELU fused into
        # fc1, residual fused into fc2)
        h = ln_linear(x2, blk["ln2_g"], blk["ln2_b"],
                      blk["fc1_w"], blk["fc1_b"], gelu=True)  # (M, hidden) bf16
        x2 = linear(h, blk["fc2_w"], blk["fc2_b"], residual=x2)

    # final norm is per-row -> apply only to the cls row, fused with the head.
    # head output padded to a 128-lane multiple for a lane-dense store.
    cls_out = x2.reshape(B, S_pad, D)[:, 0, :]                # (B, D) f32
    Np = -(-num_classes // 128) * 128
    head_w, head_b = params["head_w"], params["head_b"]
    if Np != num_classes:
        head_w = jnp.pad(head_w, ((0, 0), (0, Np - num_classes)))
        head_b = jnp.pad(head_b, ((0, Np - num_classes),))
    logits = ln_linear(cls_out, params["norm_g"], params["norm_b"],
                       head_w, head_b, out_dtype=jnp.float32)  # pre_logits = Identity
    return logits[:, :num_classes]


# ----------------------------- parameter init ------------------------------- #

def init_params(key, *, in_c, patch_size, embed_dim, depth, mlp_ratio,
                num_classes, num_patches):
    def tn(k, shape, std=0.02, dtype=jnp.bfloat16):
        v = jax.random.truncated_normal(k, -2.0, 2.0, shape, jnp.float32) * std
        return v.astype(dtype)

    hidden = int(embed_dim * mlp_ratio)
    keys = jax.random.split(key, 4 + depth)
    params = {
        # matmul weights stored bf16 (MXU inputs); biases / LN / tokens in f32
        "patch_w": tn(keys[0], (in_c * patch_size * patch_size, embed_dim)),
        "patch_b": jnp.zeros((embed_dim,), jnp.float32),
        "cls_token": tn(keys[1], (1, 1, embed_dim), dtype=jnp.float32),
        "pos_embed": tn(keys[2], (1, num_patches + 1, embed_dim), dtype=jnp.float32),
        "norm_g": jnp.ones((embed_dim,), jnp.float32),
        "norm_b": jnp.zeros((embed_dim,), jnp.float32),
        "head_w": tn(keys[3], (embed_dim, num_classes)),
        "head_b": jnp.zeros((num_classes,), jnp.float32),
        "blocks": [],
    }
    for i in range(depth):
        bk = jax.random.split(keys[4 + i], 4)
        params["blocks"].append({
            "ln1_g": jnp.ones((embed_dim,), jnp.float32),
            "ln1_b": jnp.zeros((embed_dim,), jnp.float32),
            "qkv_w": tn(bk[0], (embed_dim, 3 * embed_dim)),
            "qkv_b": jnp.zeros((3 * embed_dim,), jnp.float32),
            "proj_w": tn(bk[1], (embed_dim, embed_dim)),
            "proj_b": jnp.zeros((embed_dim,), jnp.float32),
            "ln2_g": jnp.ones((embed_dim,), jnp.float32),
            "ln2_b": jnp.zeros((embed_dim,), jnp.float32),
            "fc1_w": tn(bk[2], (embed_dim, hidden)),
            "fc1_b": jnp.zeros((hidden,), jnp.float32),
            "fc2_w": tn(bk[3], (hidden, embed_dim)),
            "fc2_b": jnp.zeros((embed_dim,), jnp.float32),
        })
    return params


# ---------------------------------- main ------------------------------------ #

if __name__ == "__main__":
    key = jax.random.PRNGKey(0)
    kp, kx = jax.random.split(key)

    # small ViT config consistent with the module's constructor
    B, C, H, W = 2, 3, 16, 16
    patch, embed, depth, heads, classes = 4, 32, 2, 4, 10
    num_patches = (H // patch) * (W // patch)   # 16 -> seq len 17 with cls token

    params = init_params(
        kp, in_c=C, patch_size=patch, embed_dim=embed, depth=depth,
        mlp_ratio=4.0, num_classes=classes, num_patches=num_patches,
    )
    x = jax.random.normal(kx, (B, C, H, W), jnp.float32)

    fwd = jax.jit(functools.partial(
        vit_forward, patch_size=patch, embed_dim=embed, num_heads=heads,
        num_classes=classes))
    out = jax.block_until_ready(fwd(x, params))
    assert out.shape == (B, classes) and out.dtype == jnp.float32
    print("KERNEL_OK")
</pallas_src>

<mosaic_0001>
module attributes {stable_mosaic.version = 11 : i64} {
  func.func @_attn_proj_kernel(%arg0: i32, %arg1: memref<1x32x96xbf16, #tpu.memory_space<vmem>>, %arg2: memref<32x32xbf16, #tpu.memory_space<vmem>>, %arg3: memref<1x32xf32, #tpu.memory_space<vmem>>, %arg4: memref<1x32x32xf32, #tpu.memory_space<vmem>>, %arg5: memref<1x32x32xf32, #tpu.memory_space<vmem>>, %arg6: memref<32x32xbf16, #tpu.memory_space<vmem>>) attributes {dimension_semantics = [#tpu.dimension_semantics<parallel>], iteration_bounds = array<i64: 2>, scalar_prefetch = 0 : i64, scratch_operands = 1 : i64, tpu.core_type = #tpu.core_type<tc>, window_params = [{transform_indices = @transform_0, window_bounds = array<i64: 1, 32, 96>}, {pipeline_mode = #tpu.pipeline_mode<synchronous>, transform_indices = @transform_1, window_bounds = array<i64: 32, 32>}, {pipeline_mode = #tpu.pipeline_mode<synchronous>, transform_indices = @transform_2, window_bounds = array<i64: 1, 32>}, {transform_indices = @transform_3, window_bounds = array<i64: 1, 32, 32>}, {transform_indices = @transform_4, window_bounds = array<i64: 1, 32, 32>}]} {
    %0 = tpu.iota {dimensions = array<i32: 1>} : vector<32x32xi32>
    %c17_i32 = arith.constant 17 : i32
    %1 = vector.broadcast %c17_i32 : i32 to vector<32x32xi32>
    %2 = arith.cmpi slt, %0, %1 : vector<32x32xi32>
    %c0 = arith.constant 0 : index
    %c0_0 = arith.constant 0 : index
    %c0_1 = arith.constant 0 : index
    %3 = vector.load %arg1[%c0, %c0_0, %c0_1] : memref<1x32x96xbf16, #tpu.memory_space<vmem>>, vector<1x32x8xbf16>
    %4 = vector.shape_cast %3 : vector<1x32x8xbf16> to vector<32x8xbf16>
    %c0_2 = arith.constant 0 : index
    %c0_3 = arith.constant 0 : index
    %c32 = arith.constant 32 : index
    %5 = vector.load %arg1[%c0_2, %c0_3, %c32] : memref<1x32x96xbf16, #tpu.memory_space<vmem>>, vector<1x32x8xbf16>
    %6 = vector.shape_cast %5 : vector<1x32x8xbf16> to vector<32x8xbf16>
    %c0_4 = arith.constant 0 : index
    %c0_5 = arith.constant 0 : index
    %c64 = arith.constant 64 : index
    %7 = vector.load %arg1[%c0_4, %c0_5, %c64] : memref<1x32x96xbf16, #tpu.memory_space<vmem>>, vector<1x32x8xbf16>
    %8 = vector.shape_cast %7 : vector<1x32x8xbf16> to vector<32x8xbf16>
    %cst = arith.constant dense<0.000000e+00> : vector<32x32xf32>
    %9 = tpu.matmul %4, %6, %cst {dimension_numbers = #tpu.dot_dimension_numbers<[1], [1], [0], [0], [0, 0, 1, 0], [], []>} : vector<32x8xbf16>, vector<32x8xbf16>, vector<32x32xf32> -> vector<32x32xf32>
    %cst_6 = arith.constant 0.353553385 : f32
    %10 = vector.broadcast %cst_6 : f32 to vector<32x32xf32>
    %11 = arith.mulf %9, %10 : vector<32x32xf32>
    %cst_7 = arith.constant -1.000000e+30 : f32
    %12 = vector.broadcast %cst_7 : f32 to vector<32x32xf32>
    %13 = arith.select %2, %11, %12 : vector<32x32xi1>, vector<32x32xf32>
    %cst_8 = arith.constant dense<0xFF800000> : vector<32xf32>
    %14 = vector.multi_reduction <maximumf>, %13, %cst_8 [1] : vector<32x32xf32> to vector<32xf32>
    %15 = vector.shape_cast %14 : vector<32xf32> to vector<32x1xf32>
    %16 = vector.broadcast %15 : vector<32x1xf32> to vector<32x32xf32>
    %17 = arith.subf %13, %16 : vector<32x32xf32>
    %18 = math.exp %17 : vector<32x32xf32>
    %cst_9 = arith.constant dense<0.000000e+00> : vector<32xf32>
    %19 = vector.multi_reduction <add>, %18, %cst_9 [1] : vector<32x32xf32> to vector<32xf32>
    %20 = vector.shape_cast %19 : vector<32xf32> to vector<32x1xf32>
    %21 = tpu.reciprocal %20 {approx = true} : vector<32x1xf32> -> vector<32x1xf32>
    %22 = vector.broadcast %21 : vector<32x1xf32> to vector<32x32xf32>
    %23 = arith.mulf %18, %22 : vector<32x32xf32>
    %24 = arith.truncf %23 : vector<32x32xf32> to vector<32x32xbf16>
    %cst_10 = arith.constant dense<0.000000e+00> : vector<32x8xf32>
    %25 = tpu.matmul %24, %8, %cst_10 {dimension_numbers = #tpu.dot_dimension_numbers<[1], [0], [0], [1], [0, 0, 1, 1], [], []>} : vector<32x32xbf16>, vector<32x8xbf16>, vector<32x8xf32> -> vector<32x8xf32>
    %26 = arith.truncf %25 : vector<32x8xf32> to vector<32x8xbf16>
    %c0_11 = arith.constant 0 : index
    %c0_12 = arith.constant 0 : index
    %27 = vector.load %arg6[%c0_11, %c0_12] : memref<32x32xbf16, #tpu.memory_space<vmem>>, vector<32x8xbf16>
    tpu.vector_store %arg6[%c0_11, %c0_12], %26 {strides = array<i32>} : memref<32x32xbf16, #tpu.memory_space<vmem>>, vector<32x8xbf16>,
    %c0_13 = arith.constant 0 : index
    %c0_14 = arith.constant 0 : index
    %c8 = arith.constant 8 : index
    %28 = vector.load %arg1[%c0_13, %c0_14, %c8] : memref<1x32x96xbf16, #tpu.memory_space<vmem>>, vector<1x32x8xbf16>
    %29 = vector.shape_cast %28 : vector<1x32x8xbf16> to vector<32x8xbf16>
    %c0_15 = arith.constant 0 : index
    %c0_16 = arith.constant 0 : index
    %c40 = arith.constant 40 : index
    %30 = vector.load %arg1[%c0_15, %c0_16, %c40] : memref<1x32x96xbf16, #tpu.memory_space<vmem>>, vector<1x32x8xbf16>
    %31 = vector.shape_cast %30 : vector<1x32x8xbf16> to vector<32x8xbf16>
    %c0_17 = arith.constant 0 : index
    %c0_18 = arith.constant 0 : index
    %c72 = arith.constant 72 : index
    %32 = vector.load %arg1[%c0_17, %c0_18, %c72] : memref<1x32x96xbf16, #tpu.memory_space<vmem>>, vector<1x32x8xbf16>
    %33 = vector.shape_cast %32 : vector<1x32x8xbf16> to vector<32x8xbf16>
    %cst_19 = arith.constant dense<0.000000e+00> : vector<32x32xf32>
    %34 = tpu.matmul %29, %31, %cst_19 {dimension_numbers = #tpu.dot_dimension_numbers<[1], [1], [0], [0], [0, 0, 1, 0], [], []>} : vector<32x8xbf16>, vector<32x8xbf16>, vector<32x32xf32> -> vector<32x32xf32>
    %cst_20 = arith.constant 0.353553385 : f32
    %35 = vector.broadcast %cst_20 : f32 to vector<32x32xf32>
    %36 = arith.mulf %34, %35 : vector<32x32xf32>
    %cst_21 = arith.constant -1.000000e+30 : f32
    %37 = vector.broadcast %cst_21 : f32 to vector<32x32xf32>
    %38 = arith.select %2, %36, %37 : vector<32x32xi1>, vector<32x32xf32>
    %cst_22 = arith.constant dense<0xFF800000> : vector<32xf32>
    %39 = vector.multi_reduction <maximumf>, %38, %cst_22 [1] : vector<32x32xf32> to vector<32xf32>
    %40 = vector.shape_cast %39 : vector<32xf32> to vector<32x1xf32>
    %41 = vector.broadcast %40 : vector<32x1xf32> to vector<32x32xf32>
    %42 = arith.subf %38, %41 : vector<32x32xf32>
    %43 = math.exp %42 : vector<32x32xf32>
    %cst_23 = arith.constant dense<0.000000e+00> : vector<32xf32>
    %44 = vector.multi_reduction <add>, %43, %cst_23 [1] : vector<32x32xf32> to vector<32xf32>
    %45 = vector.shape_cast %44 : vector<32xf32> to vector<32x1xf32>
    %46 = tpu.reciprocal %45 {approx = true} : vector<32x1xf32> -> vector<32x1xf32>
    %47 = vector.broadcast %46 : vector<32x1xf32> to vector<32x32xf32>
    %48 = arith.mulf %43, %47 : vector<32x32xf32>
    %49 = arith.truncf %48 : vector<32x32xf32> to vector<32x32xbf16>
    %cst_24 = arith.constant dense<0.000000e+00> : vector<32x8xf32>
    %50 = tpu.matmul %49, %33, %cst_24 {dimension_numbers = #tpu.dot_dimension_numbers<[1], [0], [0], [1], [0, 0, 1, 1], [], []>} : vector<32x32xbf16>, vector<32x8xbf16>, vector<32x8xf32> -> vector<32x8xf32>
    %51 = arith.truncf %50 : vector<32x8xf32> to vector<32x8xbf16>
    %c0_25 = arith.constant 0 : index
    %c8_26 = arith.constant 8 : index
    %52 = vector.load %arg6[%c0_25, %c8_26] : memref<32x32xbf16, #tpu.memory_space<vmem>>, vector<32x8xbf16>
    tpu.vector_store %arg6[%c0_25, %c8_26], %51 {strides = array<i32>} : memref<32x32xbf16, #tpu.memory_space<vmem>>, vector<32x8xbf16>,
    %c0_27 = arith.constant 0 : index
    %c0_28 = arith.constant 0 : index
    %c16 = arith.constant 16 : index
    %53 = vector.load %arg1[%c0_27, %c0_28, %c16] : memref<1x32x96xbf16, #tpu.memory_space<vmem>>, vector<1x32x8xbf16>
    %54 = vector.shape_cast %53 : vector<1x32x8xbf16> to vector<32x8xbf16>
    %c0_29 = arith.constant 0 : index
    %c0_30 = arith.constant 0 : index
    %c48 = arith.constant 48 : index
    %55 = vector.load %arg1[%c0_29, %c0_30, %c48] : memref<1x32x96xbf16, #tpu.memory_space<vmem>>, vector<1x32x8xbf16>
    %56 = vector.shape_cast %55 : vector<1x32x8xbf16> to vector<32x8xbf16>
    %c0_31 = arith.constant 0 : index
    %c0_32 = arith.constant 0 : index
    %c80 = arith.constant 80 : index
    %57 = vector.load %arg1[%c0_31, %c0_32, %c80] : memref<1x32x96xbf16, #tpu.memory_space<vmem>>, vector<1x32x8xbf16>
    %58 = vector.shape_cast %57 : vector<1x32x8xbf16> to vector<32x8xbf16>
    %cst_33 = arith.constant dense<0.000000e+00> : vector<32x32xf32>
    %59 = tpu.matmul %54, %56, %cst_33 {dimension_numbers = #tpu.dot_dimension_numbers<[1], [1], [0], [0], [0, 0, 1, 0], [], []>} : vector<32x8xbf16>, vector<32x8xbf16>, vector<32x32xf32> -> vector<32x32xf32>
    %cst_34 = arith.constant 0.353553385 : f32
    %60 = vector.broadcast %cst_34 : f32 to vector<32x32xf32>
    %61 = arith.mulf %59, %60 : vector<32x32xf32>
    %cst_35 = arith.constant -1.000000e+30 : f32
    %62 = vector.broadcast %cst_35 : f32 to vector<32x32xf32>
    %63 = arith.select %2, %61, %62 : vector<32x32xi1>, vector<32x32xf32>
    %cst_36 = arith.constant dense<0xFF800000> : vector<32xf32>
    %64 = vector.multi_reduction <maximumf>, %63, %cst_36 [1] : vector<32x32xf32> to vector<32xf32>
    %65 = vector.shape_cast %64 : vector<32xf32> to vector<32x1xf32>
    %66 = vector.broadcast %65 : vector<32x1xf32> to vector<32x32xf32>
    %67 = arith.subf %63, %66 : vector<32x32xf32>
    %68 = math.exp %67 : vector<32x32xf32>
    %cst_37 = arith.constant dense<0.000000e+00> : vector<32xf32>
    %69 = vector.multi_reduction <add>, %68, %cst_37 [1] : vector<32x32xf32> to vector<32xf32>
    %70 = vector.shape_cast %69 : vector<32xf32> to vector<32x1xf32>
    %71 = tpu.reciprocal %70 {approx = true} : vector<32x1xf32> -> vector<32x1xf32>
    %72 = vector.broadcast %71 : vector<32x1xf32> to vector<32x32xf32>
    %73 = arith.mulf %68, %72 : vector<32x32xf32>
    %74 = arith.truncf %73 : vector<32x32xf32> to vector<32x32xbf16>
    %cst_38 = arith.constant dense<0.000000e+00> : vector<32x8xf32>
    %75 = tpu.matmul %74, %58, %cst_38 {dimension_numbers = #tpu.dot_dimension_numbers<[1], [0], [0], [1], [0, 0, 1, 1], [], []>} : vector<32x32xbf16>, vector<32x8xbf16>, vector<32x8xf32> -> vector<32x8xf32>
    %76 = arith.truncf %75 : vector<32x8xf32> to vector<32x8xbf16>
    %c0_39 = arith.constant 0 : index
    %c16_40 = arith.constant 16 : index
    %77 = vector.load %arg6[%c0_39, %c16_40] : memref<32x32xbf16, #tpu.memory_space<vmem>>, vector<32x8xbf16>
    tpu.vector_store %arg6[%c0_39, %c16_40], %76 {strides = array<i32>} : memref<32x32xbf16, #tpu.memory_space<vmem>>, vector<32x8xbf16>,
    %c0_41 = arith.constant 0 : index
    %c0_42 = arith.constant 0 : index
    %c24 = arith.constant 24 : index
    %78 = vector.load %arg1[%c0_41, %c0_42, %c24] : memref<1x32x96xbf16, #tpu.memory_space<vmem>>, vector<1x32x8xbf16>
    %79 = vector.shape_cast %78 : vector<1x32x8xbf16> to vector<32x8xbf16>
    %c0_43 = arith.constant 0 : index
    %c0_44 = arith.constant 0 : index
    %c56 = arith.constant 56 : index
    %80 = vector.load %arg1[%c0_43, %c0_44, %c56] : memref<1x32x96xbf16, #tpu.memory_space<vmem>>, vector<1x32x8xbf16>
    %81 = vector.shape_cast %80 : vector<1x32x8xbf16> to vector<32x8xbf16>
    %c0_45 = arith.constant 0 : index
    %c0_46 = arith.constant 0 : index
    %c88 = arith.constant 88 : index
    %82 = vector.load %arg1[%c0_45, %c0_46, %c88] : memref<1x32x96xbf16, #tpu.memory_space<vmem>>, vector<1x32x8xbf16>
    %83 = vector.shape_cast %82 : vector<1x32x8xbf16> to vector<32x8xbf16>
    %cst_47 = arith.constant dense<0.000000e+00> : vector<32x32xf32>
    %84 = tpu.matmul %79, %81, %cst_47 {dimension_numbers = #tpu.dot_dimension_numbers<[1], [1], [0], [0], [0, 0, 1, 0], [], []>} : vector<32x8xbf16>, vector<32x8xbf16>, vector<32x32xf32> -> vector<32x32xf32>
    %cst_48 = arith.constant 0.353553385 : f32
    %85 = vector.broadcast %cst_48 : f32 to vector<32x32xf32>
    %86 = arith.mulf %84, %85 : vector<32x32xf32>
    %cst_49 = arith.constant -1.000000e+30 : f32
    %87 = vector.broadcast %cst_49 : f32 to vector<32x32xf32>
    %88 = arith.select %2, %86, %87 : vector<32x32xi1>, vector<32x32xf32>
    %cst_50 = arith.constant dense<0xFF800000> : vector<32xf32>
    %89 = vector.multi_reduction <maximumf>, %88, %cst_50 [1] : vector<32x32xf32> to vector<32xf32>
    %90 = vector.shape_cast %89 : vector<32xf32> to vector<32x1xf32>
    %91 = vector.broadcast %90 : vector<32x1xf32> to vector<32x32xf32>
    %92 = arith.subf %88, %91 : vector<32x32xf32>
    %93 = math.exp %92 : vector<32x32xf32>
    %cst_51 = arith.constant dense<0.000000e+00> : vector<32xf32>
    %94 = vector.multi_reduction <add>, %93, %cst_51 [1] : vector<32x32xf32> to vector<32xf32>
    %95 = vector.shape_cast %94 : vector<32xf32> to vector<32x1xf32>
    %96 = tpu.reciprocal %95 {approx = true} : vector<32x1xf32> -> vector<32x1xf32>
    %97 = vector.broadcast %96 : vector<32x1xf32> to vector<32x32xf32>
    %98 = arith.mulf %93, %97 : vector<32x32xf32>
    %99 = arith.truncf %98 : vector<32x32xf32> to vector<32x32xbf16>
    %cst_52 = arith.constant dense<0.000000e+00> : vector<32x8xf32>
    %100 = tpu.matmul %99, %83, %cst_52 {dimension_numbers = #tpu.dot_dimension_numbers<[1], [0], [0], [1], [0, 0, 1, 1], [], []>} : vector<32x32xbf16>, vector<32x8xbf16>, vector<32x8xf32> -> vector<32x8xf32>
    %101 = arith.truncf %100 : vector<32x8xf32> to vector<32x8xbf16>
    %c0_53 = arith.constant 0 : index
    %c24_54 = arith.constant 24 : index
    %102 = vector.load %arg6[%c0_53, %c24_54] : memref<32x32xbf16, #tpu.memory_space<vmem>>, vector<32x8xbf16>
    tpu.vector_store %arg6[%c0_53, %c24_54], %101 {strides = array<i32>} : memref<32x32xbf16, #tpu.memory_space<vmem>>, vector<32x8xbf16>,
    %c0_55 = arith.constant 0 : index
    %c0_56 = arith.constant 0 : index
    %103 = vector.load %arg6[%c0_55, %c0_56] : memref<32x32xbf16, #tpu.memory_space<vmem>>, vector<32x32xbf16>
    %c0_57 = arith.constant 0 : index
    %c0_58 = arith.constant 0 : index
    %104 = vector.load %arg2[%c0_57, %c0_58] : memref<32x32xbf16, #tpu.memory_space<vmem>>, vector<32x32xbf16>
    %cst_59 = arith.constant dense<0.000000e+00> : vector<32x32xf32>
    %105 = tpu.matmul %103, %104, %cst_59 {dimension_numbers = #tpu.dot_dimension_numbers<[1], [0], [0], [1], [0, 0, 1, 1], [], []>} : vector<32x32xbf16>, vector<32x32xbf16>, vector<32x32xf32> -> vector<32x32xf32>
    %c0_60 = arith.constant 0 : index
    %c0_61 = arith.constant 0 : index
    %106 = vector.load %arg3[%c0_60, %c0_61] : memref<1x32xf32, #tpu.memory_space<vmem>>, vector<1x32xf32>
    %107 = vector.broadcast %106 : vector<1x32xf32> to vector<32x32xf32>
    %108 = arith.addf %105, %107 : vector<32x32xf32>
    %c0_62 = arith.constant 0 : index
    %c0_63 = arith.constant 0 : index
    %c0_64 = arith.constant 0 : index
    %109 = vector.load %arg4[%c0_62, %c0_63, %c0_64] : memref<1x32x32xf32, #tpu.memory_space<vmem>>, vector<1x32x32xf32>
    %110 = vector.shape_cast %109 : vector<1x32x32xf32> to vector<32x32xf32>
    %111 = arith.addf %108, %110 : vector<32x32xf32>
    %c0_65 = arith.constant 0 : index
    %c0_66 = arith.constant 0 : index
    %c0_67 = arith.constant 0 : index
    %112 = vector.load %arg5[%c0_65, %c0_66, %c0_67] : memref<1x32x32xf32, #tpu.memory_space<vmem>>, vector<1x32x32xf32>
    %113 = vector.shape_cast %112 : vector<1x32x32xf32> to vector<32x32xf32>
    %114 = vector.shape_cast %111 : vector<32x32xf32> to vector<1x32x32xf32>
    tpu.vector_store %arg5[%c0_65, %c0_66, %c0_67], %114 {strides = array<i32>} : memref<1x32x32xf32, #tpu.memory_space<vmem>>, vector<1x32x32xf32>,
    return
  }
  func.func @transform_0(%arg0: i32) -> (i32, i32, i32) {
    %c0_i32 = arith.constant 0 : i32
    %c0_i32_0 = arith.constant 0 : i32
    %c0_i32_1 = arith.constant 0 : i32
    return %arg0, %c0_i32, %c0_i32_0 : i32, i32, i32
  }
  func.func @transform_1(%arg0: i32) -> (i32, i32) {
    %c0_i32 = arith.constant 0 : i32
    %c0_i32_0 = arith.constant 0 : i32
    %c0_i32_1 = arith.constant 0 : i32
    return %c0_i32, %c0_i32_0 : i32, i32
  }
  func.func @transform_2(%arg0: i32) -> (i32, i32) {
    %c0_i32 = arith.constant 0 : i32
    %c0_i32_0 = arith.constant 0 : i32
    %c0_i32_1 = arith.constant 0 : i32
    return %c0_i32, %c0_i32_0 : i32, i32
  }
  func.func @transform_3(%arg0: i32) -> (i32, i32, i32) {
    %c0_i32 = arith.constant 0 : i32
    %c0_i32_0 = arith.constant 0 : i32
    %c0_i32_1 = arith.constant 0 : i32
    return %arg0, %c0_i32, %c0_i32_0 : i32, i32, i32
  }
  func.func @transform_4(%arg0: i32) -> (i32, i32, i32) {
    %c0_i32 = arith.constant 0 : i32
    %c0_i32_0 = arith.constant 0 : i32
    %c0_i32_1 = arith.constant 0 : i32
    return %arg0, %c0_i32, %c0_i32_0 : i32, i32, i32
  }
}

module attributes {stable_mosaic.version = 11 : i64} {
  func.func @_matmul_kernel(%arg0: i32, %arg1: i32, %arg2: i32, %arg3: memref<32x48xf32, #tpu.memory_space<vmem>>, %arg4: memref<48x32xbf16, #tpu.memory_space<vmem>>, %arg5: memref<1x32xf32, #tpu.memory_space<vmem>>, %arg6: memref<32x32xf32, #tpu.memory_space<vmem>>, %arg7: memref<32x32xf32, #tpu.memory_space<vmem>>) attributes {dimension_semantics = [#tpu.dimension_semantics<parallel>, #tpu.dimension_semantics<parallel>, #tpu.dimension_semantics<arbitrary>], iteration_bounds = array<i64: 1, 1, 1>, scalar_prefetch = 0 : i64, scratch_operands = 1 : i64, tpu.core_type = #tpu.core_type<tc>, window_params = [{transform_indices = @transform_0, window_bounds = array<i64: 32, 48>}, {transform_indices = @transform_1, window_bounds = array<i64: 48, 32>}, {transform_indices = @transform_2, window_bounds = array<i64: 1, 32>}, {transform_indices = @transform_3, window_bounds = array<i64: 32, 32>}]} {
    %c0_i32 = arith.constant 0 : i32
    %0 = arith.cmpi eq, %arg2, %c0_i32 : i32
    %1 = arith.extui %0 : i1 to i32
    %c0_i32_0 = arith.constant 0 : i32
    %2 = arith.cmpi ne, %1, %c0_i32_0 : i32
    scf.if %2 {
      %cst_10 = arith.constant 0.000000e+00 : f32
      %13 = vector.broadcast %cst_10 : f32 to vector<32x32xf32>
      %c0_11 = arith.constant 0 : index
      %c0_12 = arith.constant 0 : index
      %14 = vector.load %arg7[%c0_11, %c0_12] : memref<32x32xf32, #tpu.memory_space<vmem>>, vector<32x32xf32>
      tpu.vector_store %arg7[%c0_11, %c0_12], %13 {strides = array<i32>} : memref<32x32xf32, #tpu.memory_space<vmem>>, vector<32x32xf32>,
    } else {
    }
    %c0 = arith.constant 0 : index
    %c0_1 = arith.constant 0 : index
    %3 = vector.load %arg3[%c0, %c0_1] : memref<32x48xf32, #tpu.memory_space<vmem>>, vector<32x48xf32>
    %4 = arith.truncf %3 : vector<32x48xf32> to vector<32x48xbf16>
    %c0_2 = arith.constant 0 : index
    %c0_3 = arith.constant 0 : index
    %5 = vector.load %arg7[%c0_2, %c0_3] : memref<32x32xf32, #tpu.memory_space<vmem>>, vector<32x32xf32>
    %c0_4 = arith.constant 0 : index
    %c0_5 = arith.constant 0 : index
    %6 = vector.load %arg4[%c0_4, %c0_5] : memref<48x32xbf16, #tpu.memory_space<vmem>>, vector<48x32xbf16>
    %cst = arith.constant dense<0.000000e+00> : vector<32x32xf32>
    %7 = tpu.matmul %4, %6, %cst {dimension_numbers = #tpu.dot_dimension_numbers<[1], [0], [0], [1], [0, 0, 1, 1], [], []>} : vector<32x48xbf16>, vector<48x32xbf16>, vector<32x32xf32> -> vector<32x32xf32>
    %8 = arith.addf %5, %7 : vector<32x32xf32>
    %c0_6 = arith.constant 0 : index
    %c0_7 = arith.constant 0 : index
    %9 = vector.load %arg7[%c0_6, %c0_7] : memref<32x32xf32, #tpu.memory_space<vmem>>, vector<32x32xf32>
    tpu.vector_store %arg7[%c0_6, %c0_7], %8 {strides = array<i32>} : memref<32x32xf32, #tpu.memory_space<vmem>>, vector<32x32xf32>,
    %c0_i32_8 = arith.constant 0 : i32
    %10 = arith.cmpi eq, %arg2, %c0_i32_8 : i32
    %11 = arith.extui %10 : i1 to i32
    %c0_i32_9 = arith.constant 0 : i32
    %12 = arith.cmpi ne, %11, %c0_i32_9 : i32
    scf.if %12 {
      %c0_10 = arith.constant 0 : index
      %c0_11 = arith.constant 0 : index
      %13 = vector.load %arg7[%c0_10, %c0_11] : memref<32x32xf32, #tpu.memory_space<vmem>>, vector<32x32xf32>
      %c0_12 = arith.constant 0 : index
      %c0_13 = arith.constant 0 : index
      %14 = vector.load %arg5[%c0_12, %c0_13] : memref<1x32xf32, #tpu.memory_space<vmem>>, vector<1x32xf32>
      %15 = vector.broadcast %14 : vector<1x32xf32> to vector<32x32xf32>
      %16 = arith.addf %13, %15 : vector<32x32xf32>
      %c0_14 = arith.constant 0 : index
      %c0_15 = arith.constant 0 : index
      %17 = vector.load %arg6[%c0_14, %c0_15] : memref<32x32xf32, #tpu.memory_space<vmem>>, vector<32x32xf32>
      tpu.vector_store %arg6[%c0_14, %c0_15], %16 {strides = array<i32>} : memref<32x32xf32, #tpu.memory_space<vmem>>, vector<32x32xf32>,
    } else {
    }
    return
  }
  func.func @transform_0(%arg0: i32, %arg1: i32, %arg2: i32) -> (i32, i32) {
    %c0_i32 = arith.constant 0 : i32
    return %arg0, %arg2 : i32, i32
  }
  func.func @transform_1(%arg0: i32, %arg1: i32, %arg2: i32) -> (i32, i32) {
    %c0_i32 = arith.constant 0 : i32
    return %arg2, %arg1 : i32, i32
  }
  func.func @transform_2(%arg0: i32, %arg1: i32, %arg2: i32) -> (i32, i32) {
    %c0_i32 = arith.constant 0 : i32
    %c0_i32_0 = arith.constant 0 : i32
    return %c0_i32, %arg1 : i32, i32
  }
  func.func @transform_3(%arg0: i32, %arg1: i32, %arg2: i32) -> (i32, i32) {
    %c0_i32 = arith.constant 0 : i32
    return %arg0, %arg1 : i32, i32
  }
}

module attributes {stable_mosaic.version = 11 : i64} {
  func.func @_ln_matmul_kernel(%arg0: i32, %arg1: i32, %arg2: memref<64x32xf32, #tpu.memory_space<vmem>>, %arg3: memref<1x32xf32, #tpu.memory_space<vmem>>, %arg4: memref<1x32xf32, #tpu.memory_space<vmem>>, %arg5: memref<32x96xbf16, #tpu.memory_space<vmem>>, %arg6: memref<1x96xf32, #tpu.memory_space<vmem>>, %arg7: memref<64x96xbf16, #tpu.memory_space<vmem>>, %arg8: memref<64x32xbf16, #tpu.memory_space<vmem>>) attributes {dimension_semantics = [#tpu.dimension_semantics<parallel>, #tpu.dimension_semantics<arbitrary>], iteration_bounds = array<i64: 1, 1>, scalar_prefetch = 0 : i64, scratch_operands = 1 : i64, tpu.core_type = #tpu.core_type<tc>, window_params = [{transform_indices = @transform_0, window_bounds = array<i64: 64, 32>}, {pipeline_mode = #tpu.pipeline_mode<synchronous>, transform_indices = @transform_1, window_bounds = array<i64: 1, 32>}, {pipeline_mode = #tpu.pipeline_mode<synchronous>, transform_indices = @transform_2, window_bounds = array<i64: 1, 32>}, {transform_indices = @transform_3, window_bounds = array<i64: 32, 96>}, {transform_indices = @transform_4, window_bounds = array<i64: 1, 96>}, {transform_indices = @transform_5, window_bounds = array<i64: 64, 96>}]} {
    %c0_i32 = arith.constant 0 : i32
    %0 = arith.cmpi eq, %arg1, %c0_i32 : i32
    %1 = arith.extui %0 : i1 to i32
    %c0_i32_0 = arith.constant 0 : i32
    %2 = arith.cmpi ne, %1, %c0_i32_0 : i32
    scf.if %2 {
      %c0_8 = arith.constant 0 : index
      %c0_9 = arith.constant 0 : index
      %11 = vector.load %arg2[%c0_8, %c0_9] : memref<64x32xf32, #tpu.memory_space<vmem>>, vector<64x32xf32>
      %cst_10 = arith.constant dense<0.000000e+00> : vector<64xf32>
      %12 = vector.multi_reduction <add>, %11, %cst_10 [1] : vector<64x32xf32> to vector<64xf32>
      %13 = vector.shape_cast %12 : vector<64xf32> to vector<64x1xf32>
      %cst_11 = arith.constant 3.200000e+01 : f32
      %14 = vector.broadcast %cst_11 : f32 to vector<64x1xf32>
      %15 = arith.divf %13, %14 : vector<64x1xf32>
      %16 = vector.broadcast %15 : vector<64x1xf32> to vector<64x32xf32>
      %17 = arith.subf %11, %16 : vector<64x32xf32>
      %18 = arith.mulf %17, %17 : vector<64x32xf32>
      %cst_12 = arith.constant dense<0.000000e+00> : vector<64xf32>
      %19 = vector.multi_reduction <add>, %18, %cst_12 [1] : vector<64x32xf32> to vector<64xf32>
      %20 = vector.shape_cast %19 : vector<64xf32> to vector<64x1xf32>
      %cst_13 = arith.constant 3.200000e+01 : f32
      %21 = vector.broadcast %cst_13 : f32 to vector<64x1xf32>
      %22 = arith.divf %20, %21 : vector<64x1xf32>
      %23 = vector.broadcast %15 : vector<64x1xf32> to vector<64x32xf32>
      %24 = arith.subf %11, %23 : vector<64x32xf32>
      %cst_14 = arith.constant 9.99999997E-7 : f32
      %25 = vector.broadcast %cst_14 : f32 to vector<64x1xf32>
      %26 = arith.addf %22, %25 : vector<64x1xf32>
      %27 = math.rsqrt %26 : vector<64x1xf32>
      %28 = vector.broadcast %27 : vector<64x1xf32> to vector<64x32xf32>
      %29 = arith.mulf %24, %28 : vector<64x32xf32>
      %c0_15 = arith.constant 0 : index
      %c0_16 = arith.constant 0 : index
      %30 = vector.load %arg3[%c0_15, %c0_16] : memref<1x32xf32, #tpu.memory_space<vmem>>, vector<1x32xf32>
      %31 = vector.broadcast %30 : vector<1x32xf32> to vector<64x32xf32>
      %32 = arith.mulf %29, %31 : vector<64x32xf32>
      %c0_17 = arith.constant 0 : index
      %c0_18 = arith.constant 0 : index
      %33 = vector.load %arg4[%c0_17, %c0_18] : memref<1x32xf32, #tpu.memory_space<vmem>>, vector<1x32xf32>
      %34 = vector.broadcast %33 : vector<1x32xf32> to vector<64x32xf32>
      %35 = arith.addf %32, %34 : vector<64x32xf32>
      %36 = arith.truncf %35 : vector<64x32xf32> to vector<64x32xbf16>
      %c0_19 = arith.constant 0 : index
      %c0_20 = arith.constant 0 : index
      %37 = vector.load %arg8[%c0_19, %c0_20] : memref<64x32xbf16, #tpu.memory_space<vmem>>, vector<64x32xbf16>
      tpu.vector_store %arg8[%c0_19, %c0_20], %36 {strides = array<i32>} : memref<64x32xbf16, #tpu.memory_space<vmem>>, vector<64x32xbf16>,
    } else {
    }
    %c0 = arith.constant 0 : index
    %c0_1 = arith.constant 0 : index
    %3 = vector.load %arg8[%c0, %c0_1] : memref<64x32xbf16, #tpu.memory_space<vmem>>, vector<64x32xbf16>
    %c0_2 = arith.constant 0 : index
    %c0_3 = arith.constant 0 : index
    %4 = vector.load %arg5[%c0_2, %c0_3] : memref<32x96xbf16, #tpu.memory_space<vmem>>, vector<32x96xbf16>
    %cst = arith.constant dense<0.000000e+00> : vector<64x96xf32>
    %5 = tpu.matmul %3, %4, %cst {dimension_numbers = #tpu.dot_dimension_numbers<[1], [0], [0], [1], [0, 0, 1, 1], [], []>} : vector<64x32xbf16>, vector<32x96xbf16>, vector<64x96xf32> -> vector<64x96xf32>
    %c0_4 = arith.constant 0 : index
    %c0_5 = arith.constant 0 : index
    %6 = vector.load %arg6[%c0_4, %c0_5] : memref<1x96xf32, #tpu.memory_space<vmem>>, vector<1x96xf32>
    %7 = vector.broadcast %6 : vector<1x96xf32> to vector<64x96xf32>
    %8 = arith.addf %5, %7 : vector<64x96xf32>
    %9 = arith.truncf %8 : vector<64x96xf32> to vector<64x96xbf16>
    %c0_6 = arith.constant 0 : index
    %c0_7 = arith.constant 0 : index
    %10 = vector.load %arg7[%c0_6, %c0_7] : memref<64x96xbf16, #tpu.memory_space<vmem>>, vector<64x96xbf16>
    tpu.vector_store %arg7[%c0_6, %c0_7], %9 {strides = array<i32>} : memref<64x96xbf16, #tpu.memory_space<vmem>>, vector<64x96xbf16>,
    return
  }
  func.func @transform_0(%arg0: i32, %arg1: i32) -> (i32, i32) {
    %c0_i32 = arith.constant 0 : i32
    %c0_i32_0 = arith.constant 0 : i32
    return %arg0, %c0_i32 : i32, i32
  }
  func.func @transform_1(%arg0: i32, %arg1: i32) -> (i32, i32) {
    %c0_i32 = arith.constant 0 : i32
    %c0_i32_0 = arith.constant 0 : i32
    %c0_i32_1 = arith.constant 0 : i32
    return %c0_i32, %c0_i32_0 : i32, i32
  }
  func.func @transform_2(%arg0: i32, %arg1: i32) -> (i32, i32) {
    %c0_i32 = arith.constant 0 : i32
    %c0_i32_0 = arith.constant 0 : i32
    %c0_i32_1 = arith.constant 0 : i32
    return %c0_i32, %c0_i32_0 : i32, i32
  }
  func.func @transform_3(%arg0: i32, %arg1: i32) -> (i32, i32) {
    %c0_i32 = arith.constant 0 : i32
    %c0_i32_0 = arith.constant 0 : i32
    return %c0_i32, %arg1 : i32, i32
  }
  func.func @transform_4(%arg0: i32, %arg1: i32) -> (i32, i32) {
    %c0_i32 = arith.constant 0 : i32
    %c0_i32_0 = arith.constant 0 : i32
    return %c0_i32, %arg1 : i32, i32
  }
  func.func @transform_5(%arg0: i32, %arg1: i32) -> (i32, i32) {
    %c0_i32 = arith.constant 0 : i32
    return %arg0, %arg1 : i32, i32
  }
}

module attributes {stable_mosaic.version = 11 : i64} {
  func.func @_ln_matmul_kernel(%arg0: i32, %arg1: i32, %arg2: memref<64x32xf32, #tpu.memory_space<vmem>>, %arg3: memref<1x32xf32, #tpu.memory_space<vmem>>, %arg4: memref<1x32xf32, #tpu.memory_space<vmem>>, %arg5: memref<32x128xbf16, #tpu.memory_space<vmem>>, %arg6: memref<1x128xf32, #tpu.memory_space<vmem>>, %arg7: memref<64x128xbf16, #tpu.memory_space<vmem>>, %arg8: memref<64x32xbf16, #tpu.memory_space<vmem>>) attributes {dimension_semantics = [#tpu.dimension_semantics<parallel>, #tpu.dimension_semantics<arbitrary>], iteration_bounds = array<i64: 1, 1>, scalar_prefetch = 0 : i64, scratch_operands = 1 : i64, tpu.core_type = #tpu.core_type<tc>, window_params = [{transform_indices = @transform_0, window_bounds = array<i64: 64, 32>}, {pipeline_mode = #tpu.pipeline_mode<synchronous>, transform_indices = @transform_1, window_bounds = array<i64: 1, 32>}, {pipeline_mode = #tpu.pipeline_mode<synchronous>, transform_indices = @transform_2, window_bounds = array<i64: 1, 32>}, {transform_indices = @transform_3, window_bounds = array<i64: 32, 128>}, {transform_indices = @transform_4, window_bounds = array<i64: 1, 128>}, {transform_indices = @transform_5, window_bounds = array<i64: 64, 128>}]} {
    %c0_i32 = arith.constant 0 : i32
    %0 = arith.cmpi eq, %arg1, %c0_i32 : i32
    %1 = arith.extui %0 : i1 to i32
    %c0_i32_0 = arith.constant 0 : i32
    %2 = arith.cmpi ne, %1, %c0_i32_0 : i32
    scf.if %2 {
      %c0_11 = arith.constant 0 : index
      %c0_12 = arith.constant 0 : index
      %19 = vector.load %arg2[%c0_11, %c0_12] : memref<64x32xf32, #tpu.memory_space<vmem>>, vector<64x32xf32>
      %cst_13 = arith.constant dense<0.000000e+00> : vector<64xf32>
      %20 = vector.multi_reduction <add>, %19, %cst_13 [1] : vector<64x32xf32> to vector<64xf32>
      %21 = vector.shape_cast %20 : vector<64xf32> to vector<64x1xf32>
      %cst_14 = arith.constant 3.200000e+01 : f32
      %22 = vector.broadcast %cst_14 : f32 to vector<64x1xf32>
      %23 = arith.divf %21, %22 : vector<64x1xf32>
      %24 = vector.broadcast %23 : vector<64x1xf32> to vector<64x32xf32>
      %25 = arith.subf %19, %24 : vector<64x32xf32>
      %26 = arith.mulf %25, %25 : vector<64x32xf32>
      %cst_15 = arith.constant dense<0.000000e+00> : vector<64xf32>
      %27 = vector.multi_reduction <add>, %26, %cst_15 [1] : vector<64x32xf32> to vector<64xf32>
      %28 = vector.shape_cast %27 : vector<64xf32> to vector<64x1xf32>
      %cst_16 = arith.constant 3.200000e+01 : f32
      %29 = vector.broadcast %cst_16 : f32 to vector<64x1xf32>
      %30 = arith.divf %28, %29 : vector<64x1xf32>
      %31 = vector.broadcast %23 : vector<64x1xf32> to vector<64x32xf32>
      %32 = arith.subf %19, %31 : vector<64x32xf32>
      %cst_17 = arith.constant 9.99999997E-7 : f32
      %33 = vector.broadcast %cst_17 : f32 to vector<64x1xf32>
      %34 = arith.addf %30, %33 : vector<64x1xf32>
      %35 = math.rsqrt %34 : vector<64x1xf32>
      %36 = vector.broadcast %35 : vector<64x1xf32> to vector<64x32xf32>
      %37 = arith.mulf %32, %36 : vector<64x32xf32>
      %c0_18 = arith.constant 0 : index
      %c0_19 = arith.constant 0 : index
      %38 = vector.load %arg3[%c0_18, %c0_19] : memref<1x32xf32, #tpu.memory_space<vmem>>, vector<1x32xf32>
      %39 = vector.broadcast %38 : vector<1x32xf32> to vector<64x32xf32>
      %40 = arith.mulf %37, %39 : vector<64x32xf32>
      %c0_20 = arith.constant 0 : index
      %c0_21 = arith.constant 0 : index
      %41 = vector.load %arg4[%c0_20, %c0_21] : memref<1x32xf32, #tpu.memory_space<vmem>>, vector<1x32xf32>
      %42 = vector.broadcast %41 : vector<1x32xf32> to vector<64x32xf32>
      %43 = arith.addf %40, %42 : vector<64x32xf32>
      %44 = arith.truncf %43 : vector<64x32xf32> to vector<64x32xbf16>
      %c0_22 = arith.constant 0 : index
      %c0_23 = arith.constant 0 : index
      %45 = vector.load %arg8[%c0_22, %c0_23] : memref<64x32xbf16, #tpu.memory_space<vmem>>, vector<64x32xbf16>
      tpu.vector_store %arg8[%c0_22, %c0_23], %44 {strides = array<i32>} : memref<64x32xbf16, #tpu.memory_space<vmem>>, vector<64x32xbf16>,
    } else {
    }
    %c0 = arith.constant 0 : index
    %c0_1 = arith.constant 0 : index
    %3 = vector.load %arg8[%c0, %c0_1] : memref<64x32xbf16, #tpu.memory_space<vmem>>, vector<64x32xbf16>
    %c0_2 = arith.constant 0 : index
    %c0_3 = arith.constant 0 : index
    %4 = vector.load %arg5[%c0_2, %c0_3] : memref<32x128xbf16, #tpu.memory_space<vmem>>, vector<32x128xbf16>
    %cst = arith.constant dense<0.000000e+00> : vector<64x128xf32>
    %5 = tpu.matmul %3, %4, %cst {dimension_numbers = #tpu.dot_dimension_numbers<[1], [0], [0], [1], [0, 0, 1, 1], [], []>} : vector<64x32xbf16>, vector<32x128xbf16>, vector<64x128xf32> -> vector<64x128xf32>
    %c0_4 = arith.constant 0 : index
    %c0_5 = arith.constant 0 : index
    %6 = vector.load %arg6[%c0_4, %c0_5] : memref<1x128xf32, #tpu.memory_space<vmem>>, vector<1x128xf32>
    %7 = vector.broadcast %6 : vector<1x128xf32> to vector<64x128xf32>
    %8 = arith.addf %5, %7 : vector<64x128xf32>
    %cst_6 = arith.constant 5.000000e-01 : f32
    %9 = vector.broadcast %cst_6 : f32 to vector<64x128xf32>
    %10 = arith.mulf %9, %8 : vector<64x128xf32>
    %cst_7 = arith.constant 0.707106769 : f32
    %11 = vector.broadcast %cst_7 : f32 to vector<64x128xf32>
    %12 = arith.mulf %8, %11 : vector<64x128xf32>
    %13 = math.erf %12 : vector<64x128xf32>
    %cst_8 = arith.constant 1.000000e+00 : f32
    %14 = vector.broadcast %cst_8 : f32 to vector<64x128xf32>
    %15 = arith.addf %14, %13 : vector<64x128xf32>
    %16 = arith.mulf %10, %15 : vector<64x128xf32>
    %17 = arith.truncf %16 : vector<64x128xf32> to vector<64x128xbf16>
    %c0_9 = arith.constant 0 : index
    %c0_10 = arith.constant 0 : index
    %18 = vector.load %arg7[%c0_9, %c0_10] : memref<64x128xbf16, #tpu.memory_space<vmem>>, vector<64x128xbf16>
    tpu.vector_store %arg7[%c0_9, %c0_10], %17 {strides = array<i32>} : memref<64x128xbf16, #tpu.memory_space<vmem>>, vector<64x128xbf16>,
    return
  }
  func.func @transform_0(%arg0: i32, %arg1: i32) -> (i32, i32) {
    %c0_i32 = arith.constant 0 : i32
    %c0_i32_0 = arith.constant 0 : i32
    return %arg0, %c0_i32 : i32, i32
  }
  func.func @transform_1(%arg0: i32, %arg1: i32) -> (i32, i32) {
    %c0_i32 = arith.constant 0 : i32
    %c0_i32_0 = arith.constant 0 : i32
    %c0_i32_1 = arith.constant 0 : i32
    return %c0_i32, %c0_i32_0 : i32, i32
  }
  func.func @transform_2(%arg0: i32, %arg1: i32) -> (i32, i32) {
    %c0_i32 = arith.constant 0 : i32
    %c0_i32_0 = arith.constant 0 : i32
    %c0_i32_1 = arith.constant 0 : i32
    return %c0_i32, %c0_i32_0 : i32, i32
  }
  func.func @transform_3(%arg0: i32, %arg1: i32) -> (i32, i32) {
    %c0_i32 = arith.constant 0 : i32
    %c0_i32_0 = arith.constant 0 : i32
    return %c0_i32, %arg1 : i32, i32
  }
  func.func @transform_4(%arg0: i32, %arg1: i32) -> (i32, i32) {
    %c0_i32 = arith.constant 0 : i32
    %c0_i32_0 = arith.constant 0 : i32
    return %c0_i32, %arg1 : i32, i32
  }
  func.func @transform_5(%arg0: i32, %arg1: i32) -> (i32, i32) {
    %c0_i32 = arith.constant 0 : i32
    return %arg0, %arg1 : i32, i32
  }
}

module attributes {stable_mosaic.version = 11 : i64} {
  func.func @_matmul_res_kernel(%arg0: i32, %arg1: i32, %arg2: i32, %arg3: memref<64x128xbf16, #tpu.memory_space<vmem>>, %arg4: memref<128x32xbf16, #tpu.memory_space<vmem>>, %arg5: memref<1x32xf32, #tpu.memory_space<vmem>>, %arg6: memref<64x32xf32, #tpu.memory_space<vmem>>, %arg7: memref<64x32xf32, #tpu.memory_space<vmem>>, %arg8: memref<64x32xf32, #tpu.memory_space<vmem>>) attributes {dimension_semantics = [#tpu.dimension_semantics<parallel>, #tpu.dimension_semantics<parallel>, #tpu.dimension_semantics<arbitrary>], iteration_bounds = array<i64: 1, 1, 1>, scalar_prefetch = 0 : i64, scratch_operands = 1 : i64, tpu.core_type = #tpu.core_type<tc>, window_params = [{transform_indices = @transform_0, window_bounds = array<i64: 64, 128>}, {transform_indices = @transform_1, window_bounds = array<i64: 128, 32>}, {transform_indices = @transform_2, window_bounds = array<i64: 1, 32>}, {transform_indices = @transform_3, window_bounds = array<i64: 64, 32>}, {transform_indices = @transform_4, window_bounds = array<i64: 64, 32>}]} {
    %c0_i32 = arith.constant 0 : i32
    %0 = arith.cmpi eq, %arg2, %c0_i32 : i32
    %1 = arith.extui %0 : i1 to i32
    %c0_i32_0 = arith.constant 0 : i32
    %2 = arith.cmpi ne, %1, %c0_i32_0 : i32
    scf.if %2 {
      %cst_10 = arith.constant 0.000000e+00 : f32
      %12 = vector.broadcast %cst_10 : f32 to vector<64x32xf32>
      %c0_11 = arith.constant 0 : index
      %c0_12 = arith.constant 0 : index
      %13 = vector.load %arg8[%c0_11, %c0_12] : memref<64x32xf32, #tpu.memory_space<vmem>>, vector<64x32xf32>
      tpu.vector_store %arg8[%c0_11, %c0_12], %12 {strides = array<i32>} : memref<64x32xf32, #tpu.memory_space<vmem>>, vector<64x32xf32>,
    } else {
    }
    %c0 = arith.constant 0 : index
    %c0_1 = arith.constant 0 : index
    %3 = vector.load %arg3[%c0, %c0_1] : memref<64x128xbf16, #tpu.memory_space<vmem>>, vector<64x128xbf16>
    %c0_2 = arith.constant 0 : index
    %c0_3 = arith.constant 0 : index
    %4 = vector.load %arg8[%c0_2, %c0_3] : memref<64x32xf32, #tpu.memory_space<vmem>>, vector<64x32xf32>
    %c0_4 = arith.constant 0 : index
    %c0_5 = arith.constant 0 : index
    %5 = vector.load %arg4[%c0_4, %c0_5] : memref<128x32xbf16, #tpu.memory_space<vmem>>, vector<128x32xbf16>
    %cst = arith.constant dense<0.000000e+00> : vector<64x32xf32>
    %6 = tpu.matmul %3, %5, %cst {dimension_numbers = #tpu.dot_dimension_numbers<[1], [0], [0], [1], [0, 0, 1, 1], [], []>} : vector<64x128xbf16>, vector<128x32xbf16>, vector<64x32xf32> -> vector<64x32xf32>
    %7 = arith.addf %4, %6 : vector<64x32xf32>
    %c0_6 = arith.constant 0 : index
    %c0_7 = arith.constant 0 : index
    %8 = vector.load %arg8[%c0_6, %c0_7] : memref<64x32xf32, #tpu.memory_space<vmem>>, vector<64x32xf32>
    tpu.vector_store %arg8[%c0_6, %c0_7], %7 {strides = array<i32>} : memref<64x32xf32, #tpu.memory_space<vmem>>, vector<64x32xf32>,
    %c0_i32_8 = arith.constant 0 : i32
    %9 = arith.cmpi eq, %arg2, %c0_i32_8 : i32
    %10 = arith.extui %9 : i1 to i32
    %c0_i32_9 = arith.constant 0 : i32
    %11 = arith.cmpi ne, %10, %c0_i32_9 : i32
    scf.if %11 {
      %c0_10 = arith.constant 0 : index
      %c0_11 = arith.constant 0 : index
      %12 = vector.load %arg8[%c0_10, %c0_11] : memref<64x32xf32, #tpu.memory_space<vmem>>, vector<64x32xf32>
      %c0_12 = arith.constant 0 : index
      %c0_13 = arith.constant 0 : index
      %13 = vector.load %arg5[%c0_12, %c0_13] : memref<1x32xf32, #tpu.memory_space<vmem>>, vector<1x32xf32>
      %14 = vector.broadcast %13 : vector<1x32xf32> to vector<64x32xf32>
      %15 = arith.addf %12, %14 : vector<64x32xf32>
      %c0_14 = arith.constant 0 : index
      %c0_15 = arith.constant 0 : index
      %16 = vector.load %arg6[%c0_14, %c0_15] : memref<64x32xf32, #tpu.memory_space<vmem>>, vector<64x32xf32>
      %17 = arith.addf %15, %16 : vector<64x32xf32>
      %c0_16 = arith.constant 0 : index
      %c0_17 = arith.constant 0 : index
      %18 = vector.load %arg7[%c0_16, %c0_17] : memref<64x32xf32, #tpu.memory_space<vmem>>, vector<64x32xf32>
      tpu.vector_store %arg7[%c0_16, %c0_17], %17 {strides = array<i32>} : memref<64x32xf32, #tpu.memory_space<vmem>>, vector<64x32xf32>,
    } else {
    }
    return
  }
  func.func @transform_0(%arg0: i32, %arg1: i32, %arg2: i32) -> (i32, i32) {
    %c0_i32 = arith.constant 0 : i32
    return %arg0, %arg2 : i32, i32
  }
  func.func @transform_1(%arg0: i32, %arg1: i32, %arg2: i32) -> (i32, i32) {
    %c0_i32 = arith.constant 0 : i32
    return %arg2, %arg1 : i32, i32
  }
  func.func @transform_2(%arg0: i32, %arg1: i32, %arg2: i32) -> (i32, i32) {
    %c0_i32 = arith.constant 0 : i32
    %c0_i32_0 = arith.constant 0 : i32
    return %c0_i32, %arg1 : i32, i32
  }
  func.func @transform_3(%arg0: i32, %arg1: i32, %arg2: i32) -> (i32, i32) {
    %c0_i32 = arith.constant 0 : i32
    return %arg0, %arg1 : i32, i32
  }
  func.func @transform_4(%arg0: i32, %arg1: i32, %arg2: i32) -> (i32, i32) {
    %c0_i32 = arith.constant 0 : i32
    return %arg0, %arg1 : i32, i32
  }
}

module attributes {stable_mosaic.version = 11 : i64} {
  func.func @_ln_matmul_kernel(%arg0: i32, %arg1: i32, %arg2: memref<2x32xf32, #tpu.memory_space<vmem>>, %arg3: memref<1x32xf32, #tpu.memory_space<vmem>>, %arg4: memref<1x32xf32, #tpu.memory_space<vmem>>, %arg5: memref<32x128xbf16, #tpu.memory_space<vmem>>, %arg6: memref<1x128xf32, #tpu.memory_space<vmem>>, %arg7: memref<2x128xf32, #tpu.memory_space<vmem>>, %arg8: memref<2x32xbf16, #tpu.memory_space<vmem>>) attributes {dimension_semantics = [#tpu.dimension_semantics<parallel>, #tpu.dimension_semantics<arbitrary>], iteration_bounds = array<i64: 1, 1>, scalar_prefetch = 0 : i64, scratch_operands = 1 : i64, tpu.core_type = #tpu.core_type<tc>, window_params = [{transform_indices = @transform_0, window_bounds = array<i64: 2, 32>}, {pipeline_mode = #tpu.pipeline_mode<synchronous>, transform_indices = @transform_1, window_bounds = array<i64: 1, 32>}, {pipeline_mode = #tpu.pipeline_mode<synchronous>, transform_indices = @transform_2, window_bounds = array<i64: 1, 32>}, {transform_indices = @transform_3, window_bounds = array<i64: 32, 128>}, {transform_indices = @transform_4, window_bounds = array<i64: 1, 128>}, {transform_indices = @transform_5, window_bounds = array<i64: 2, 128>}]} {
    %c0_i32 = arith.constant 0 : i32
    %0 = arith.cmpi eq, %arg1, %c0_i32 : i32
    %1 = arith.extui %0 : i1 to i32
    %c0_i32_0 = arith.constant 0 : i32
    %2 = arith.cmpi ne, %1, %c0_i32_0 : i32
    scf.if %2 {
      %c0_8 = arith.constant 0 : index
      %c0_9 = arith.constant 0 : index
      %10 = vector.load %arg2[%c0_8, %c0_9] : memref<2x32xf32, #tpu.memory_space<vmem>>, vector<2x32xf32>
      %cst_10 = arith.constant dense<0.000000e+00> : vector<2xf32>
      %11 = vector.multi_reduction <add>, %10, %cst_10 [1] : vector<2x32xf32> to vector<2xf32>
      %12 = vector.shape_cast %11 : vector<2xf32> to vector<2x1xf32>
      %cst_11 = arith.constant 3.200000e+01 : f32
      %13 = vector.broadcast %cst_11 : f32 to vector<2x1xf32>
      %14 = arith.divf %12, %13 : vector<2x1xf32>
      %15 = vector.broadcast %14 : vector<2x1xf32> to vector<2x32xf32>
      %16 = arith.subf %10, %15 : vector<2x32xf32>
      %17 = arith.mulf %16, %16 : vector<2x32xf32>
      %cst_12 = arith.constant dense<0.000000e+00> : vector<2xf32>
      %18 = vector.multi_reduction <add>, %17, %cst_12 [1] : vector<2x32xf32> to vector<2xf32>
      %19 = vector.shape_cast %18 : vector<2xf32> to vector<2x1xf32>
      %cst_13 = arith.constant 3.200000e+01 : f32
      %20 = vector.broadcast %cst_13 : f32 to vector<2x1xf32>
      %21 = arith.divf %19, %20 : vector<2x1xf32>
      %22 = vector.broadcast %14 : vector<2x1xf32> to vector<2x32xf32>
      %23 = arith.subf %10, %22 : vector<2x32xf32>
      %cst_14 = arith.constant 9.99999997E-7 : f32
      %24 = vector.broadcast %cst_14 : f32 to vector<2x1xf32>
      %25 = arith.addf %21, %24 : vector<2x1xf32>
      %26 = math.rsqrt %25 : vector<2x1xf32>
      %27 = vector.broadcast %26 : vector<2x1xf32> to vector<2x32xf32>
      %28 = arith.mulf %23, %27 : vector<2x32xf32>
      %c0_15 = arith.constant 0 : index
      %c0_16 = arith.constant 0 : index
      %29 = vector.load %arg3[%c0_15, %c0_16] : memref<1x32xf32, #tpu.memory_space<vmem>>, vector<1x32xf32>
      %30 = vector.broadcast %29 : vector<1x32xf32> to vector<2x32xf32>
      %31 = arith.mulf %28, %30 : vector<2x32xf32>
      %c0_17 = arith.constant 0 : index
      %c0_18 = arith.constant 0 : index
      %32 = vector.load %arg4[%c0_17, %c0_18] : memref<1x32xf32, #tpu.memory_space<vmem>>, vector<1x32xf32>
      %33 = vector.broadcast %32 : vector<1x32xf32> to vector<2x32xf32>
      %34 = arith.addf %31, %33 : vector<2x32xf32>
      %35 = arith.truncf %34 : vector<2x32xf32> to vector<2x32xbf16>
      %c0_19 = arith.constant 0 : index
      %c0_20 = arith.constant 0 : index
      %36 = vector.load %arg8[%c0_19, %c0_20] : memref<2x32xbf16, #tpu.memory_space<vmem>>, vector<2x32xbf16>
      tpu.vector_store %arg8[%c0_19, %c0_20], %35 {strides = array<i32>} : memref<2x32xbf16, #tpu.memory_space<vmem>>, vector<2x32xbf16>,
    } else {
    }
    %c0 = arith.constant 0 : index
    %c0_1 = arith.constant 0 : index
    %3 = vector.load %arg8[%c0, %c0_1] : memref<2x32xbf16, #tpu.memory_space<vmem>>, vector<2x32xbf16>
    %c0_2 = arith.constant 0 : index
    %c0_3 = arith.constant 0 : index
    %4 = vector.load %arg5[%c0_2, %c0_3] : memref<32x128xbf16, #tpu.memory_space<vmem>>, vector<32x128xbf16>
    %cst = arith.constant dense<0.000000e+00> : vector<2x128xf32>
    %5 = tpu.matmul %3, %4, %cst {dimension_numbers = #tpu.dot_dimension_numbers<[1], [0], [0], [1], [0, 0, 1, 1], [], []>} : vector<2x32xbf16>, vector<32x128xbf16>, vector<2x128xf32> -> vector<2x128xf32>
    %c0_4 = arith.constant 0 : index
    %c0_5 = arith.constant 0 : index
    %6 = vector.load %arg6[%c0_4, %c0_5] : memref<1x128xf32, #tpu.memory_space<vmem>>, vector<1x128xf32>
    %7 = vector.broadcast %6 : vector<1x128xf32> to vector<2x128xf32>
    %8 = arith.addf %5, %7 : vector<2x128xf32>
    %c0_6 = arith.constant 0 : index
    %c0_7 = arith.constant 0 : index
    %9 = vector.load %arg7[%c0_6, %c0_7] : memref<2x128xf32, #tpu.memory_space<vmem>>, vector<2x128xf32>
    tpu.vector_store %arg7[%c0_6, %c0_7], %8 {strides = array<i32>} : memref<2x128xf32, #tpu.memory_space<vmem>>, vector<2x128xf32>,
    return
  }
  func.func @transform_0(%arg0: i32, %arg1: i32) -> (i32, i32) {
    %c0_i32 = arith.constant 0 : i32
    %c0_i32_0 = arith.constant 0 : i32
    return %arg0, %c0_i32 : i32, i32
  }
  func.func @transform_1(%arg0: i32, %arg1: i32) -> (i32, i32) {
    %c0_i32 = arith.constant 0 : i32
    %c0_i32_0 = arith.constant 0 : i32
    %c0_i32_1 = arith.constant 0 : i32
    return %c0_i32, %c0_i32_0 : i32, i32
  }
  func.func @transform_2(%arg0: i32, %arg1: i32) -> (i32, i32) {
    %c0_i32 = arith.constant 0 : i32
    %c0_i32_0 = arith.constant 0 : i32
    %c0_i32_1 = arith.constant 0 : i32
    return %c0_i32, %c0_i32_0 : i32, i32
  }
  func.func @transform_3(%arg0: i32, %arg1: i32) -> (i32, i32) {
    %c0_i32 = arith.constant 0 : i32
    %c0_i32_0 = arith.constant 0 : i32
    return %c0_i32, %arg1 : i32, i32
  }
  func.func @transform_4(%arg0: i32, %arg1: i32) -> (i32, i32) {
    %c0_i32 = arith.constant 0 : i32
    %c0_i32_0 = arith.constant 0 : i32
    return %c0_i32, %arg1 : i32, i32
  }
  func.func @transform_5(%arg0: i32, %arg1: i32) -> (i32, i32) {
    %c0_i32 = arith.constant 0 : i32
    return %arg0, %arg1 : i32, i32
  }
}

</mosaic_0001>

<llo_original>
// kernel: vit_forward.10
$region0: #{vit_forward.10}
  #allocation0 [shape = 'u32[]', space=smem, size = 0x4, offset = 0x4, fixed_abs, tag = 'smem constant byte address 0x4 - core index']
  #allocation1 [shape = 'u32[144,128]{1,0:T(1,128)}', space=vmem, size = 0x12000, scoped, tag = 'internal scratch']
  #allocation2 [shape = 'f32[32,32]{1,0:T(8,128)}', space=vmem, size = 0x4000, scoped, tag = 'scratch operand']
  %s0 = inlined_call_operand.vmem [shape: f32[32,48], index: 0, kind: input, shape index: {}]
  %s1 = inlined_call_operand.vmem [shape: bf16[48,32], index: 1, kind: input, shape index: {}]
  %s2 = inlined_call_operand.vmem [shape: f32[1,32], index: 2, kind: input, shape index: {}]
  %s3 = inlined_call_operand.vmem [shape: f32[32,32], index: 3, kind: output, shape index: {}]
  %s4 = sld [smem:[#allocation0]]
  $region30: #{vit_forward.10} parent=0
    _
  %s6 = ssub.s32 1, %s4
  %s7 = scalar_select 0, %s6, %s4
  // Predicated region
  $region2: #{vit_forward.10} parent=0 // pred_check
    _
  $region3: #{vit_forward.10} parent=0 // pred_check_branch
    %9 = sbr.rel (0) target = $region5
  $region4: #{vit_forward.10} parent=0 // pred_region
    _
  $region5: #{vit_forward.10} parent=0 // pred_fallthru
    _
  // Predicated region
  $region6: #{vit_forward.10} parent=0 // pred_check
    _
  $region7: #{vit_forward.10} parent=0 // pred_check_branch
    %11 = sbr.rel (0) target = $region9
  $region8: #{vit_forward.10} parent=0 // pred_region
    _
  $region9: #{vit_forward.10} parent=0 // pred_fallthru
    _
  // Predicated region
  $region10: #{vit_forward.10} parent=0 // pred_check
    _
  $region11: #{vit_forward.10} parent=0 // pred_check_branch
    %13 = sbr.rel (0) target = $region13
  $region12: #{vit_forward.10} parent=0 // pred_region
    _
  $region13: #{vit_forward.10} parent=0 // pred_fallthru
    _
  %p15 = scmp.eq.s32.totalorder 0, 0
  // Predicated region
  $region14: #{vit_forward.10} parent=0 // pred_check
    %p16 = pneg %p15
  $region15: #{vit_forward.10} parent=0 // pred_check_branch
    %18 = sbr.rel (%p16) target = $region17
  $region16: #{vit_forward.10} parent=0 // pred_region
    %vm19 = vcmask 261120
    %20 = vst.msk [vmem:[#allocation2] sm:$0xff] %vm19, 0.0
    %21 = vst.msk [vmem:[#allocation2 + $0x8] sm:$0xff] %vm19, 0.0
    %22 = vst.msk [vmem:[#allocation2 + $0x10] sm:$0xff] %vm19, 0.0
    %23 = vst.msk [vmem:[#allocation2 + $0x18] sm:$0xff] %vm19, 0.0
  $region17: #{vit_forward.10} parent=0 // pred_fallthru
    _
  %v24 = vld [vmem:[%s0] sm:$0xff]
  %v25 = vld [vmem:[%s0 + $0x8] sm:$0xff]
  %v26 = vld [vmem:[%s0 + $0x10] sm:$0xff]
  %v27 = vld [vmem:[%s0 + $0x18] sm:$0xff]
  %v28 = vpack.c.bf16 %v25, %v24
  %v29 = vpack.c.bf16 %v27, %v26
  %v30 = vld [vmem:[#allocation2] sm:$0xff]
  %v31 = vld [vmem:[#allocation2 + $0x8] sm:$0xff]
  %v32 = vld [vmem:[#allocation2 + $0x10] sm:$0xff]
  %v33 = vld [vmem:[#allocation2 + $0x18] sm:$0xff]
  %v34 = vld [vmem:[%s1] sm:$0xf]
  %v35 = vld [vmem:[%s1 + $0x4] sm:$0xf]
  %v36 = vld [vmem:[%s1 + $0x8] sm:$0xf]
  %v37 = vld [vmem:[%s1 + $0xc] sm:$0xf]
  %v38 = vld [vmem:[%s1 + $0x10] sm:$0xf]
  %v39 = vld [vmem:[%s1 + $0x14] sm:$0xf]
  %v46 = vunpack.c.l.b16 %v34
  %v47 = vunpack.c.l.b16 %v35
  %v48 = vunpack.c.l.b16 %v36
  %v49 = vunpack.c.l.b16 %v37
  %v50 = vunpack.c.l.b16 %v38
  %v51 = vunpack.c.l.b16 %v39
  %v52 = vpack.c.b16 %v47, %v46
  %v53 = vpack.c.b16 %v49, %v48
  %v54 = vpack.c.b16 %v51, %v50
  %vm58 = vcmask 392192
  %v60 = vsel %vm58, %v28, 0
  %v63 = vsel %vm58, %v29, 0
  %65 = vmatprep.subr.bf16.mxu0 0
  %66 = vmatpush1.bf16.msra.mxu0 %v52
  %67 = vmatprep.subr.bf16.mxu0 0
  %68 = vmatpush1.bf16.msra.mxu0 %v53
  %69 = vmatprep.subr.bf16.mxu0 0
  %70 = vmatpush1.bf16.msra.mxu0 %v54
  %71 = vmatprep.subr.bf16.mxu0 0
  %72 = vmatpush1.bf16.msra.mxu0 0
  %73 = vmatprep.subr.bf16.mxu0 0
  %74 = vmatpush1.bf16.msra.mxu0 0
  %75 = vmatprep.subr.bf16.mxu0 0
  %76 = vmatpush1.bf16.msra.mxu0 0
  %77 = vmatprep.subr.bf16.mxu0 0
  %78 = vmatpush1.bf16.msra.mxu0 0
  %79 = vmatprep.subr.bf16.mxu0 0
  %80 = vmatpush1.bf16.msra.mxu0 0
  %81 = vmatprep.subr.bf16.mxu0 0
  %82 = vmatpush1.bf16.msra.mxu0 0
  %83 = vmatprep.subr.bf16.mxu0 0
  %84 = vmatpush1.bf16.msra.mxu0 0
  %85 = vmatprep.subr.bf16.mxu0 0
  %86 = vmatpush1.bf16.msra.mxu0 0
  %87 = vmatprep.subr.bf16.mxu0 0
  %88 = vmatpush1.bf16.msra.mxu0 0
  %89 = vmatprep.subr.bf16.mxu0 0
  %90 = vmatpush1.bf16.msra.mxu0 0
  %91 = vmatprep.subr.bf16.mxu0 0
  %92 = vmatpush1.bf16.msra.mxu0 0
  %93 = vmatprep.subr.bf16.mxu0 0
  %94 = vmatpush1.bf16.msra.mxu0 0
  %95 = vmatprep.subr.bf16.mxu0 0
  %96 = vmatpush1.bf16.msra.mxu0 0
  %97 = vmatprep.mubr.bf16.mxu0 0
  %98 = vmatmul.mubr.bf16.gmra.mrb[0].mxu0 %v60
  %v99 = vpop.f32.mrb[0].mxu0
  %v100 = vadd.f32 0.0, %v99
  %v101 = vpop.f32.mrb[0].mxu0
  %v102 = vpop.f32.mrb[0].mxu0
  %v103 = vadd.f32 0.0, %v102
  %v104 = vpop.f32.mrb[0].mxu0
  %105 = vmatprep.mubr.bf16.mxu0 0
  %106 = vmatmul.mubr.bf16.gmra.mrb[0].mxu0 %v63
  %v107 = vpop.f32.mrb[0].mxu0
  %v108 = vadd.f32 0.0, %v107
  %v109 = vpop.f32.mrb[0].mxu0
  %v110 = vpop.f32.mrb[0].mxu0
  %v111 = vadd.f32 0.0, %v110
  %v112 = vpop.f32.mrb[0].mxu0
  %113 = vdwg.mxu0
  %v114 = vadd.f32 %v30, %v100
  %v115 = vadd.f32 %v31, %v103
  %v116 = vadd.f32 %v32, %v108
  %v117 = vadd.f32 %v33, %v111
  %vm118 = vcmask 261120
  %119 = vst.msk [vmem:[#allocation2] sm:$0xff] %vm118, %v114
  %120 = vst.msk [vmem:[#allocation2 + $0x8] sm:$0xff] %vm118, %v115
  %121 = vst.msk [vmem:[#allocation2 + $0x10] sm:$0xff] %vm118, %v116
  %122 = vst.msk [vmem:[#allocation2 + $0x18] sm:$0xff] %vm118, %v117
  // Predicated region
  $region18: #{vit_forward.10} parent=0 // pred_check
    %p123 = pneg %p15
  $region19: #{vit_forward.10} parent=0 // pred_check_branch
    %125 = sbr.rel (%p123) target = $region21
  $region20: #{vit_forward.10} parent=0 // pred_region
    %v126 = vld [vmem:[#allocation2] sm:$0xff]
    %v127 = vld [vmem:[#allocation2 + $0x8] sm:$0xff]
    %v128 = vld [vmem:[#allocation2 + $0x10] sm:$0xff]
    %v129 = vld [vmem:[#allocation2 + $0x18] sm:$0xff]
    %v130 = vld [vmem:[%s2] sm:$0x1]
    %v132 = vlaneseq
    %v133 = vshrl.u32 %v132, 7
    %v134 = vsub.s32 0, %v133
    %v135 = vrot.slane %v130, %v134
    %v137 = vadd.f32 %v126, %v135
    %v138 = vadd.f32 %v127, %v135
    %v139 = vadd.f32 %v128, %v135
    %v140 = vadd.f32 %v129, %v135
    %141 = vst.msk [vmem:[%s3] sm:$0xff] %vm118, %v137
    %142 = vst.msk [vmem:[%s3 + $0x8] sm:$0xff] %vm118, %v138
    %143 = vst.msk [vmem:[%s3 + $0x10] sm:$0xff] %vm118, %v139
    %144 = vst.msk [vmem:[%s3 + $0x18] sm:$0xff] %vm118, %v140
  $region21: #{vit_forward.10} parent=0 // pred_fallthru
    _
  // Predicated region
  $region22: #{vit_forward.10} parent=0 // pred_check
    _
  $region23: #{vit_forward.10} parent=0 // pred_check_branch
    %146 = sbr.rel (0) target = $region25
  $region24: #{vit_forward.10} parent=0 // pred_region
    _
  $region25: #{vit_forward.10} parent=0 // pred_fallthru
    _
  // Predicated region
  $region26: #{vit_forward.10} parent=0 // pred_check
    _
  $region27: #{vit_forward.10} parent=0 // pred_check_branch
    %148 = sbr.rel (0) target = $region29
  $region28: #{vit_forward.10} parent=0 // pred_region
    _
  $region29: #{vit_forward.10} parent=0 // pred_fallthru
    _

// kernel: vit_forward.13
$region0: #{vit_forward.13}
  #allocation0 [shape = 'u32[]', space=smem, size = 0x4, offset = 0x4, fixed_abs, tag = 'smem constant byte address 0x4 - core index']
  #allocation1 [shape = 'u32[144,128]{1,0:T(1,128)}', space=vmem, size = 0x12000, scoped, tag = 'internal scratch']
  #allocation2 [shape = 'bf16[64,32]{1,0:T(16,128)(2,1)}', space=vmem, size = 0x4000, scoped, tag = 'scratch operand']
  %s0 = inlined_call_operand.vmem [shape: f32[64,32], index: 0, kind: input, shape index: {}]
  %s1 = inlined_call_operand.vmem [shape: f32[1,32], index: 1, kind: input, shape index: {}]
  %s2 = inlined_call_operand.vmem [shape: f32[1,32], index: 2, kind: input, shape index: {}]
  %s3 = inlined_call_operand.vmem [shape: bf16[32,128], index: 3, kind: input, shape index: {}]
  %s4 = inlined_call_operand.vmem [shape: f32[1,128], index: 4, kind: input, shape index: {}]
  %s5 = inlined_call_operand.vmem [shape: bf16[64,128], index: 5, kind: output, shape index: {}]
  %s6 = sld [smem:[#allocation0]]
  $region34: #{vit_forward.13} parent=0
    _
  %s8 = ssub.s32 1, %s6
  %s9 = scalar_select 0, %s8, %s6
  // Predicated region
  $region2: #{vit_forward.13} parent=0 // pred_check
    _
  $region3: #{vit_forward.13} parent=0 // pred_check_branch
    %11 = sbr.rel (0) target = $region5
  $region4: #{vit_forward.13} parent=0 // pred_region
    _
  $region5: #{vit_forward.13} parent=0 // pred_fallthru
    _
  // Predicated region
  $region6: #{vit_forward.13} parent=0 // pred_check
    _
  $region7: #{vit_forward.13} parent=0 // pred_check_branch
    %13 = sbr.rel (0) target = $region9
  $region8: #{vit_forward.13} parent=0 // pred_region
    _
  $region9: #{vit_forward.13} parent=0 // pred_fallthru
    _
  // Predicated region
  $region10: #{vit_forward.13} parent=0 // pred_check
    _
  $region11: #{vit_forward.13} parent=0 // pred_check_branch
    %15 = sbr.rel (0) target = $region13
  $region12: #{vit_forward.13} parent=0 // pred_region
    _
  $region13: #{vit_forward.13} parent=0 // pred_fallthru
    _
  // Predicated region
  $region14: #{vit_forward.13} parent=0 // pred_check
    _
  $region15: #{vit_forward.13} parent=0 // pred_check_branch
    %17 = sbr.rel (0) target = $region17
  $region16: #{vit_forward.13} parent=0 // pred_region
    _
  $region17: #{vit_forward.13} parent=0 // pred_fallthru
    _
  // Predicated region
  $region18: #{vit_forward.13} parent=0 // pred_check
    _
  $region19: #{vit_forward.13} parent=0 // pred_check_branch
    %19 = sbr.rel (0) target = $region21
  $region20: #{vit_forward.13} parent=0 // pred_region
    _
  $region21: #{vit_forward.13} parent=0 // pred_fallthru
    _
  %p21 = scmp.eq.s32.totalorder 0, 0
  // Predicated region
  $region22: #{vit_forward.13} parent=0 // pred_check
    %p22 = pneg %p21
  $region23: #{vit_forward.13} parent=0 // pred_check_branch
    %24 = sbr.rel (%p22) target = $region25
  $region24: #{vit_forward.13} parent=0 // pred_region
    %v25 = vld [vmem:[%s0] sm:$0xff]
    %v26 = vld [vmem:[%s0 + $0x8] sm:$0xff]
    %v27 = vld [vmem:[%s0 + $0x10] sm:$0xff]
    %v28 = vld [vmem:[%s0 + $0x18] sm:$0xff]
    %v29 = vld [vmem:[%s0 + $0x20] sm:$0xff]
    %v30 = vld [vmem:[%s0 + $0x28] sm:$0xff]
    %v31 = vld [vmem:[%s0 + $0x30] sm:$0xff]
    %v32 = vld [vmem:[%s0 + $0x38] sm:$0xff]
    %vm33 = vcmask 261120
    %v34 = vsel %vm33, %v25, 0.0
    %35 = vadd.xlane.f32.xlu0 %v34
    %v36 = vpop.xlane.xlu0 %35
    %v37 = vsel %vm33, %v26, 0.0
    %38 = vadd.xlane.f32.xlu0 %v37
    %v39 = vpop.xlane.xlu0 %38
    %v40 = vsel %vm33, %v27, 0.0
    %41 = vadd.xlane.f32.xlu0 %v40
    %v42 = vpop.xlane.xlu0 %41
    %v43 = vsel %vm33, %v28, 0.0
    %44 = vadd.xlane.f32.xlu0 %v43
    %v45 = vpop.xlane.xlu0 %44
    %v46 = vsel %vm33, %v29, 0.0
    %47 = vadd.xlane.f32.xlu0 %v46
    %v48 = vpop.xlane.xlu0 %47
    %v49 = vsel %vm33, %v30, 0.0
    %50 = vadd.xlane.f32.xlu0 %v49
    %v51 = vpop.xlane.xlu0 %50
    %v52 = vsel %vm33, %v31, 0.0
    %53 = vadd.xlane.f32.xlu0 %v52
    %v54 = vpop.xlane.xlu0 %53
    %v55 = vsel %vm33, %v32, 0.0
    %56 = vadd.xlane.f32.xlu0 %v55
    %v57 = vpop.xlane.xlu0 %56
    %v58 = vrcp.pop 32.0
    %v59 = vmul.f32 %v36, %v58
    %v60 = vmul.f32 %v39, %v58
    %v61 = vmul.f32 %v42, %v58
    %v62 = vmul.f32 %v45, %v58
    %v63 = vmul.f32 %v48, %v58
    %v64 = vmul.f32 %v51, %v58
    %v65 = vmul.f32 %v54, %v58
    %v66 = vmul.f32 %v57, %v58
    %v67 = vsub.f32 %v25, %v59
    %v68 = vsub.f32 %v26, %v60
    %v69 = vsub.f32 %v27, %v61
    %v70 = vsub.f32 %v28, %v62
    %v71 = vsub.f32 %v29, %v63
    %v72 = vsub.f32 %v30, %v64
    %v73 = vsub.f32 %v31, %v65
    %v74 = vsub.f32 %v32, %v66
    %v75 = vmul.f32 %v67, %v67
    %v76 = vmul.f32 %v68, %v68
    %v77 = vmul.f32 %v69, %v69
    %v78 = vmul.f32 %v70, %v70
    %v79 = vmul.f32 %v71, %v71
    %v80 = vmul.f32 %v72, %v72
    %v81 = vmul.f32 %v73, %v73
    %v82 = vmul.f32 %v74, %v74
    %v83 = vsel %vm33, %v75, 0.0
    %84 = vadd.xlane.f32.xlu0 %v83
    %v85 = vpop.xlane.xlu0 %84
    %v86 = vsel %vm33, %v76, 0.0
    %87 = vadd.xlane.f32.xlu0 %v86
    %v88 = vpop.xlane.xlu0 %87
    %v89 = vsel %vm33, %v77, 0.0
    %90 = vadd.xlane.f32.xlu0 %v89
    %v91 = vpop.xlane.xlu0 %90
    %v92 = vsel %vm33, %v78, 0.0
    %93 = vadd.xlane.f32.xlu0 %v92
    %v94 = vpop.xlane.xlu0 %93
    %v95 = vsel %vm33, %v79, 0.0
    %96 = vadd.xlane.f32.xlu0 %v95
    %v97 = vpop.xlane.xlu0 %96
    %v98 = vsel %vm33, %v80, 0.0
    %99 = vadd.xlane.f32.xlu0 %v98
    %v100 = vpop.xlane.xlu0 %99
    %v101 = vsel %vm33, %v81, 0.0
    %102 = vadd.xlane.f32.xlu0 %v101
    %v103 = vpop.xlane.xlu0 %102
    %v104 = vsel %vm33, %v82, 0.0
    %105 = vadd.xlane.f32.xlu0 %v104
    %v106 = vpop.xlane.xlu0 %105
    %v107 = vmul.f32 %v85, %v58
    %v108 = vmul.f32 %v88, %v58
    %v109 = vmul.f32 %v91, %v58
    %v110 = vmul.f32 %v94, %v58
    %v111 = vmul.f32 %v97, %v58
    %v112 = vmul.f32 %v100, %v58
    %v113 = vmul.f32 %v103, %v58
    %v114 = vmul.f32 %v106, %v58
    %v115 = vadd.f32 %v107, 1e-06
    %v116 = vadd.f32 %v108, 1e-06
    %v117 = vadd.f32 %v109, 1e-06
    %v118 = vadd.f32 %v110, 1e-06
    %v119 = vadd.f32 %v111, 1e-06
    %v120 = vadd.f32 %v112, 1e-06
    %v121 = vadd.f32 %v113, 1e-06
    %v122 = vadd.f32 %v114, 1e-06
    %v123 = vrsqrt.pop %v115
    %v124 = vrsqrt.pop %v116
    %v125 = vrsqrt.pop %v117
    %v126 = vrsqrt.pop %v118
    %v127 = vrsqrt.pop %v119
    %v128 = vrsqrt.pop %v120
    %v129 = vrsqrt.pop %v121
    %v130 = vrsqrt.pop %v122
    %v131 = vmul.f32 %v67, %v123
    %v132 = vmul.f32 %v68, %v124
    %v133 = vmul.f32 %v69, %v125
    %v134 = vmul.f32 %v70, %v126
    %v135 = vmul.f32 %v71, %v127
    %v136 = vmul.f32 %v72, %v128
    %v137 = vmul.f32 %v73, %v129
    %v138 = vmul.f32 %v74, %v130
    %v139 = vld [vmem:[%s1] sm:$0x1]
    %v141 = vlaneseq
    %v142 = vshrl.u32 %v141, 7
    %v143 = vsub.s32 0, %v142
    %v144 = vrot.slane %v139, %v143
    %v146 = vmul.f32 %v131, %v144
    %v147 = vmul.f32 %v132, %v144
    %v148 = vmul.f32 %v133, %v144
    %v149 = vmul.f32 %v134, %v144
    %v150 = vmul.f32 %v135, %v144
    %v151 = vmul.f32 %v136, %v144
    %v152 = vmul.f32 %v137, %v144
    %v153 = vmul.f32 %v138, %v144
    %v154 = vld [vmem:[%s2] sm:$0x1]
    %v156 = vlaneseq
    %v157 = vshrl.u32 %v156, 7
    %v158 = vsub.s32 0, %v157
    %v159 = vrot.slane %v154, %v158
    %v161 = vadd.f32 %v146, %v159
    %v162 = vadd.f32 %v147, %v159
    %v163 = vadd.f32 %v148, %v159
    %v164 = vadd.f32 %v149, %v159
    %v165 = vadd.f32 %v150, %v159
    %v166 = vadd.f32 %v151, %v159
    %v167 = vadd.f32 %v152, %v159
    %v168 = vadd.f32 %v153, %v159
    %v169 = vpack.c.bf16 %v162, %v161
    %v170 = vpack.c.bf16 %v164, %v163
    %v171 = vpack.c.bf16 %v166, %v165
    %v172 = vpack.c.bf16 %v168, %v167
    %173 = vst.msk [vmem:[#allocation2] sm:$0xff] %vm33, %v169
    %174 = vst.msk [vmem:[#allocation2 + $0x8] sm:$0xff] %vm33, %v170
    %175 = vst.msk [vmem:[#allocation2 + $0x10] sm:$0xff] %vm33, %v171
    %176 = vst.msk [vmem:[#allocation2 + $0x18] sm:$0xff] %vm33, %v172
  $region25: #{vit_forward.13} parent=0 // pred_fallthru
    _
  %v177 = vld [vmem:[#allocation2] sm:$0xff]
  %v178 = vld [vmem:[#allocation2 + $0x8] sm:$0xff]
  %v179 = vld [vmem:[#allocation2 + $0x10] sm:$0xff]
  %v180 = vld [vmem:[#allocation2 + $0x18] sm:$0xff]
  %v181 = vld [vmem:[%s3] sm:$0xf]
  %v182 = vld [vmem:[%s3 + $0x4] sm:$0xf]
  %v183 = vld [vmem:[%s3 + $0x8] sm:$0xf]
  %v184 = vld [vmem:[%s3 + $0xc] sm:$0xf]
  %v185 = vld [vmem:[%s4] sm:$0x1]
  %v187 = vlaneseq
  %v188 = vshrl.u32 %v187, 7
  %v189 = vsub.s32 0, %v188
  %v190 = vrot.slane %v185, %v189
  %v196 = vunpack.c.l.b16 %v181
  %v197 = vunpack.c.l.b16 %v182
  %v198 = vunpack.c.l.b16 %v183
  %v199 = vunpack.c.l.b16 %v184
  %v200 = vpack.c.b16 %v197, %v196
  %v201 = vpack.c.b16 %v199, %v198
  %vm204 = vcmask 261120
  %v206 = vsel %vm204, %v177, 0
  %v209 = vsel %vm204, %v178, 0
  %v212 = vsel %vm204, %v179, 0
  %v215 = vsel %vm204, %v180, 0
  %217 = vmatprep.subr.bf16.mxu0 0
  %218 = vmatpush1.bf16.msra.mxu0 %v200
  %219 = vmatprep.subr.bf16.mxu0 0
  %220 = vmatpush1.bf16.msra.mxu0 %v201
  %221 = vmatprep.subr.bf16.mxu0 0
  %222 = vmatpush1.bf16.msra.mxu0 0
  %223 = vmatprep.subr.bf16.mxu0 0
  %224 = vmatpush1.bf16.msra.mxu0 0
  %225 = vmatprep.subr.bf16.mxu0 0
  %226 = vmatpush1.bf16.msra.mxu0 0
  %227 = vmatprep.subr.bf16.mxu0 0
  %228 = vmatpush1.bf16.msra.mxu0 0
  %229 = vmatprep.subr.bf16.mxu0 0
  %230 = vmatpush1.bf16.msra.mxu0 0
  %231 = vmatprep.subr.bf16.mxu0 0
  %232 = vmatpush1.bf16.msra.mxu0 0
  %233 = vmatprep.subr.bf16.mxu0 0
  %234 = vmatpush1.bf16.msra.mxu0 0
  %235 = vmatprep.subr.bf16.mxu0 0
  %236 = vmatpush1.bf16.msra.mxu0 0
  %237 = vmatprep.subr.bf16.mxu0 0
  %238 = vmatpush1.bf16.msra.mxu0 0
  %239 = vmatprep.subr.bf16.mxu0 0
  %240 = vmatpush1.bf16.msra.mxu0 0
  %241 = vmatprep.subr.bf16.mxu0 0
  %242 = vmatpush1.bf16.msra.mxu0 0
  %243 = vmatprep.subr.bf16.mxu0 0
  %244 = vmatpush1.bf16.msra.mxu0 0
  %245 = vmatprep.subr.bf16.mxu0 0
  %246 = vmatpush1.bf16.msra.mxu0 0
  %247 = vmatprep.subr.bf16.mxu0 0
  %248 = vmatpush1.bf16.msra.mxu0 0
  %249 = vmatprep.mubr.bf16.mxu0 0
  %250 = vmatmul.mubr.bf16.gmra.mrb[0].mxu0 %v206
  %v251 = vpop.f32.mrb[0].mxu0
  %v252 = vadd.f32 %v190, %v251
  %v253 = vpop.f32.mrb[0].mxu0
  %v254 = vpop.f32.mrb[0].mxu0
  %v255 = vadd.f32 %v190, %v254
  %v256 = vpop.f32.mrb[0].mxu0
  %257 = vmatprep.mubr.bf16.mxu0 0
  %258 = vmatmul.mubr.bf16.gmra.mrb[0].mxu0 %v209
  %v259 = vpop.f32.mrb[0].mxu0
  %v260 = vadd.f32 %v190, %v259
  %v261 = vpop.f32.mrb[0].mxu0
  %v262 = vpop.f32.mrb[0].mxu0
  %v263 = vadd.f32 %v190, %v262
  %v264 = vpop.f32.mrb[0].mxu0
  %265 = vmatprep.mubr.bf16.mxu0 0
  %266 = vmatmul.mubr.bf16.gmra.mrb[0].mxu0 %v212
  %v267 = vpop.f32.mrb[0].mxu0
  %v268 = vadd.f32 %v190, %v267
  %v269 = vpop.f32.mrb[0].mxu0
  %v270 = vpop.f32.mrb[0].mxu0
  %v271 = vadd.f32 %v190, %v270
  %v272 = vpop.f32.mrb[0].mxu0
  %273 = vmatprep.mubr.bf16.mxu0 0
  %274 = vmatmul.mubr.bf16.gmra.mrb[0].mxu0 %v215
  %v275 = vpop.f32.mrb[0].mxu0
  %v276 = vadd.f32 %v190, %v275
  %v277 = vpop.f32.mrb[0].mxu0
  %v278 = vpop.f32.mrb[0].mxu0
  %v279 = vadd.f32 %v190, %v278
  %v280 = vpop.f32.mrb[0].mxu0
  %281 = vdwg.mxu0
  %v282 = vmul.f32 %v252, 0.5
  %v283 = vmul.f32 %v255, 0.5
  %v284 = vmul.f32 %v260, 0.5
  %v285 = vmul.f32 %v263, 0.5
  %v286 = vmul.f32 %v268, 0.5
  %v287 = vmul.f32 %v271, 0.5
  %v288 = vmul.f32 %v276, 0.5
  %v289 = vmul.f32 %v279, 0.5
  %v290 = vmul.f32 %v252, 0.70710677
  %v291 = vmul.f32 %v255, 0.70710677
  %v292 = vmul.f32 %v260, 0.70710677
  %v293 = vmul.f32 %v263, 0.70710677
  %v294 = vmul.f32 %v268, 0.70710677
  %v295 = vmul.f32 %v271, 0.70710677
  %v296 = vmul.f32 %v276, 0.70710677
  %v297 = vmul.f32 %v279, 0.70710677
  %v298 = verf.f32.pop %v290
  %v299 = verf.f32.pop %v291
  %v300 = verf.f32.pop %v292
  %v301 = verf.f32.pop %v293
  %v302 = verf.f32.pop %v294
  %v303 = verf.f32.pop %v295
  %v304 = verf.f32.pop %v296
  %v305 = verf.f32.pop %v297
  %v306 = vadd.f32 %v298, 1.0
  %v307 = vadd.f32 %v299, 1.0
  %v308 = vadd.f32 %v300, 1.0
  %v309 = vadd.f32 %v301, 1.0
  %v310 = vadd.f32 %v302, 1.0
  %v311 = vadd.f32 %v303, 1.0
  %v312 = vadd.f32 %v304, 1.0
  %v313 = vadd.f32 %v305, 1.0
  %v314 = vmul.f32 %v282, %v306
  %v315 = vmul.f32 %v283, %v307
  %v316 = vmul.f32 %v284, %v308
  %v317 = vmul.f32 %v285, %v309
  %v318 = vmul.f32 %v286, %v310
  %v319 = vmul.f32 %v287, %v311
  %v320 = vmul.f32 %v288, %v312
  %v321 = vmul.f32 %v289, %v313
  %v322 = vpack.c.bf16 %v315, %v314
  %v323 = vpack.c.bf16 %v317, %v316
  %v324 = vpack.c.bf16 %v319, %v318
  %v325 = vpack.c.bf16 %v321, %v320
  %v330 = vunpack.c.l.b16 %v322
  %v331 = vunpack.c.h.b16 %v322
  %v332 = vunpack.c.l.b16 %v323
  %v333 = vunpack.c.h.b16 %v323
  %v334 = vunpack.c.l.b16 %v324
  %v335 = vunpack.c.h.b16 %v324
  %v336 = vunpack.c.l.b16 %v325
  %v337 = vunpack.c.h.b16 %v325
  %v338 = vpack.c.b16 %v330, %v330
  %v339 = vpack.c.b16 %v331, %v331
  %v340 = vpack.c.b16 %v332, %v332
  %v341 = vpack.c.b16 %v333, %v333
  %v342 = vpack.c.b16 %v334, %v334
  %v343 = vpack.c.b16 %v335, %v335
  %v344 = vpack.c.b16 %v336, %v336
  %v345 = vpack.c.b16 %v337, %v337
  %354 = vst [vmem:[%s5] sm:$0xf] %v338
  %355 = vst [vmem:[%s5 + $0x4] sm:$0xf] %v339
  %356 = vst [vmem:[%s5 + $0x8] sm:$0xf] %v340
  %357 = vst [vmem:[%s5 + $0xc] sm:$0xf] %v341
  %358 = vst [vmem:[%s5 + $0x10] sm:$0xf] %v342
  %359 = vst [vmem:[%s5 + $0x14] sm:$0xf] %v343
  %360 = vst [vmem:[%s5 + $0x18] sm:$0xf] %v344
  %361 = vst [vmem:[%s5 + $0x1c] sm:$0xf] %v345
  // Predicated region
  $region26: #{vit_forward.13} parent=0 // pred_check
    _
  $region27: #{vit_forward.13} parent=0 // pred_check_branch
    %363 = sbr.rel (0) target = $region29
  $region28: #{vit_forward.13} parent=0 // pred_region
    _
  $region29: #{vit_forward.13} parent=0 // pred_fallthru
    _
  // Predicated region
  $region30: #{vit_forward.13} parent=0 // pred_check
    _
  $region31: #{vit_forward.13} parent=0 // pred_check_branch
    %365 = sbr.rel (0) target = $region33
  $region32: #{vit_forward.13} parent=0 // pred_region
    _
  $region33: #{vit_forward.13} parent=0 // pred_fallthru
    _

// kernel: vit_forward.11
$region0: #{vit_forward.11}
  #allocation0 [shape = 'u32[]', space=smem, size = 0x4, offset = 0x4, fixed_abs, tag = 'smem constant byte address 0x4 - core index']
  #allocation1 [shape = 'u32[144,128]{1,0:T(1,128)}', space=vmem, size = 0x12000, scoped, tag = 'internal scratch']
  #allocation2 [shape = 'bf16[64,32]{1,0:T(16,128)(2,1)}', space=vmem, size = 0x4000, scoped, tag = 'scratch operand']
  %s0 = inlined_call_operand.vmem [shape: f32[64,32], index: 0, kind: input, shape index: {}]
  %s1 = inlined_call_operand.vmem [shape: f32[1,32], index: 1, kind: input, shape index: {}]
  %s2 = inlined_call_operand.vmem [shape: f32[1,32], index: 2, kind: input, shape index: {}]
  %s3 = inlined_call_operand.vmem [shape: bf16[32,96], index: 3, kind: input, shape index: {}]
  %s4 = inlined_call_operand.vmem [shape: f32[1,96], index: 4, kind: input, shape index: {}]
  %s5 = inlined_call_operand.vmem [shape: bf16[64,96], index: 5, kind: output, shape index: {}]
  %s6 = sld [smem:[#allocation0]]
  $region34: #{vit_forward.11} parent=0
    _
  %s8 = ssub.s32 1, %s6
  %s9 = scalar_select 0, %s8, %s6
  // Predicated region
  $region2: #{vit_forward.11} parent=0 // pred_check
    _
  $region3: #{vit_forward.11} parent=0 // pred_check_branch
    %11 = sbr.rel (0) target = $region5
  $region4: #{vit_forward.11} parent=0 // pred_region
    _
  $region5: #{vit_forward.11} parent=0 // pred_fallthru
    _
  // Predicated region
  $region6: #{vit_forward.11} parent=0 // pred_check
    _
  $region7: #{vit_forward.11} parent=0 // pred_check_branch
    %13 = sbr.rel (0) target = $region9
  $region8: #{vit_forward.11} parent=0 // pred_region
    _
  $region9: #{vit_forward.11} parent=0 // pred_fallthru
    _
  // Predicated region
  $region10: #{vit_forward.11} parent=0 // pred_check
    _
  $region11: #{vit_forward.11} parent=0 // pred_check_branch
    %15 = sbr.rel (0) target = $region13
  $region12: #{vit_forward.11} parent=0 // pred_region
    _
  $region13: #{vit_forward.11} parent=0 // pred_fallthru
    _
  // Predicated region
  $region14: #{vit_forward.11} parent=0 // pred_check
    _
  $region15: #{vit_forward.11} parent=0 // pred_check_branch
    %17 = sbr.rel (0) target = $region17
  $region16: #{vit_forward.11} parent=0 // pred_region
    _
  $region17: #{vit_forward.11} parent=0 // pred_fallthru
    _
  // Predicated region
  $region18: #{vit_forward.11} parent=0 // pred_check
    _
  $region19: #{vit_forward.11} parent=0 // pred_check_branch
    %19 = sbr.rel (0) target = $region21
  $region20: #{vit_forward.11} parent=0 // pred_region
    _
  $region21: #{vit_forward.11} parent=0 // pred_fallthru
    _
  %p21 = scmp.eq.s32.totalorder 0, 0
  // Predicated region
  $region22: #{vit_forward.11} parent=0 // pred_check
    %p22 = pneg %p21
  $region23: #{vit_forward.11} parent=0 // pred_check_branch
    %24 = sbr.rel (%p22) target = $region25
  $region24: #{vit_forward.11} parent=0 // pred_region
    %v25 = vld [vmem:[%s0] sm:$0xff]
    %v26 = vld [vmem:[%s0 + $0x8] sm:$0xff]
    %v27 = vld [vmem:[%s0 + $0x10] sm:$0xff]
    %v28 = vld [vmem:[%s0 + $0x18] sm:$0xff]
    %v29 = vld [vmem:[%s0 + $0x20] sm:$0xff]
    %v30 = vld [vmem:[%s0 + $0x28] sm:$0xff]
    %v31 = vld [vmem:[%s0 + $0x30] sm:$0xff]
    %v32 = vld [vmem:[%s0 + $0x38] sm:$0xff]
    %vm33 = vcmask 261120
    %v34 = vsel %vm33, %v25, 0.0
    %35 = vadd.xlane.f32.xlu0 %v34
    %v36 = vpop.xlane.xlu0 %35
    %v37 = vsel %vm33, %v26, 0.0
    %38 = vadd.xlane.f32.xlu0 %v37
    %v39 = vpop.xlane.xlu0 %38
    %v40 = vsel %vm33, %v27, 0.0
    %41 = vadd.xlane.f32.xlu0 %v40
    %v42 = vpop.xlane.xlu0 %41
    %v43 = vsel %vm33, %v28, 0.0
    %44 = vadd.xlane.f32.xlu0 %v43
    %v45 = vpop.xlane.xlu0 %44
    %v46 = vsel %vm33, %v29, 0.0
    %47 = vadd.xlane.f32.xlu0 %v46
    %v48 = vpop.xlane.xlu0 %47
    %v49 = vsel %vm33, %v30, 0.0
    %50 = vadd.xlane.f32.xlu0 %v49
    %v51 = vpop.xlane.xlu0 %50
    %v52 = vsel %vm33, %v31, 0.0
    %53 = vadd.xlane.f32.xlu0 %v52
    %v54 = vpop.xlane.xlu0 %53
    %v55 = vsel %vm33, %v32, 0.0
    %56 = vadd.xlane.f32.xlu0 %v55
    %v57 = vpop.xlane.xlu0 %56
    %v58 = vrcp.pop 32.0
    %v59 = vmul.f32 %v36, %v58
    %v60 = vmul.f32 %v39, %v58
    %v61 = vmul.f32 %v42, %v58
    %v62 = vmul.f32 %v45, %v58
    %v63 = vmul.f32 %v48, %v58
    %v64 = vmul.f32 %v51, %v58
    %v65 = vmul.f32 %v54, %v58
    %v66 = vmul.f32 %v57, %v58
    %v67 = vsub.f32 %v25, %v59
    %v68 = vsub.f32 %v26, %v60
    %v69 = vsub.f32 %v27, %v61
    %v70 = vsub.f32 %v28, %v62
    %v71 = vsub.f32 %v29, %v63
    %v72 = vsub.f32 %v30, %v64
    %v73 = vsub.f32 %v31, %v65
    %v74 = vsub.f32 %v32, %v66
    %v75 = vmul.f32 %v67, %v67
    %v76 = vmul.f32 %v68, %v68
    %v77 = vmul.f32 %v69, %v69
    %v78 = vmul.f32 %v70, %v70
    %v79 = vmul.f32 %v71, %v71
    %v80 = vmul.f32 %v72, %v72
    %v81 = vmul.f32 %v73, %v73
    %v82 = vmul.f32 %v74, %v74
    %v83 = vsel %vm33, %v75, 0.0
    %84 = vadd.xlane.f32.xlu0 %v83
    %v85 = vpop.xlane.xlu0 %84
    %v86 = vsel %vm33, %v76, 0.0
    %87 = vadd.xlane.f32.xlu0 %v86
    %v88 = vpop.xlane.xlu0 %87
    %v89 = vsel %vm33, %v77, 0.0
    %90 = vadd.xlane.f32.xlu0 %v89
    %v91 = vpop.xlane.xlu0 %90
    %v92 = vsel %vm33, %v78, 0.0
    %93 = vadd.xlane.f32.xlu0 %v92
    %v94 = vpop.xlane.xlu0 %93
    %v95 = vsel %vm33, %v79, 0.0
    %96 = vadd.xlane.f32.xlu0 %v95
    %v97 = vpop.xlane.xlu0 %96
    %v98 = vsel %vm33, %v80, 0.0
    %99 = vadd.xlane.f32.xlu0 %v98
    %v100 = vpop.xlane.xlu0 %99
    %v101 = vsel %vm33, %v81, 0.0
    %102 = vadd.xlane.f32.xlu0 %v101
    %v103 = vpop.xlane.xlu0 %102
    %v104 = vsel %vm33, %v82, 0.0
    %105 = vadd.xlane.f32.xlu0 %v104
    %v106 = vpop.xlane.xlu0 %105
    %v107 = vmul.f32 %v85, %v58
    %v108 = vmul.f32 %v88, %v58
    %v109 = vmul.f32 %v91, %v58
    %v110 = vmul.f32 %v94, %v58
    %v111 = vmul.f32 %v97, %v58
    %v112 = vmul.f32 %v100, %v58
    %v113 = vmul.f32 %v103, %v58
    %v114 = vmul.f32 %v106, %v58
    %v115 = vadd.f32 %v107, 1e-06
    %v116 = vadd.f32 %v108, 1e-06
    %v117 = vadd.f32 %v109, 1e-06
    %v118 = vadd.f32 %v110, 1e-06
    %v119 = vadd.f32 %v111, 1e-06
    %v120 = vadd.f32 %v112, 1e-06
    %v121 = vadd.f32 %v113, 1e-06
    %v122 = vadd.f32 %v114, 1e-06
    %v123 = vrsqrt.pop %v115
    %v124 = vrsqrt.pop %v116
    %v125 = vrsqrt.pop %v117
    %v126 = vrsqrt.pop %v118
    %v127 = vrsqrt.pop %v119
    %v128 = vrsqrt.pop %v120
    %v129 = vrsqrt.pop %v121
    %v130 = vrsqrt.pop %v122
    %v131 = vmul.f32 %v67, %v123
    %v132 = vmul.f32 %v68, %v124
    %v133 = vmul.f32 %v69, %v125
    %v134 = vmul.f32 %v70, %v126
    %v135 = vmul.f32 %v71, %v127
    %v136 = vmul.f32 %v72, %v128
    %v137 = vmul.f32 %v73, %v129
    %v138 = vmul.f32 %v74, %v130
    %v139 = vld [vmem:[%s1] sm:$0x1]
    %v141 = vlaneseq
    %v142 = vshrl.u32 %v141, 7
    %v143 = vsub.s32 0, %v142
    %v144 = vrot.slane %v139, %v143
    %v146 = vmul.f32 %v131, %v144
    %v147 = vmul.f32 %v132, %v144
    %v148 = vmul.f32 %v133, %v144
    %v149 = vmul.f32 %v134, %v144
    %v150 = vmul.f32 %v135, %v144
    %v151 = vmul.f32 %v136, %v144
    %v152 = vmul.f32 %v137, %v144
    %v153 = vmul.f32 %v138, %v144
    %v154 = vld [vmem:[%s2] sm:$0x1]
    %v156 = vlaneseq
    %v157 = vshrl.u32 %v156, 7
    %v158 = vsub.s32 0, %v157
    %v159 = vrot.slane %v154, %v158
    %v161 = vadd.f32 %v146, %v159
    %v162 = vadd.f32 %v147, %v159
    %v163 = vadd.f32 %v148, %v159
    %v164 = vadd.f32 %v149, %v159
    %v165 = vadd.f32 %v150, %v159
    %v166 = vadd.f32 %v151, %v159
    %v167 = vadd.f32 %v152, %v159
    %v168 = vadd.f32 %v153, %v159
    %v169 = vpack.c.bf16 %v162, %v161
    %v170 = vpack.c.bf16 %v164, %v163
    %v171 = vpack.c.bf16 %v166, %v165
    %v172 = vpack.c.bf16 %v168, %v167
    %173 = vst.msk [vmem:[#allocation2] sm:$0xff] %vm33, %v169
    %174 = vst.msk [vmem:[#allocation2 + $0x8] sm:$0xff] %vm33, %v170
    %175 = vst.msk [vmem:[#allocation2 + $0x10] sm:$0xff] %vm33, %v171
    %176 = vst.msk [vmem:[#allocation2 + $0x18] sm:$0xff] %vm33, %v172
  $region25: #{vit_forward.11} parent=0 // pred_fallthru
    _
  %v177 = vld [vmem:[#allocation2] sm:$0xff]
  %v178 = vld [vmem:[#allocation2 + $0x8] sm:$0xff]
  %v179 = vld [vmem:[#allocation2 + $0x10] sm:$0xff]
  %v180 = vld [vmem:[#allocation2 + $0x18] sm:$0xff]
  %v181 = vld [vmem:[%s3] sm:$0xf]
  %v182 = vld [vmem:[%s3 + $0x4] sm:$0xf]
  %v183 = vld [vmem:[%s3 + $0x8] sm:$0xf]
  %v184 = vld [vmem:[%s3 + $0xc] sm:$0xf]
  %v185 = vld [vmem:[%s4] sm:$0x1]
  %v187 = vlaneseq
  %v188 = vshrl.u32 %v187, 7
  %v189 = vsub.s32 0, %v188
  %v190 = vrot.slane %v185, %v189
  %v196 = vunpack.c.l.b16 %v181
  %v197 = vunpack.c.l.b16 %v182
  %v198 = vunpack.c.l.b16 %v183
  %v199 = vunpack.c.l.b16 %v184
  %v200 = vpack.c.b16 %v197, %v196
  %v201 = vpack.c.b16 %v199, %v198
  %vm204 = vcmask 261120
  %v206 = vsel %vm204, %v177, 0
  %v209 = vsel %vm204, %v178, 0
  %v212 = vsel %vm204, %v179, 0
  %v215 = vsel %vm204, %v180, 0
  %217 = vmatprep.subr.bf16.mxu0 0
  %218 = vmatpush1.bf16.msra.mxu0 %v200
  %219 = vmatprep.subr.bf16.mxu0 0
  %220 = vmatpush1.bf16.msra.mxu0 %v201
  %221 = vmatprep.subr.bf16.mxu0 0
  %222 = vmatpush1.bf16.msra.mxu0 0
  %223 = vmatprep.subr.bf16.mxu0 0
  %224 = vmatpush1.bf16.msra.mxu0 0
  %225 = vmatprep.subr.bf16.mxu0 0
  %226 = vmatpush1.bf16.msra.mxu0 0
  %227 = vmatprep.subr.bf16.mxu0 0
  %228 = vmatpush1.bf16.msra.mxu0 0
  %229 = vmatprep.subr.bf16.mxu0 0
  %230 = vmatpush1.bf16.msra.mxu0 0
  %231 = vmatprep.subr.bf16.mxu0 0
  %232 = vmatpush1.bf16.msra.mxu0 0
  %233 = vmatprep.subr.bf16.mxu0 0
  %234 = vmatpush1.bf16.msra.mxu0 0
  %235 = vmatprep.subr.bf16.mxu0 0
  %236 = vmatpush1.bf16.msra.mxu0 0
  %237 = vmatprep.subr.bf16.mxu0 0
  %238 = vmatpush1.bf16.msra.mxu0 0
  %239 = vmatprep.subr.bf16.mxu0 0
  %240 = vmatpush1.bf16.msra.mxu0 0
  %241 = vmatprep.subr.bf16.mxu0 0
  %242 = vmatpush1.bf16.msra.mxu0 0
  %243 = vmatprep.subr.bf16.mxu0 0
  %244 = vmatpush1.bf16.msra.mxu0 0
  %245 = vmatprep.subr.bf16.mxu0 0
  %246 = vmatpush1.bf16.msra.mxu0 0
  %247 = vmatprep.subr.bf16.mxu0 0
  %248 = vmatpush1.bf16.msra.mxu0 0
  %249 = vmatprep.mubr.bf16.mxu0 0
  %250 = vmatmul.mubr.bf16.gmra.mrb[0].mxu0 %v206
  %v251 = vpop.f32.mrb[0].mxu0
  %v252 = vadd.f32 %v190, %v251
  %v253 = vpop.f32.mrb[0].mxu0
  %v254 = vpop.f32.mrb[0].mxu0
  %v255 = vadd.f32 %v190, %v254
  %v256 = vpop.f32.mrb[0].mxu0
  %257 = vmatprep.mubr.bf16.mxu0 0
  %258 = vmatmul.mubr.bf16.gmra.mrb[0].mxu0 %v209
  %v259 = vpop.f32.mrb[0].mxu0
  %v260 = vadd.f32 %v190, %v259
  %v261 = vpop.f32.mrb[0].mxu0
  %v262 = vpop.f32.mrb[0].mxu0
  %v263 = vadd.f32 %v190, %v262
  %v264 = vpop.f32.mrb[0].mxu0
  %265 = vmatprep.mubr.bf16.mxu0 0
  %266 = vmatmul.mubr.bf16.gmra.mrb[0].mxu0 %v212
  %v267 = vpop.f32.mrb[0].mxu0
  %v268 = vadd.f32 %v190, %v267
  %v269 = vpop.f32.mrb[0].mxu0
  %v270 = vpop.f32.mrb[0].mxu0
  %v271 = vadd.f32 %v190, %v270
  %v272 = vpop.f32.mrb[0].mxu0
  %273 = vmatprep.mubr.bf16.mxu0 0
  %274 = vmatmul.mubr.bf16.gmra.mrb[0].mxu0 %v215
  %v275 = vpop.f32.mrb[0].mxu0
  %v276 = vadd.f32 %v190, %v275
  %v277 = vpop.f32.mrb[0].mxu0
  %v278 = vpop.f32.mrb[0].mxu0
  %v279 = vadd.f32 %v190, %v278
  %v280 = vpop.f32.mrb[0].mxu0
  %281 = vdwg.mxu0
  %v282 = vpack.c.bf16 %v255, %v252
  %v283 = vpack.c.bf16 %v263, %v260
  %v284 = vpack.c.bf16 %v271, %v268
  %v285 = vpack.c.bf16 %v279, %v276
  %v290 = vunpack.c.l.b16 %v282
  %v291 = vunpack.c.h.b16 %v282
  %v292 = vunpack.c.l.b16 %v283
  %v293 = vunpack.c.h.b16 %v283
  %v294 = vunpack.c.l.b16 %v284
  %v295 = vunpack.c.h.b16 %v284
  %v296 = vunpack.c.l.b16 %v285
  %v297 = vunpack.c.h.b16 %v285
  %v298 = vpack.c.b16 %v290, %v290
  %v299 = vpack.c.b16 %v291, %v291
  %v300 = vpack.c.b16 %v292, %v292
  %v301 = vpack.c.b16 %v293, %v293
  %v302 = vpack.c.b16 %v294, %v294
  %v303 = vpack.c.b16 %v295, %v295
  %v304 = vpack.c.b16 %v296, %v296
  %v305 = vpack.c.b16 %v297, %v297
  %vm314 = vcmask 781312
  %315 = vst.msk [vmem:[%s5] sm:$0xf] %vm314, %v298
  %316 = vst.msk [vmem:[%s5 + $0x4] sm:$0xf] %vm314, %v299
  %317 = vst.msk [vmem:[%s5 + $0x8] sm:$0xf] %vm314, %v300
  %318 = vst.msk [vmem:[%s5 + $0xc] sm:$0xf] %vm314, %v301
  %319 = vst.msk [vmem:[%s5 + $0x10] sm:$0xf] %vm314, %v302
  %320 = vst.msk [vmem:[%s5 + $0x14] sm:$0xf] %vm314, %v303
  %321 = vst.msk [vmem:[%s5 + $0x18] sm:$0xf] %vm314, %v304
  %322 = vst.msk [vmem:[%s5 + $0x1c] sm:$0xf] %vm314, %v305
  // Predicated region
  $region26: #{vit_forward.11} parent=0 // pred_check
    _
  $region27: #{vit_forward.11} parent=0 // pred_check_branch
    %324 = sbr.rel (0) target = $region29
  $region28: #{vit_forward.11} parent=0 // pred_region
    _
  $region29: #{vit_forward.11} parent=0 // pred_fallthru
    _
  // Predicated region
  $region30: #{vit_forward.11} parent=0 // pred_check
    _
  $region31: #{vit_forward.11} parent=0 // pred_check_branch
    %326 = sbr.rel (0) target = $region33
  $region32: #{vit_forward.11} parent=0 // pred_region
    _
  $region33: #{vit_forward.11} parent=0 // pred_fallthru
    _

// kernel: vit_forward.12
$region0: #{vit_forward.12}
  #allocation0 [shape = 'u32[]', space=smem, size = 0x4, offset = 0x4, fixed_abs, tag = 'smem constant byte address 0x4 - core index']
  #allocation1 [shape = 'u32[144,128]{1,0:T(1,128)}', space=vmem, size = 0x12000, scoped, tag = 'internal scratch']
  #allocation2 [shape = 'bf16[32,32]{1,0:T(16,128)(2,1)}', space=vmem, size = 0x2000, scoped, tag = 'scratch operand']
  %s0 = inlined_call_operand.vmem [shape: bf16[2,32,96], index: 0, kind: input, shape index: {}]
  %s1 = inlined_call_operand.vmem [shape: bf16[32,32], index: 1, kind: input, shape index: {}]
  %s2 = inlined_call_operand.vmem [shape: f32[1,32], index: 2, kind: input, shape index: {}]
  %s3 = inlined_call_operand.vmem [shape: f32[2,32,32], index: 3, kind: input, shape index: {}]
  %s4 = inlined_call_operand.vmem [shape: f32[2,32,32], index: 4, kind: output, shape index: {}]
  %s5 = sld [smem:[#allocation0]]
  $region49: #{vit_forward.12} parent=0
    _
  %s7 = ssub.s32 1, %s5
  %s8 = scalar_select 0, %s7, %s5
  loop: start=0, step=1, limit=4
  $region2: #{vit_forward.12} parent=0 // loop_pre_header
    _
  $region3: #{vit_forward.12} parent=0 // loop_header
    %s10 = sphi 0, %s14
    %p11 = scmp.ge.s32.totalorder %s10, 4
    %s20 = sphi 0, %s22
    %s23 = sphi 0, %s20
    %s24 = sphi 0, %s23
    %s40 = sphi 0, %s24
    %s44 = sphi 0, %s44
    %s46 = sphi 0, %s44
    %s47 = sphi 0, %s46
    %s61 = sphi 0, %s47
    %s65 = sphi 0, %s65
    %s67 = sphi 0, %s65
    %s68 = sphi 0, %s67
    %s82 = sphi 0, %s68
    %s88 = sphi 0, %s90
    %s91 = sphi 0, %s88
    %s92 = sphi 0, %s91
    %s108 = sphi 0, %s92
    %s114 = sphi 0, %s116
    %s117 = sphi 0, %s114
    %s118 = sphi 0, %s117
    %s134 = sphi 0, %s118
  $region4: #{vit_forward.12} parent=0 // loop_header_branch
    %13 = sbr.rel (%p11) target = $region8
  $region5: #{vit_forward.12} parent=0 // loop_body
    %s15 = ssub.s32 %s10, 1
    %s16 = ssub.s32 %s10, 2
    %s17 = sadd.s32 %s10, 1
    %s18 = ssub.s32 %s10, %s17
    %p19 = scmp.eq.s32.totalorder %s18, 0
    %s21 = sadd.s32 %s20, 1
    %s22 = scalar_select %p19, %s20, %s21
    %p25 = pneg %p19
    %p26 = scmp.eq.s32.totalorder %s10, 1
    %p27 = por %p25, %p26
    %p28 = scmp.ne.s32.totalorder %s20, %s23
    %p29 = scmp.eq.s32.totalorder %s10, 0
    %p30 = por %p28, %p29
    %p31 = scmp.ne.s32.totalorder %s20, %s23
    %p32 = scmp.eq.s32.totalorder %s15, 1
    %p33 = por %p31, %p32
    %p34 = scmp.ne.s32.totalorder %s23, %s24
    %p35 = scmp.eq.s32.totalorder %s15, 0
    %p36 = por %p34, %p35
    %p37 = scmp.ne.s32.totalorder %s23, %s24
    %p38 = scmp.eq.s32.totalorder %s16, 1
    %p39 = por %p37, %p38
    %p41 = scmp.ne.s32.totalorder %s24, %s40
    %p42 = scmp.eq.s32.totalorder %s16, 0
    %p43 = por %p41, %p42
    %s45 = sadd.s32 %s44, 1
    %p48 = scmp.eq.s32.totalorder %s10, 1
    %p49 = scmp.ne.s32.totalorder %s44, %s46
    %p50 = scmp.eq.s32.totalorder %s10, 0
    %p51 = por %p49, %p50
    %p52 = scmp.ne.s32.totalorder %s44, %s46
    %p53 = scmp.eq.s32.totalorder %s15, 1
    %p54 = por %p52, %p53
    %p55 = scmp.ne.s32.totalorder %s46, %s47
    %p56 = scmp.eq.s32.totalorder %s15, 0
    %p57 = por %p55, %p56
    %p58 = scmp.ne.s32.totalorder %s46, %s47
    %p59 = scmp.eq.s32.totalorder %s16, 1
    %p60 = por %p58, %p59
    %p62 = scmp.ne.s32.totalorder %s47, %s61
    %p63 = scmp.eq.s32.totalorder %s16, 0
    %p64 = por %p62, %p63
    %s66 = sadd.s32 %s65, 1
    %p69 = scmp.eq.s32.totalorder %s10, 1
    %p70 = scmp.ne.s32.totalorder %s65, %s67
    %p71 = scmp.eq.s32.totalorder %s10, 0
    %p72 = por %p70, %p71
    %p73 = scmp.ne.s32.totalorder %s65, %s67
    %p74 = scmp.eq.s32.totalorder %s15, 1
    %p75 = por %p73, %p74
    %p76 = scmp.ne.s32.totalorder %s67, %s68
    %p77 = scmp.eq.s32.totalorder %s15, 0
    %p78 = por %p76, %p77
    %p79 = scmp.ne.s32.totalorder %s67, %s68
    %p80 = scmp.eq.s32.totalorder %s16, 1
    %p81 = por %p79, %p80
    %p83 = scmp.ne.s32.totalorder %s68, %s82
    %p84 = scmp.eq.s32.totalorder %s16, 0
    %p85 = por %p83, %p84
    %s86 = ssub.s32 %s10, %s17
    %p87 = scmp.eq.s32.totalorder %s86, 0
    %s89 = sadd.s32 %s88, 1
    %s90 = scalar_select %p87, %s88, %s89
    %p93 = pneg %p87
    %p94 = scmp.eq.s32.totalorder %s10, 1
    %p95 = por %p93, %p94
    %p96 = scmp.ne.s32.totalorder %s88, %s91
    %p97 = scmp.eq.s32.totalorder %s10, 0
    %p98 = por %p96, %p97
    %p99 = scmp.ne.s32.totalorder %s88, %s91
    %p100 = scmp.eq.s32.totalorder %s15, 1
    %p101 = por %p99, %p100
    %p102 = scmp.ne.s32.totalorder %s91, %s92
    %p103 = scmp.eq.s32.totalorder %s15, 0
    %p104 = por %p102, %p103
    %p105 = scmp.ne.s32.totalorder %s91, %s92
    %p106 = scmp.eq.s32.totalorder %s16, 1
    %p107 = por %p105, %p106
    %p109 = scmp.ne.s32.totalorder %s92, %s108
    %p110 = scmp.eq.s32.totalorder %s16, 0
    %p111 = por %p109, %p110
    %s112 = ssub.s32 %s10, %s17
    %p113 = scmp.eq.s32.totalorder %s112, 0
    %s115 = sadd.s32 %s114, 1
    %s116 = scalar_select %p113, %s114, %s115
    %p119 = pneg %p113
    %p120 = scmp.eq.s32.totalorder %s10, 1
    %p121 = por %p119, %p120
    %p122 = scmp.ne.s32.totalorder %s114, %s117
    %p123 = scmp.eq.s32.totalorder %s10, 0
    %p124 = por %p122, %p123
    %p125 = scmp.ne.s32.totalorder %s114, %s117
    %p126 = scmp.eq.s32.totalorder %s15, 1
    %p127 = por %p125, %p126
    %p128 = scmp.ne.s32.totalorder %s117, %s118
    %p129 = scmp.eq.s32.totalorder %s15, 0
    %p130 = por %p128, %p129
    %p131 = scmp.ne.s32.totalorder %s117, %s118
    %p132 = scmp.eq.s32.totalorder %s16, 1
    %p133 = por %p131, %p132
    %p135 = scmp.ne.s32.totalorder %s118, %s134
    %p136 = scmp.eq.s32.totalorder %s16, 0
    %p137 = por %p135, %p136
    %p138 = scmp.le.s32.totalorder 1, %s10
    %p139 = scmp.lt.s32.totalorder %s10, 3
    %p140 = pnand %p138, %p139
    %p141 = pneg %p140
    // Predicated region
    $region9: #{vit_forward.12} parent=5 // pred_check
      _
    $region10: #{vit_forward.12} parent=5 // pred_check_branch
      %143 = sbr.rel (%p140) target = $region12
    $region11: #{vit_forward.12} parent=5 // pred_region
      %s144 = ssub.s32 %s10, 1
      // Predicated region
      $region13: #{vit_forward.12} parent=11 // pred_check
        %p145 = pneg %p57
      $region14: #{vit_forward.12} parent=11 // pred_check_branch
        %147 = sbr.rel (%p145) target = $region16
      $region15: #{vit_forward.12} parent=11 // pred_region
        _
      $region16: #{vit_forward.12} parent=11 // pred_fallthru
        _
      // Predicated region
      $region17: #{vit_forward.12} parent=11 // pred_check
        %p148 = pneg %p78
      $region18: #{vit_forward.12} parent=11 // pred_check_branch
        %150 = sbr.rel (%p148) target = $region20
      $region19: #{vit_forward.12} parent=11 // pred_region
        _
      $region20: #{vit_forward.12} parent=11 // pred_fallthru
        _
    $region12: #{vit_forward.12} parent=5 // pred_fallthru
      _
    %p151 = scmp.lt.s32.totalorder %s10, 2
    // Predicated region
    $region21: #{vit_forward.12} parent=5 // pred_check
      %p152 = pneg %p151
    $region22: #{vit_forward.12} parent=5 // pred_check_branch
      %154 = sbr.rel (%p152) target = $region24
    $region23: #{vit_forward.12} parent=5 // pred_region
      // Predicated region
      $region25: #{vit_forward.12} parent=23 // pred_check
        %p155 = pneg %p30
      $region26: #{vit_forward.12} parent=23 // pred_check_branch
        %157 = sbr.rel (%p155) target = $region28
      $region27: #{vit_forward.12} parent=23 // pred_region
        %p158 = scmp.lt.s32.totalorder %s10, 1
        %s159 = scalar_select %p158, %s10, 1
        %s160 = smul.addr %s159, 4
        %s161 = smul.addr %s160, 4
        %s162 = scalar_lea.vmem %s0, %s161
      $region28: #{vit_forward.12} parent=23 // pred_fallthru
        _
      // Predicated region
      $region29: #{vit_forward.12} parent=23 // pred_check
        %p163 = pneg %p98
      $region30: #{vit_forward.12} parent=23 // pred_check_branch
        %165 = sbr.rel (%p163) target = $region32
      $region31: #{vit_forward.12} parent=23 // pred_region
        %p166 = scmp.lt.s32.totalorder %s10, 1
        %s167 = scalar_select %p166, %s10, 1
        %s168 = smul.addr %s167, 4
        %s169 = smul.addr %s168, 8
        %s170 = scalar_lea.vmem %s3, %s169
      $region32: #{vit_forward.12} parent=23 // pred_fallthru
        _
    $region24: #{vit_forward.12} parent=5 // pred_fallthru
      _
    %p171 = scmp.le.s32.totalorder 1, %s10
    %p172 = scmp.lt.s32.totalorder %s10, 3
    %p173 = pnand %p171, %p172
    %p174 = pneg %p173
    // Predicated region
    $region33: #{vit_forward.12} parent=5 // pred_check
      _
    $region34: #{vit_forward.12} parent=5 // pred_check_branch
      %176 = sbr.rel (%p173) target = $region36
    $region35: #{vit_forward.12} parent=5 // pred_region
      %s177 = ssub.s32 %s10, 1
      %p178 = scmp.lt.s32.totalorder %s15, 1
      %s179 = scalar_select %p178, %s15, 1
      %s180 = smul.addr %s179, 4
      %s181 = smul.addr %s180, 4
      %s182 = scalar_lea.vmem %s0, %s181
      %p183 = pneg %p36
      %p184 = pneg %p33
      %p185 = pneg %p57
      %p186 = pneg %p54
      %p187 = pneg %p78
      %p188 = pneg %p75
      %p189 = scmp.lt.s32.totalorder %s15, 1
      %s190 = scalar_select %p189, %s15, 1
      %s191 = smul.addr %s190, 4
      %s192 = smul.addr %s191, 8
      %s193 = scalar_lea.vmem %s3, %s192
      %p194 = pneg %p104
      %p195 = pneg %p101
      %p196 = pneg %p130
      %p197 = pneg %p127
      %p198 = scmp.lt.s32.totalorder %s15, 1
      %s199 = scalar_select %p198, %s15, 1
      %s200 = smul.addr %s199, 4
      %s201 = smul.addr %s200, 8
      %s202 = scalar_lea.vmem %s4, %s201
      %p203 = scmp.lt.s32.totalorder %s15, 1
      %s204 = scalar_select %p203, %s15, 1
      %s205 = smul.addr %s204, 4
      %s206 = smul.addr %s205, 4
      %s207 = scalar_lea.vmem %s0, %s206
      %p208 = scmp.lt.s32.totalorder %s15, 1
      %s209 = scalar_select %p208, %s15, 1
      %s210 = smul.addr %s209, 4
      %s211 = smul.addr %s210, 8
      %s212 = scalar_lea.vmem %s3, %s211
      %p213 = scmp.lt.s32.totalorder %s15, 1
      %s214 = scalar_select %p213, %s15, 1
      %s215 = smul.addr %s214, 4
      %s216 = smul.addr %s215, 8
      %s217 = scalar_lea.vmem %s4, %s216
      %v219 = vlaneseq
      %v220 = vand.u32 %v219, 127
      %vm221 = vcmp.lt.s32.totalorder %v220, 17
      %v222 = vld [vmem:[%s207] sm:$0xf]
      %v223 = vld [vmem:[%s207 + $0x4] sm:$0xf]
      %v224 = vld [vmem:[%s207 + $0x8] sm:$0xf]
      %v225 = vld [vmem:[%s207 + $0xc] sm:$0xf]
      %v230 = vunpack.c.l.b16 %v222
      %v231 = vunpack.c.l.b16 %v223
      %v232 = vunpack.c.l.b16 %v224
      %v233 = vunpack.c.l.b16 %v225
      %v234 = vpack.c.b16 %v231, %v230
      %v235 = vpack.c.b16 %v233, %v232
      %236 = vrot.lane.b32.xlu0 %v234, 96
      %v237 = vpop.permute.xlu0 %236
      %238 = vrot.lane.b32.xlu0 %v235, 96
      %v239 = vpop.permute.xlu0 %238
      %vm240 = vcmask 64512
      %v242 = vsel %vm240, %v234, 0
      %v245 = vsel %vm240, %v235, 0
      %v248 = vsel %vm240, %v237, 0
      %v251 = vsel %vm240, %v239, 0
      %253 = vmatprep.subr.bf16.mxu0 0
      %254 = vmatpush1.bf16.xpose.msra.mxu0 %v248
      %255 = vmatprep.subr.bf16.mxu0 0
      %256 = vmatpush1.bf16.xpose.msra.mxu0 %v251
      %257 = vmatprep.subr.bf16.mxu0 0
      %258 = vmatpush1.bf16.xpose.msra.mxu0 0
      %259 = vmatprep.subr.bf16.mxu0 0
      %260 = vmatpush1.bf16.xpose.msra.mxu0 0
      %261 = vmatprep.subr.bf16.mxu0 0
      %262 = vmatpush1.bf16.xpose.msra.mxu0 0
      %263 = vmatprep.subr.bf16.mxu0 0
      %264 = vmatpush1.bf16.xpose.msra.mxu0 0
      %265 = vmatprep.subr.bf16.mxu0 0
      %266 = vmatpush1.bf16.xpose.msra.mxu0 0
      %267 = vmatprep.subr.bf16.mxu0 0
      %268 = vmatpush1.bf16.xpose.msra.mxu0 0
      %269 = vmatprep.subr.bf16.mxu0 0
      %270 = vmatpush1.bf16.xpose.msra.mxu0 0
      %271 = vmatprep.subr.bf16.mxu0 0
      %272 = vmatpush1.bf16.xpose.msra.mxu0 0
      %273 = vmatprep.subr.bf16.mxu0 0
      %274 = vmatpush1.bf16.xpose.msra.mxu0 0
      %275 = vmatprep.subr.bf16.mxu0 0
      %276 = vmatpush1.bf16.xpose.msra.mxu0 0
      %277 = vmatprep.subr.bf16.mxu0 0
      %278 = vmatpush1.bf16.xpose.msra.mxu0 0
      %279 = vmatprep.subr.bf16.mxu0 0
      %280 = vmatpush1.bf16.xpose.msra.mxu0 0
      %281 = vmatprep.subr.bf16.mxu0 0
      %282 = vmatpush1.bf16.xpose.msra.mxu0 0
      %283 = vmatprep.subr.bf16.mxu0 0
      %284 = vmatpush1.bf16.xpose.msra.mxu0 0
      %285 = vmatprep.mubr.bf16.mxu0 0
      %286 = vmatmul.mubr.bf16.gmra.mrb[0].mxu0 %v242
      %v287 = vpop.f32.mrb[0].mxu0
      %v288 = vadd.f32 0.0, %v287
      %v289 = vpop.f32.mrb[0].mxu0
      %v290 = vpop.f32.mrb[0].mxu0
      %v291 = vadd.f32 0.0, %v290
      %v292 = vpop.f32.mrb[0].mxu0
      %293 = vmatprep.mubr.bf16.mxu0 0
      %294 = vmatmul.mubr.bf16.gmra.mrb[0].mxu0 %v245
      %v295 = vpop.f32.mrb[0].mxu0
      %v296 = vadd.f32 0.0, %v295
      %v297 = vpop.f32.mrb[0].mxu0
      %v298 = vpop.f32.mrb[0].mxu0
      %v299 = vadd.f32 0.0, %v298
      %v300 = vpop.f32.mrb[0].mxu0
      %301 = vdwg.mxu0
      %v302 = vmul.f32 %v288, 0.35355338
      %v303 = vmul.f32 %v291, 0.35355338
      %v304 = vmul.f32 %v296, 0.35355338
      %v305 = vmul.f32 %v299, 0.35355338
      %v306 = vsel %vm221, %v302, -1e+30
      %v307 = vsel %vm221, %v303, -1e+30
      %v308 = vsel %vm221, %v304, -1e+30
      %v309 = vsel %vm221, %v305, -1e+30
      %vm310 = vcmask 261120
      %v311 = vsel %vm310, %v306, -inf
      %312 = vmax.xlane.f32.xlu0 %v311
      %v313 = vpop.xlane.xlu0 %312
      %v314 = vsel %vm310, %v307, -inf
      %315 = vmax.xlane.f32.xlu0 %v314
      %v316 = vpop.xlane.xlu0 %315
      %v317 = vsel %vm310, %v308, -inf
      %318 = vmax.xlane.f32.xlu0 %v317
      %v319 = vpop.xlane.xlu0 %318
      %v320 = vsel %vm310, %v309, -inf
      %321 = vmax.xlane.f32.xlu0 %v320
      %v322 = vpop.xlane.xlu0 %321
      %v323 = vsub.f32 %v306, %v313
      %v324 = vsub.f32 %v307, %v316
      %v325 = vsub.f32 %v308, %v319
      %v326 = vsub.f32 %v309, %v322
      %v327 = vmul.f32 %v323, 1.442695
      %v328 = vpow.pop %v327
      %v329 = vmul.f32 %v324, 1.442695
      %v330 = vpow.pop %v329
      %v331 = vmul.f32 %v325, 1.442695
      %v332 = vpow.pop %v331
      %v333 = vmul.f32 %v326, 1.442695
      %v334 = vpow.pop %v333
      %v335 = vsel %vm310, %v328, 0.0
      %336 = vadd.xlane.f32.xlu0 %v335
      %v337 = vpop.xlane.xlu0 %336
      %v338 = vsel %vm310, %v330, 0.0
      %339 = vadd.xlane.f32.xlu0 %v338
      %v340 = vpop.xlane.xlu0 %339
      %v341 = vsel %vm310, %v332, 0.0
      %342 = vadd.xlane.f32.xlu0 %v341
      %v343 = vpop.xlane.xlu0 %342
      %v344 = vsel %vm310, %v334, 0.0
      %345 = vadd.xlane.f32.xlu0 %v344
      %v346 = vpop.xlane.xlu0 %345
      %v347 = vrcp.pop %v337
      %v348 = vrcp.pop %v340
      %v349 = vrcp.pop %v343
      %v350 = vrcp.pop %v346
      %v351 = vmul.f32 %v328, %v347
      %v352 = vmul.f32 %v330, %v348
      %v353 = vmul.f32 %v332, %v349
      %v354 = vmul.f32 %v334, %v350
      %v355 = vpack.c.bf16 %v352, %v351
      %v356 = vpack.c.bf16 %v354, %v353
      %357 = vrot.lane.b32.xlu0 %v234, 64
      %v358 = vpop.permute.xlu0 %357
      %359 = vrot.lane.b32.xlu0 %v235, 64
      %v360 = vpop.permute.xlu0 %359
      %v364 = vsel %vm310, %v355, 0
      %v367 = vsel %vm310, %v356, 0
      %369 = vmatprep.subr.bf16.mxu0 0
      %370 = vmatpush1.bf16.msra.mxu0 %v358
      %371 = vmatprep.subr.bf16.mxu0 0
      %372 = vmatpush1.bf16.msra.mxu0 %v360
      %373 = vmatprep.subr.bf16.mxu0 0
      %374 = vmatpush1.bf16.msra.mxu0 0
      %375 = vmatprep.subr.bf16.mxu0 0
      %376 = vmatpush1.bf16.msra.mxu0 0
      %377 = vmatprep.subr.bf16.mxu0 0
      %378 = vmatpush1.bf16.msra.mxu0 0
      %379 = vmatprep.subr.bf16.mxu0 0
      %380 = vmatpush1.bf16.msra.mxu0 0
      %381 = vmatprep.subr.bf16.mxu0 0
      %382 = vmatpush1.bf16.msra.mxu0 0
      %383 = vmatprep.subr.bf16.mxu0 0
      %384 = vmatpush1.bf16.msra.mxu0 0
      %385 = vmatprep.subr.bf16.mxu0 0
      %386 = vmatpush1.bf16.msra.mxu0 0
      %387 = vmatprep.subr.bf16.mxu0 0
      %388 = vmatpush1.bf16.msra.mxu0 0
      %389 = vmatprep.subr.bf16.mxu0 0
      %390 = vmatpush1.bf16.msra.mxu0 0
      %391 = vmatprep.subr.bf16.mxu0 0
      %392 = vmatpush1.bf16.msra.mxu0 0
      %393 = vmatprep.subr.bf16.mxu0 0
      %394 = vmatpush1.bf16.msra.mxu0 0
      %395 = vmatprep.subr.bf16.mxu0 0
      %396 = vmatpush1.bf16.msra.mxu0 0
      %397 = vmatprep.subr.bf16.mxu0 0
      %398 = vmatpush1.bf16.msra.mxu0 0
      %399 = vmatprep.subr.bf16.mxu0 0
      %400 = vmatpush1.bf16.msra.mxu0 0
      %401 = vmatprep.mubr.bf16.mxu0 0
      %402 = vmatmul.mubr.bf16.gmra.mrb[0].mxu0 %v364
      %v403 = vpop.f32.mrb[0].mxu0
      %v404 = vadd.f32 0.0, %v403
      %v405 = vpop.f32.mrb[0].mxu0
      %v406 = vpop.f32.mrb[0].mxu0
      %v407 = vadd.f32 0.0, %v406
      %v408 = vpop.f32.mrb[0].mxu0
      %409 = vmatprep.mubr.bf16.mxu0 0
      %410 = vmatmul.mubr.bf16.gmra.mrb[0].mxu0 %v367
      %v411 = vpop.f32.mrb[0].mxu0
      %v412 = vadd.f32 0.0, %v411
      %v413 = vpop.f32.mrb[0].mxu0
      %v414 = vpop.f32.mrb[0].mxu0
      %v415 = vadd.f32 0.0, %v414
      %v416 = vpop.f32.mrb[0].mxu0
      %417 = vdwg.mxu0
      %v418 = vpack.c.bf16 %v407, %v404
      %v419 = vpack.c.bf16 %v415, %v412
      %420 = vst.msk [vmem:[#allocation2] sm:$0xff] %vm240, %v418
      %421 = vst.msk [vmem:[#allocation2 + $0x8] sm:$0xff] %vm240, %v419
      %v422 = vld [vmem:[%s207] sm:$0xf]
      %v423 = vld [vmem:[%s207 + $0x4] sm:$0xf]
      %v424 = vld [vmem:[%s207 + $0x8] sm:$0xf]
      %v425 = vld [vmem:[%s207 + $0xc] sm:$0xf]
      %v430 = vunpack.c.l.b16 %v422
      %v431 = vunpack.c.l.b16 %v423
      %v432 = vunpack.c.l.b16 %v424
      %v433 = vunpack.c.l.b16 %v425
      %v434 = vpack.c.b16 %v431, %v430
      %v435 = vpack.c.b16 %v433, %v432
      %436 = vrot.lane.b32.xlu0 %v434, 120
      %v437 = vpop.permute.xlu0 %436
      %438 = vrot.lane.b32.xlu0 %v435, 120
      %v439 = vpop.permute.xlu0 %438
      %440 = vrot.lane.b32.xlu0 %v434, 88
      %v441 = vpop.permute.xlu0 %440
      %442 = vrot.lane.b32.xlu0 %v435, 88
      %v443 = vpop.permute.xlu0 %442
      %v445 = vsel %vm240, %v437, 0
      %v448 = vsel %vm240, %v439, 0
      %v451 = vsel %vm240, %v441, 0
      %v454 = vsel %vm240, %v443, 0
      %456 = vmatprep.subr.bf16.mxu0 0
      %457 = vmatpush1.bf16.xpose.msra.mxu0 %v451
      %458 = vmatprep.subr.bf16.mxu0 0
      %459 = vmatpush1.bf16.xpose.msra.mxu0 %v454
      %460 = vmatprep.subr.bf16.mxu0 0
      %461 = vmatpush1.bf16.xpose.msra.mxu0 0
      %462 = vmatprep.subr.bf16.mxu0 0
      %463 = vmatpush1.bf16.xpose.msra.mxu0 0
      %464 = vmatprep.subr.bf16.mxu0 0
      %465 = vmatpush1.bf16.xpose.msra.mxu0 0
      %466 = vmatprep.subr.bf16.mxu0 0
      %467 = vmatpush1.bf16.xpose.msra.mxu0 0
      %468 = vmatprep.subr.bf16.mxu0 0
      %469 = vmatpush1.bf16.xpose.msra.mxu0 0
      %470 = vmatprep.subr.bf16.mxu0 0
      %471 = vmatpush1.bf16.xpose.msra.mxu0 0
      %472 = vmatprep.subr.bf16.mxu0 0
      %473 = vmatpush1.bf16.xpose.msra.mxu0 0
      %474 = vmatprep.subr.bf16.mxu0 0
      %475 = vmatpush1.bf16.xpose.msra.mxu0 0
      %476 = vmatprep.subr.bf16.mxu0 0
      %477 = vmatpush1.bf16.xpose.msra.mxu0 0
      %478 = vmatprep.subr.bf16.mxu0 0
      %479 = vmatpush1.bf16.xpose.msra.mxu0 0
      %480 = vmatprep.subr.bf16.mxu0 0
      %481 = vmatpush1.bf16.xpose.msra.mxu0 0
      %482 = vmatprep.subr.bf16.mxu0 0
      %483 = vmatpush1.bf16.xpose.msra.mxu0 0
      %484 = vmatprep.subr.bf16.mxu0 0
      %485 = vmatpush1.bf16.xpose.msra.mxu0 0
      %486 = vmatprep.subr.bf16.mxu0 0
      %487 = vmatpush1.bf16.xpose.msra.mxu0 0
      %488 = vmatprep.mubr.bf16.mxu0 0
      %489 = vmatmul.mubr.bf16.gmra.mrb[0].mxu0 %v445
      %v490 = vpop.f32.mrb[0].mxu0
      %v491 = vadd.f32 0.0, %v490
      %v492 = vpop.f32.mrb[0].mxu0
      %v493 = vpop.f32.mrb[0].mxu0
      %v494 = vadd.f32 0.0, %v493
      %v495 = vpop.f32.mrb[0].mxu0
      %496 = vmatprep.mubr.bf16.mxu0 0
      %497 = vmatmul.mubr.bf16.gmra.mrb[0].mxu0 %v448
      %v498 = vpop.f32.mrb[0].mxu0
      %v499 = vadd.f32 0.0, %v498
      %v500 = vpop.f32.mrb[0].mxu0
      %v501 = vpop.f32.mrb[0].mxu0
      %v502 = vadd.f32 0.0, %v501
      %v503 = vpop.f32.mrb[0].mxu0
      %504 = vdwg.mxu0
      %v505 = vmul.f32 %v491, 0.35355338
      %v506 = vmul.f32 %v494, 0.35355338
      %v507 = vmul.f32 %v499, 0.35355338
      %v508 = vmul.f32 %v502, 0.35355338
      %v509 = vsel %vm221, %v505, -1e+30
      %v510 = vsel %vm221, %v506, -1e+30
      %v511 = vsel %vm221, %v507, -1e+30
      %v512 = vsel %vm221, %v508, -1e+30
      %v513 = vsel %vm310, %v509, -inf
      %514 = vmax.xlane.f32.xlu0 %v513
      %v515 = vpop.xlane.xlu0 %514
      %v516 = vsel %vm310, %v510, -inf
      %517 = vmax.xlane.f32.xlu0 %v516
      %v518 = vpop.xlane.xlu0 %517
      %v519 = vsel %vm310, %v511, -inf
      %520 = vmax.xlane.f32.xlu0 %v519
      %v521 = vpop.xlane.xlu0 %520
      %v522 = vsel %vm310, %v512, -inf
      %523 = vmax.xlane.f32.xlu0 %v522
      %v524 = vpop.xlane.xlu0 %523
      %v525 = vsub.f32 %v509, %v515
      %v526 = vsub.f32 %v510, %v518
      %v527 = vsub.f32 %v511, %v521
      %v528 = vsub.f32 %v512, %v524
      %v529 = vmul.f32 %v525, 1.442695
      %v530 = vpow.pop %v529
      %v531 = vmul.f32 %v526, 1.442695
      %v532 = vpow.pop %v531
      %v533 = vmul.f32 %v527, 1.442695
      %v534 = vpow.pop %v533
      %v535 = vmul.f32 %v528, 1.442695
      %v536 = vpow.pop %v535
      %v537 = vsel %vm310, %v530, 0.0
      %538 = vadd.xlane.f32.xlu0 %v537
      %v539 = vpop.xlane.xlu0 %538
      %v540 = vsel %vm310, %v532, 0.0
      %541 = vadd.xlane.f32.xlu0 %v540
      %v542 = vpop.xlane.xlu0 %541
      %v543 = vsel %vm310, %v534, 0.0
      %544 = vadd.xlane.f32.xlu0 %v543
      %v545 = vpop.xlane.xlu0 %544
      %v546 = vsel %vm310, %v536, 0.0
      %547 = vadd.xlane.f32.xlu0 %v546
      %v548 = vpop.xlane.xlu0 %547
      %v549 = vrcp.pop %v539
      %v550 = vrcp.pop %v542
      %v551 = vrcp.pop %v545
      %v552 = vrcp.pop %v548
      %v553 = vmul.f32 %v530, %v549
      %v554 = vmul.f32 %v532, %v550
      %v555 = vmul.f32 %v534, %v551
      %v556 = vmul.f32 %v536, %v552
      %v557 = vpack.c.bf16 %v554, %v553
      %v558 = vpack.c.bf16 %v556, %v555
      %559 = vrot.lane.b32.xlu0 %v434, 56
      %v560 = vpop.permute.xlu0 %559
      %561 = vrot.lane.b32.xlu0 %v435, 56
      %v562 = vpop.permute.xlu0 %561
      %v566 = vsel %vm310, %v557, 0
      %v569 = vsel %vm310, %v558, 0
      %571 = vmatprep.subr.bf16.mxu0 0
      %572 = vmatpush1.bf16.msra.mxu0 %v560
      %573 = vmatprep.subr.bf16.mxu0 0
      %574 = vmatpush1.bf16.msra.mxu0 %v562
      %575 = vmatprep.subr.bf16.mxu0 0
      %576 = vmatpush1.bf16.msra.mxu0 0
      %577 = vmatprep.subr.bf16.mxu0 0
      %578 = vmatpush1.bf16.msra.mxu0 0
      %579 = vmatprep.subr.bf16.mxu0 0
      %580 = vmatpush1.bf16.msra.mxu0 0
      %581 = vmatprep.subr.bf16.mxu0 0
      %582 = vmatpush1.bf16.msra.mxu0 0
      %583 = vmatprep.subr.bf16.mxu0 0
      %584 = vmatpush1.bf16.msra.mxu0 0
      %585 = vmatprep.subr.bf16.mxu0 0
      %586 = vmatpush1.bf16.msra.mxu0 0
      %587 = vmatprep.subr.bf16.mxu0 0
      %588 = vmatpush1.bf16.msra.mxu0 0
      %589 = vmatprep.subr.bf16.mxu0 0
      %590 = vmatpush1.bf16.msra.mxu0 0
      %591 = vmatprep.subr.bf16.mxu0 0
      %592 = vmatpush1.bf16.msra.mxu0 0
      %593 = vmatprep.subr.bf16.mxu0 0
      %594 = vmatpush1.bf16.msra.mxu0 0
      %595 = vmatprep.subr.bf16.mxu0 0
      %596 = vmatpush1.bf16.msra.mxu0 0
      %597 = vmatprep.subr.bf16.mxu0 0
      %598 = vmatpush1.bf16.msra.mxu0 0
      %599 = vmatprep.subr.bf16.mxu0 0
      %600 = vmatpush1.bf16.msra.mxu0 0
      %601 = vmatprep.subr.bf16.mxu0 0
      %602 = vmatpush1.bf16.msra.mxu0 0
      %603 = vmatprep.mubr.bf16.mxu0 0
      %604 = vmatmul.mubr.bf16.gmra.mrb[0].mxu0 %v566
      %v605 = vpop.f32.mrb[0].mxu0
      %v606 = vadd.f32 0.0, %v605
      %v607 = vpop.f32.mrb[0].mxu0
      %v608 = vpop.f32.mrb[0].mxu0
      %v609 = vadd.f32 0.0, %v608
      %v610 = vpop.f32.mrb[0].mxu0
      %611 = vmatprep.mubr.bf16.mxu0 0
      %612 = vmatmul.mubr.bf16.gmra.mrb[0].mxu0 %v569
      %v613 = vpop.f32.mrb[0].mxu0
      %v614 = vadd.f32 0.0, %v613
      %v615 = vpop.f32.mrb[0].mxu0
      %v616 = vpop.f32.mrb[0].mxu0
      %v617 = vadd.f32 0.0, %v616
      %v618 = vpop.f32.mrb[0].mxu0
      %619 = vdwg.mxu0
      %v620 = vpack.c.bf16 %v609, %v606
      %v621 = vpack.c.bf16 %v617, %v614
      %624 = vrot.lane.b32.xlu0 %v620, 8
      %v625 = vpop.permute.xlu0 %624
      %626 = vrot.lane.b32.xlu0 %v621, 8
      %v627 = vpop.permute.xlu0 %626
      %vm630 = vcmask 130112
      %631 = vst.msk [vmem:[#allocation2] sm:$0xff] %vm630, %v625
      %632 = vst.msk [vmem:[#allocation2 + $0x8] sm:$0xff] %vm630, %v627
      %v633 = vld [vmem:[%s207] sm:$0xf]
      %v634 = vld [vmem:[%s207 + $0x4] sm:$0xf]
      %v635 = vld [vmem:[%s207 + $0x8] sm:$0xf]
      %v636 = vld [vmem:[%s207 + $0xc] sm:$0xf]
      %v641 = vunpack.c.l.b16 %v633
      %v642 = vunpack.c.l.b16 %v634
      %v643 = vunpack.c.l.b16 %v635
      %v644 = vunpack.c.l.b16 %v636
      %v645 = vpack.c.b16 %v642, %v641
      %v646 = vpack.c.b16 %v644, %v643
      %647 = vrot.lane.b32.xlu0 %v645, 112
      %v648 = vpop.permute.xlu0 %647
      %649 = vrot.lane.b32.xlu0 %v646, 112
      %v650 = vpop.permute.xlu0 %649
      %651 = vrot.lane.b32.xlu0 %v645, 80
      %v652 = vpop.permute.xlu0 %651
      %653 = vrot.lane.b32.xlu0 %v646, 80
      %v654 = vpop.permute.xlu0 %653
      %v656 = vsel %vm240, %v648, 0
      %v659 = vsel %vm240, %v650, 0
      %v662 = vsel %vm240, %v652, 0
      %v665 = vsel %vm240, %v654, 0
      %667 = vmatprep.subr.bf16.mxu0 0
      %668 = vmatpush1.bf16.xpose.msra.mxu0 %v662
      %669 = vmatprep.subr.bf16.mxu0 0
      %670 = vmatpush1.bf16.xpose.msra.mxu0 %v665
      %671 = vmatprep.subr.bf16.mxu0 0
      %672 = vmatpush1.bf16.xpose.msra.mxu0 0
      %673 = vmatprep.subr.bf16.mxu0 0
      %674 = vmatpush1.bf16.xpose.msra.mxu0 0
      %675 = vmatprep.subr.bf16.mxu0 0
      %676 = vmatpush1.bf16.xpose.msra.mxu0 0
      %677 = vmatprep.subr.bf16.mxu0 0
      %678 = vmatpush1.bf16.xpose.msra.mxu0 0
      %679 = vmatprep.subr.bf16.mxu0 0
      %680 = vmatpush1.bf16.xpose.msra.mxu0 0
      %681 = vmatprep.subr.bf16.mxu0 0
      %682 = vmatpush1.bf16.xpose.msra.mxu0 0
      %683 = vmatprep.subr.bf16.mxu0 0
      %684 = vmatpush1.bf16.xpose.msra.mxu0 0
      %685 = vmatprep.subr.bf16.mxu0 0
      %686 = vmatpush1.bf16.xpose.msra.mxu0 0
      %687 = vmatprep.subr.bf16.mxu0 0
      %688 = vmatpush1.bf16.xpose.msra.mxu0 0
      %689 = vmatprep.subr.bf16.mxu0 0
      %690 = vmatpush1.bf16.xpose.msra.mxu0 0
      %691 = vmatprep.subr.bf16.mxu0 0
      %692 = vmatpush1.bf16.xpose.msra.mxu0 0
      %693 = vmatprep.subr.bf16.mxu0 0
      %694 = vmatpush1.bf16.xpose.msra.mxu0 0
      %695 = vmatprep.subr.bf16.mxu0 0
      %696 = vmatpush1.bf16.xpose.msra.mxu0 0
      %697 = vmatprep.subr.bf16.mxu0 0
      %698 = vmatpush1.bf16.xpose.msra.mxu0 0
      %699 = vmatprep.mubr.bf16.mxu0 0
      %700 = vmatmul.mubr.bf16.gmra.mrb[0].mxu0 %v656
      %v701 = vpop.f32.mrb[0].mxu0
      %v702 = vadd.f32 0.0, %v701
      %v703 = vpop.f32.mrb[0].mxu0
      %v704 = vpop.f32.mrb[0].mxu0
      %v705 = vadd.f32 0.0, %v704
      %v706 = vpop.f32.mrb[0].mxu0
      %707 = vmatprep.mubr.bf16.mxu0 0
      %708 = vmatmul.mubr.bf16.gmra.mrb[0].mxu0 %v659
      %v709 = vpop.f32.mrb[0].mxu0
      %v710 = vadd.f32 0.0, %v709
      %v711 = vpop.f32.mrb[0].mxu0
      %v712 = vpop.f32.mrb[0].mxu0
      %v713 = vadd.f32 0.0, %v712
      %v714 = vpop.f32.mrb[0].mxu0
      %715 = vdwg.mxu0
      %v716 = vmul.f32 %v702, 0.35355338
      %v717 = vmul.f32 %v705, 0.35355338
      %v718 = vmul.f32 %v710, 0.35355338
      %v719 = vmul.f32 %v713, 0.35355338
      %v720 = vsel %vm221, %v716, -1e+30
      %v721 = vsel %vm221, %v717, -1e+30
      %v722 = vsel %vm221, %v718, -1e+30
      %v723 = vsel %vm221, %v719, -1e+30
      %v724 = vsel %vm310, %v720, -inf
      %725 = vmax.xlane.f32.xlu0 %v724
      %v726 = vpop.xlane.xlu0 %725
      %v727 = vsel %vm310, %v721, -inf
      %728 = vmax.xlane.f32.xlu0 %v727
      %v729 = vpop.xlane.xlu0 %728
      %v730 = vsel %vm310, %v722, -inf
      %731 = vmax.xlane.f32.xlu0 %v730
      %v732 = vpop.xlane.xlu0 %731
      %v733 = vsel %vm310, %v723, -inf
      %734 = vmax.xlane.f32.xlu0 %v733
      %v735 = vpop.xlane.xlu0 %734
      %v736 = vsub.f32 %v720, %v726
      %v737 = vsub.f32 %v721, %v729
      %v738 = vsub.f32 %v722, %v732
      %v739 = vsub.f32 %v723, %v735
      %v740 = vmul.f32 %v736, 1.442695
      %v741 = vpow.pop %v740
      %v742 = vmul.f32 %v737, 1.442695
      %v743 = vpow.pop %v742
      %v744 = vmul.f32 %v738, 1.442695
      %v745 = vpow.pop %v744
      %v746 = vmul.f32 %v739, 1.442695
      %v747 = vpow.pop %v746
      %v748 = vsel %vm310, %v741, 0.0
      %749 = vadd.xlane.f32.xlu0 %v748
      %v750 = vpop.xlane.xlu0 %749
      %v751 = vsel %vm310, %v743, 0.0
      %752 = vadd.xlane.f32.xlu0 %v751
      %v753 = vpop.xlane.xlu0 %752
      %v754 = vsel %vm310, %v745, 0.0
      %755 = vadd.xlane.f32.xlu0 %v754
      %v756 = vpop.xlane.xlu0 %755
      %v757 = vsel %vm310, %v747, 0.0
      %758 = vadd.xlane.f32.xlu0 %v757
      %v759 = vpop.xlane.xlu0 %758
      %v760 = vrcp.pop %v750
      %v761 = vrcp.pop %v753
      %v762 = vrcp.pop %v756
      %v763 = vrcp.pop %v759
      %v764 = vmul.f32 %v741, %v760
      %v765 = vmul.f32 %v743, %v761
      %v766 = vmul.f32 %v745, %v762
      %v767 = vmul.f32 %v747, %v763
      %v768 = vpack.c.bf16 %v765, %v764
      %v769 = vpack.c.bf16 %v767, %v766
      %770 = vrot.lane.b32.xlu0 %v645, 48
      %v771 = vpop.permute.xlu0 %770
      %772 = vrot.lane.b32.xlu0 %v646, 48
      %v773 = vpop.permute.xlu0 %772
      %v777 = vsel %vm310, %v768, 0
      %v780 = vsel %vm310, %v769, 0
      %782 = vmatprep.subr.bf16.mxu0 0
      %783 = vmatpush1.bf16.msra.mxu0 %v771
      %784 = vmatprep.subr.bf16.mxu0 0
      %785 = vmatpush1.bf16.msra.mxu0 %v773
      %786 = vmatprep.subr.bf16.mxu0 0
      %787 = vmatpush1.bf16.msra.mxu0 0
      %788 = vmatprep.subr.bf16.mxu0 0
      %789 = vmatpush1.bf16.msra.mxu0 0
      %790 = vmatprep.subr.bf16.mxu0 0
      %791 = vmatpush1.bf16.msra.mxu0 0
      %792 = vmatprep.subr.bf16.mxu0 0
      %793 = vmatpush1.bf16.msra.mxu0 0
      %794 = vmatprep.subr.bf16.mxu0 0
      %795 = vmatpush1.bf16.msra.mxu0 0
      %796 = vmatprep.subr.bf16.mxu0 0
      %797 = vmatpush1.bf16.msra.mxu0 0
      %798 = vmatprep.subr.bf16.mxu0 0
      %799 = vmatpush1.bf16.msra.mxu0 0
      %800 = vmatprep.subr.bf16.mxu0 0
      %801 = vmatpush1.bf16.msra.mxu0 0
      %802 = vmatprep.subr.bf16.mxu0 0
      %803 = vmatpush1.bf16.msra.mxu0 0
      %804 = vmatprep.subr.bf16.mxu0 0
      %805 = vmatpush1.bf16.msra.mxu0 0
      %806 = vmatprep.subr.bf16.mxu0 0
      %807 = vmatpush1.bf16.msra.mxu0 0
      %808 = vmatprep.subr.bf16.mxu0 0
      %809 = vmatpush1.bf16.msra.mxu0 0
      %810 = vmatprep.subr.bf16.mxu0 0
      %811 = vmatpush1.bf16.msra.mxu0 0
      %812 = vmatprep.subr.bf16.mxu0 0
      %813 = vmatpush1.bf16.msra.mxu0 0
      %814 = vmatprep.mubr.bf16.mxu0 0
      %815 = vmatmul.mubr.bf16.gmra.mrb[0].mxu0 %v777
      %v816 = vpop.f32.mrb[0].mxu0
      %v817 = vadd.f32 0.0, %v816
      %v818 = vpop.f32.mrb[0].mxu0
      %v819 = vpop.f32.mrb[0].mxu0
      %v820 = vadd.f32 0.0, %v819
      %v821 = vpop.f32.mrb[0].mxu0
      %822 = vmatprep.mubr.bf16.mxu0 0
      %823 = vmatmul.mubr.bf16.gmra.mrb[0].mxu0 %v780
      %v824 = vpop.f32.mrb[0].mxu0
      %v825 = vadd.f32 0.0, %v824
      %v826 = vpop.f32.mrb[0].mxu0
      %v827 = vpop.f32.mrb[0].mxu0
      %v828 = vadd.f32 0.0, %v827
      %v829 = vpop.f32.mrb[0].mxu0
      %830 = vdwg.mxu0
      %v831 = vpack.c.bf16 %v820, %v817
      %v832 = vpack.c.bf16 %v828, %v825
      %835 = vrot.lane.b32.xlu0 %v831, 16
      %v836 = vpop.permute.xlu0 %835
      %837 = vrot.lane.b32.xlu0 %v832, 16
      %v838 = vpop.permute.xlu0 %837
      %vm841 = vcmask 195712
      %842 = vst.msk [vmem:[#allocation2] sm:$0xff] %vm841, %v836
      %843 = vst.msk [vmem:[#allocation2 + $0x8] sm:$0xff] %vm841, %v838
      %v844 = vld [vmem:[%s207] sm:$0xf]
      %v845 = vld [vmem:[%s207 + $0x4] sm:$0xf]
      %v846 = vld [vmem:[%s207 + $0x8] sm:$0xf]
      %v847 = vld [vmem:[%s207 + $0xc] sm:$0xf]
      %v852 = vunpack.c.l.b16 %v844
      %v853 = vunpack.c.l.b16 %v845
      %v854 = vunpack.c.l.b16 %v846
      %v855 = vunpack.c.l.b16 %v847
      %v856 = vpack.c.b16 %v853, %v852
      %v857 = vpack.c.b16 %v855, %v854
      %858 = vrot.lane.b32.xlu0 %v856, 104
      %v859 = vpop.permute.xlu0 %858
      %860 = vrot.lane.b32.xlu0 %v857, 104
      %v861 = vpop.permute.xlu0 %860
      %862 = vrot.lane.b32.xlu0 %v856, 72
      %v863 = vpop.permute.xlu0 %862
      %864 = vrot.lane.b32.xlu0 %v857, 72
      %v865 = vpop.permute.xlu0 %864
      %v867 = vsel %vm240, %v859, 0
      %v870 = vsel %vm240, %v861, 0
      %v873 = vsel %vm240, %v863, 0
      %v876 = vsel %vm240, %v865, 0
      %878 = vmatprep.subr.bf16.mxu0 0
      %879 = vmatpush1.bf16.xpose.msra.mxu0 %v873
      %880 = vmatprep.subr.bf16.mxu0 0
      %881 = vmatpush1.bf16.xpose.msra.mxu0 %v876
      %882 = vmatprep.subr.bf16.mxu0 0
      %883 = vmatpush1.bf16.xpose.msra.mxu0 0
      %884 = vmatprep.subr.bf16.mxu0 0
      %885 = vmatpush1.bf16.xpose.msra.mxu0 0
      %886 = vmatprep.subr.bf16.mxu0 0
      %887 = vmatpush1.bf16.xpose.msra.mxu0 0
      %888 = vmatprep.subr.bf16.mxu0 0
      %889 = vmatpush1.bf16.xpose.msra.mxu0 0
      %890 = vmatprep.subr.bf16.mxu0 0
      %891 = vmatpush1.bf16.xpose.msra.mxu0 0
      %892 = vmatprep.subr.bf16.mxu0 0
      %893 = vmatpush1.bf16.xpose.msra.mxu0 0
      %894 = vmatprep.subr.bf16.mxu0 0
      %895 = vmatpush1.bf16.xpose.msra.mxu0 0
      %896 = vmatprep.subr.bf16.mxu0 0
      %897 = vmatpush1.bf16.xpose.msra.mxu0 0
      %898 = vmatprep.subr.bf16.mxu0 0
      %899 = vmatpush1.bf16.xpose.msra.mxu0 0
      %900 = vmatprep.subr.bf16.mxu0 0
      %901 = vmatpush1.bf16.xpose.msra.mxu0 0
      %902 = vmatprep.subr.bf16.mxu0 0
      %903 = vmatpush1.bf16.xpose.msra.mxu0 0
      %904 = vmatprep.subr.bf16.mxu0 0
      %905 = vmatpush1.bf16.xpose.msra.mxu0 0
      %906 = vmatprep.subr.bf16.mxu0 0
      %907 = vmatpush1.bf16.xpose.msra.mxu0 0
      %908 = vmatprep.subr.bf16.mxu0 0
      %909 = vmatpush1.bf16.xpose.msra.mxu0 0
      %910 = vmatprep.mubr.bf16.mxu0 0
      %911 = vmatmul.mubr.bf16.gmra.mrb[0].mxu0 %v867
      %v912 = vpop.f32.mrb[0].mxu0
      %v913 = vadd.f32 0.0, %v912
      %v914 = vpop.f32.mrb[0].mxu0
      %v915 = vpop.f32.mrb[0].mxu0
      %v916 = vadd.f32 0.0, %v915
      %v917 = vpop.f32.mrb[0].mxu0
      %918 = vmatprep.mubr.bf16.mxu0 0
      %919 = vmatmul.mubr.bf16.gmra.mrb[0].mxu0 %v870
      %v920 = vpop.f32.mrb[0].mxu0
      %v921 = vadd.f32 0.0, %v920
      %v922 = vpop.f32.mrb[0].mxu0
      %v923 = vpop.f32.mrb[0].mxu0
      %v924 = vadd.f32 0.0, %v923
      %v925 = vpop.f32.mrb[0].mxu0
      %926 = vdwg.mxu0
      %v927 = vmul.f32 %v913, 0.35355338
      %v928 = vmul.f32 %v916, 0.35355338
      %v929 = vmul.f32 %v921, 0.35355338
      %v930 = vmul.f32 %v924, 0.35355338
      %v931 = vsel %vm221, %v927, -1e+30
      %v932 = vsel %vm221, %v928, -1e+30
      %v933 = vsel %vm221, %v929, -1e+30
      %v934 = vsel %vm221, %v930, -1e+30
      %v935 = vsel %vm310, %v931, -inf
      %936 = vmax.xlane.f32.xlu0 %v935
      %v937 = vpop.xlane.xlu0 %936
      %v938 = vsel %vm310, %v932, -inf
      %939 = vmax.xlane.f32.xlu0 %v938
      %v940 = vpop.xlane.xlu0 %939
      %v941 = vsel %vm310, %v933, -inf
      %942 = vmax.xlane.f32.xlu0 %v941
      %v943 = vpop.xlane.xlu0 %942
      %v944 = vsel %vm310, %v934, -inf
      %945 = vmax.xlane.f32.xlu0 %v944
      %v946 = vpop.xlane.xlu0 %945
      %v947 = vsub.f32 %v931, %v937
      %v948 = vsub.f32 %v932, %v940
      %v949 = vsub.f32 %v933, %v943
      %v950 = vsub.f32 %v934, %v946
      %v951 = vmul.f32 %v947, 1.442695
      %v952 = vpow.pop %v951
      %v953 = vmul.f32 %v948, 1.442695
      %v954 = vpow.pop %v953
      %v955 = vmul.f32 %v949, 1.442695
      %v956 = vpow.pop %v955
      %v957 = vmul.f32 %v950, 1.442695
      %v958 = vpow.pop %v957
      %v959 = vsel %vm310, %v952, 0.0
      %960 = vadd.xlane.f32.xlu0 %v959
      %v961 = vpop.xlane.xlu0 %960
      %v962 = vsel %vm310, %v954, 0.0
      %963 = vadd.xlane.f32.xlu0 %v962
      %v964 = vpop.xlane.xlu0 %963
      %v965 = vsel %vm310, %v956, 0.0
      %966 = vadd.xlane.f32.xlu0 %v965
      %v967 = vpop.xlane.xlu0 %966
      %v968 = vsel %vm310, %v958, 0.0
      %969 = vadd.xlane.f32.xlu0 %v968
      %v970 = vpop.xlane.xlu0 %969
      %v971 = vrcp.pop %v961
      %v972 = vrcp.pop %v964
      %v973 = vrcp.pop %v967
      %v974 = vrcp.pop %v970
      %v975 = vmul.f32 %v952, %v971
      %v976 = vmul.f32 %v954, %v972
      %v977 = vmul.f32 %v956, %v973
      %v978 = vmul.f32 %v958, %v974
      %v979 = vpack.c.bf16 %v976, %v975
      %v980 = vpack.c.bf16 %v978, %v977
      %981 = vrot.lane.b32.xlu0 %v856, 40
      %v982 = vpop.permute.xlu0 %981
      %983 = vrot.lane.b32.xlu0 %v857, 40
      %v984 = vpop.permute.xlu0 %983
      %v988 = vsel %vm310, %v979, 0
      %v991 = vsel %vm310, %v980, 0
      %993 = vmatprep.subr.bf16.mxu0 0
      %994 = vmatpush1.bf16.msra.mxu0 %v982
      %995 = vmatprep.subr.bf16.mxu0 0
      %996 = vmatpush1.bf16.msra.mxu0 %v984
      %997 = vmatprep.subr.bf16.mxu0 0
      %998 = vmatpush1.bf16.msra.mxu0 0
      %999 = vmatprep.subr.bf16.mxu0 0
      %1000 = vmatpush1.bf16.msra.mxu0 0
      %1001 = vmatprep.subr.bf16.mxu0 0
      %1002 = vmatpush1.bf16.msra.mxu0 0
      %1003 = vmatprep.subr.bf16.mxu0 0
      %1004 = vmatpush1.bf16.msra.mxu0 0
      %1005 = vmatprep.subr.bf16.mxu0 0
      %1006 = vmatpush1.bf16.msra.mxu0 0
      %1007 = vmatprep.subr.bf16.mxu0 0
      %1008 = vmatpush1.bf16.msra.mxu0 0
      %1009 = vmatprep.subr.bf16.mxu0 0
      %1010 = vmatpush1.bf16.msra.mxu0 0
      %1011 = vmatprep.subr.bf16.mxu0 0
      %1012 = vmatpush1.bf16.msra.mxu0 0
      %1013 = vmatprep.subr.bf16.mxu0 0
      %1014 = vmatpush1.bf16.msra.mxu0 0
      %1015 = vmatprep.subr.bf16.mxu0 0
      %1016 = vmatpush1.bf16.msra.mxu0 0
      %1017 = vmatprep.subr.bf16.mxu0 0
      %1018 = vmatpush1.bf16.msra.mxu0 0
      %1019 = vmatprep.subr.bf16.mxu0 0
      %1020 = vmatpush1.bf16.msra.mxu0 0
      %1021 = vmatprep.subr.bf16.mxu0 0
      %1022 = vmatpush1.bf16.msra.mxu0 0
      %1023 = vmatprep.subr.bf16.mxu0 0
      %1024 = vmatpush1.bf16.msra.mxu0 0
      %1025 = vmatprep.mubr.bf16.mxu0 0
      %1026 = vmatmul.mubr.bf16.gmra.mrb[0].mxu0 %v988
      %v1027 = vpop.f32.mrb[0].mxu0
      %v1028 = vadd.f32 0.0, %v1027
      %v1029 = vpop.f32.mrb[0].mxu0
      %v1030 = vpop.f32.mrb[0].mxu0
      %v1031 = vadd.f32 0.0, %v1030
      %v1032 = vpop.f32.mrb[0].mxu0
      %1033 = vmatprep.mubr.bf16.mxu0 0
      %1034 = vmatmul.mubr.bf16.gmra.mrb[0].mxu0 %v991
      %v1035 = vpop.f32.mrb[0].mxu0
      %v1036 = vadd.f32 0.0, %v1035
      %v1037 = vpop.f32.mrb[0].mxu0
      %v1038 = vpop.f32.mrb[0].mxu0
      %v1039 = vadd.f32 0.0, %v1038
      %v1040 = vpop.f32.mrb[0].mxu0
      %1041 = vdwg.mxu0
      %v1042 = vpack.c.bf16 %v1031, %v1028
      %v1043 = vpack.c.bf16 %v1039, %v1036
      %1046 = vrot.lane.b32.xlu0 %v1042, 24
      %v1047 = vpop.permute.xlu0 %1046
      %1048 = vrot.lane.b32.xlu0 %v1043, 24
      %v1049 = vpop.permute.xlu0 %1048
      %vm1052 = vcmask 261312
      %1053 = vst.msk [vmem:[#allocation2] sm:$0xff] %vm1052, %v1047
      %1054 = vst.msk [vmem:[#allocation2 + $0x8] sm:$0xff] %vm1052, %v1049
      %v1055 = vld [vmem:[#allocation2] sm:$0xff]
      %v1056 = vld [vmem:[#allocation2 + $0x8] sm:$0xff]
      %v1057 = vld [vmem:[%s1] sm:$0xf]
      %v1058 = vld [vmem:[%s1 + $0x4] sm:$0xf]
      %v1059 = vld [vmem:[%s1 + $0x8] sm:$0xf]
      %v1060 = vld [vmem:[%s1 + $0xc] sm:$0xf]
      %v1061 = vld [vmem:[%s2] sm:$0x1]
      %v1063 = vlaneseq
      %v1064 = vshrl.u32 %v1063, 7
      %v1065 = vsub.s32 0, %v1064
      %v1066 = vrot.slane %v1061, %v1065
      %v1072 = vunpack.c.l.b16 %v1057
      %v1073 = vunpack.c.l.b16 %v1058
      %v1074 = vunpack.c.l.b16 %v1059
      %v1075 = vunpack.c.l.b16 %v1060
      %v1076 = vpack.c.b16 %v1073, %v1072
      %v1077 = vpack.c.b16 %v1075, %v1074
      %v1081 = vsel %vm310, %v1055, 0
      %v1084 = vsel %vm310, %v1056, 0
      %1086 = vmatprep.subr.bf16.mxu0 0
      %1087 = vmatpush1.bf16.msra.mxu0 %v1076
      %1088 = vmatprep.subr.bf16.mxu0 0
      %1089 = vmatpush1.bf16.msra.mxu0 %v1077
      %1090 = vmatprep.subr.bf16.mxu0 0
      %1091 = vmatpush1.bf16.msra.mxu0 0
      %1092 = vmatprep.subr.bf16.mxu0 0
      %1093 = vmatpush1.bf16.msra.mxu0 0
      %1094 = vmatprep.subr.bf16.mxu0 0
      %1095 = vmatpush1.bf16.msra.mxu0 0
      %1096 = vmatprep.subr.bf16.mxu0 0
      %1097 = vmatpush1.bf16.msra.mxu0 0
      %1098 = vmatprep.subr.bf16.mxu0 0
      %1099 = vmatpush1.bf16.msra.mxu0 0
      %1100 = vmatprep.subr.bf16.mxu0 0
      %1101 = vmatpush1.bf16.msra.mxu0 0
      %1102 = vmatprep.subr.bf16.mxu0 0
      %1103 = vmatpush1.bf16.msra.mxu0 0
      %1104 = vmatprep.subr.bf16.mxu0 0
      %1105 = vmatpush1.bf16.msra.mxu0 0
      %1106 = vmatprep.subr.bf16.mxu0 0
      %1107 = vmatpush1.bf16.msra.mxu0 0
      %1108 = vmatprep.subr.bf16.mxu0 0
      %1109 = vmatpush1.bf16.msra.mxu0 0
      %1110 = vmatprep.subr.bf16.mxu0 0
      %1111 = vmatpush1.bf16.msra.mxu0 0
      %1112 = vmatprep.subr.bf16.mxu0 0
      %1113 = vmatpush1.bf16.msra.mxu0 0
      %1114 = vmatprep.subr.bf16.mxu0 0
      %1115 = vmatpush1.bf16.msra.mxu0 0
      %1116 = vmatprep.subr.bf16.mxu0 0
      %1117 = vmatpush1.bf16.msra.mxu0 0
      %1118 = vmatprep.mubr.bf16.mxu0 0
      %1119 = vmatmul.mubr.bf16.gmra.mrb[0].mxu0 %v1081
      %v1120 = vpop.f32.mrb[0].mxu0
      %v1121 = vadd.f32 %v1066, %v1120
      %v1122 = vpop.f32.mrb[0].mxu0
      %v1123 = vpop.f32.mrb[0].mxu0
      %v1124 = vadd.f32 %v1066, %v1123
      %v1125 = vpop.f32.mrb[0].mxu0
      %1126 = vmatprep.mubr.bf16.mxu0 0
      %1127 = vmatmul.mubr.bf16.gmra.mrb[0].mxu0 %v1084
      %v1128 = vpop.f32.mrb[0].mxu0
      %v1129 = vadd.f32 %v1066, %v1128
      %v1130 = vpop.f32.mrb[0].mxu0
      %v1131 = vpop.f32.mrb[0].mxu0
      %v1132 = vadd.f32 %v1066, %v1131
      %v1133 = vpop.f32.mrb[0].mxu0
      %1134 = vdwg.mxu0
      %v1135 = vld [vmem:[%s212] sm:$0xff]
      %v1136 = vld [vmem:[%s212 + $0x8] sm:$0xff]
      %v1137 = vld [vmem:[%s212 + $0x10] sm:$0xff]
      %v1138 = vld [vmem:[%s212 + $0x18] sm:$0xff]
      %v1139 = vadd.f32 %v1121, %v1135
      %v1140 = vadd.f32 %v1124, %v1136
      %v1141 = vadd.f32 %v1129, %v1137
      %v1142 = vadd.f32 %v1132, %v1138
      %1143 = vst.msk [vmem:[%s217] sm:$0xff] %vm310, %v1139
      %1144 = vst.msk [vmem:[%s217 + $0x8] sm:$0xff] %vm310, %v1140
      %1145 = vst.msk [vmem:[%s217 + $0x10] sm:$0xff] %vm310, %v1141
      %1146 = vst.msk [vmem:[%s217 + $0x18] sm:$0xff] %vm310, %v1142
      %p1147 = scmp.lt.s32.totalorder %s15, 1
      %s1148 = scalar_select %p1147, %s15, 1
      %s1149 = smul.addr %s1148, 4
      %s1150 = smul.addr %s1149, 8
      %s1151 = scalar_lea.vmem %s4, %s1150
      // Predicated region
      $region37: #{vit_forward.12} parent=35 // pred_check
        %p1152 = pneg %p127
      $region38: #{vit_forward.12} parent=35 // pred_check_branch
        %1154 = sbr.rel (%p1152) target = $region40
      $region39: #{vit_forward.12} parent=35 // pred_region
        _
      $region40: #{vit_forward.12} parent=35 // pred_fallthru
        _
    $region36: #{vit_forward.12} parent=5 // pred_fallthru
      _
    %p1155 = scmp.le.s32.totalorder 2, %s10
    // Predicated region
    $region41: #{vit_forward.12} parent=5 // pred_check
      %p1156 = pneg %p1155
    $region42: #{vit_forward.12} parent=5 // pred_check_branch
      %1158 = sbr.rel (%p1156) target = $region44
    $region43: #{vit_forward.12} parent=5 // pred_region
      %s1159 = ssub.s32 %s10, 2
      // Predicated region
      $region45: #{vit_forward.12} parent=43 // pred_check
        %p1160 = pneg %p133
      $region46: #{vit_forward.12} parent=43 // pred_check_branch
        %1162 = sbr.rel (%p1160) target = $region48
      $region47: #{vit_forward.12} parent=43 // pred_region
        %p1163 = scmp.lt.s32.totalorder %s16, 1
        %s1164 = scalar_select %p1163, %s16, 1
        %s1165 = smul.addr %s1164, 4
        %s1166 = smul.addr %s1165, 8
        %s1167 = scalar_lea.vmem %s4, %s1166
      $region48: #{vit_forward.12} parent=43 // pred_fallthru
        _
    $region44: #{vit_forward.12} parent=5 // pred_fallthru
      _
  $region6: #{vit_forward.12} parent=0 // loop_footer
    %s14 = sadd.s32 1, %s10
  $region7: #{vit_forward.12} parent=0 // loop_footer_branch
    %9 = sbr.rel target = $region3
  $region8: #{vit_forward.12} parent=0 // loop_exit
    _

// kernel: vit_forward.14
$region0: #{vit_forward.14}
  #allocation0 [shape = 'u32[]', space=smem, size = 0x4, offset = 0x4, fixed_abs, tag = 'smem constant byte address 0x4 - core index']
  #allocation1 [shape = 'u32[144,128]{1,0:T(1,128)}', space=vmem, size = 0x12000, scoped, tag = 'internal scratch']
  #allocation2 [shape = 'f32[64,32]{1,0:T(8,128)}', space=vmem, size = 0x8000, scoped, tag = 'scratch operand']
  %s0 = inlined_call_operand.vmem [shape: bf16[64,128], index: 0, kind: input, shape index: {}]
  %s1 = inlined_call_operand.vmem [shape: bf16[128,32], index: 1, kind: input, shape index: {}]
  %s2 = inlined_call_operand.vmem [shape: f32[1,32], index: 2, kind: input, shape index: {}]
  %s3 = inlined_call_operand.vmem [shape: f32[64,32], index: 3, kind: input, shape index: {}]
  %s4 = inlined_call_operand.vmem [shape: f32[64,32], index: 4, kind: output, shape index: {}]
  %s5 = sld [smem:[#allocation0]]
  $region34: #{vit_forward.14} parent=0
    _
  %s7 = ssub.s32 1, %s5
  %s8 = scalar_select 0, %s7, %s5
  // Predicated region
  $region2: #{vit_forward.14} parent=0 // pred_check
    _
  $region3: #{vit_forward.14} parent=0 // pred_check_branch
    %10 = sbr.rel (0) target = $region5
  $region4: #{vit_forward.14} parent=0 // pred_region
    _
  $region5: #{vit_forward.14} parent=0 // pred_fallthru
    _
  // Predicated region
  $region6: #{vit_forward.14} parent=0 // pred_check
    _
  $region7: #{vit_forward.14} parent=0 // pred_check_branch
    %12 = sbr.rel (0) target = $region9
  $region8: #{vit_forward.14} parent=0 // pred_region
    _
  $region9: #{vit_forward.14} parent=0 // pred_fallthru
    _
  // Predicated region
  $region10: #{vit_forward.14} parent=0 // pred_check
    _
  $region11: #{vit_forward.14} parent=0 // pred_check_branch
    %14 = sbr.rel (0) target = $region13
  $region12: #{vit_forward.14} parent=0 // pred_region
    _
  $region13: #{vit_forward.14} parent=0 // pred_fallthru
    _
  // Predicated region
  $region14: #{vit_forward.14} parent=0 // pred_check
    _
  $region15: #{vit_forward.14} parent=0 // pred_check_branch
    %16 = sbr.rel (0) target = $region17
  $region16: #{vit_forward.14} parent=0 // pred_region
    _
  $region17: #{vit_forward.14} parent=0 // pred_fallthru
    _
  %p18 = scmp.eq.s32.totalorder 0, 0
  // Predicated region
  $region18: #{vit_forward.14} parent=0 // pred_check
    %p19 = pneg %p18
  $region19: #{vit_forward.14} parent=0 // pred_check_branch
    %21 = sbr.rel (%p19) target = $region21
  $region20: #{vit_forward.14} parent=0 // pred_region
    %vm22 = vcmask 261120
    %23 = vst.msk [vmem:[#allocation2] sm:$0xff] %vm22, 0.0
    %24 = vst.msk [vmem:[#allocation2 + $0x8] sm:$0xff] %vm22, 0.0
    %25 = vst.msk [vmem:[#allocation2 + $0x10] sm:$0xff] %vm22, 0.0
    %26 = vst.msk [vmem:[#allocation2 + $0x18] sm:$0xff] %vm22, 0.0
    %27 = vst.msk [vmem:[#allocation2 + $0x20] sm:$0xff] %vm22, 0.0
    %28 = vst.msk [vmem:[#allocation2 + $0x28] sm:$0xff] %vm22, 0.0
    %29 = vst.msk [vmem:[#allocation2 + $0x30] sm:$0xff] %vm22, 0.0
    %30 = vst.msk [vmem:[#allocation2 + $0x38] sm:$0xff] %vm22, 0.0
  $region21: #{vit_forward.14} parent=0 // pred_fallthru
    _
  %v31 = vld [vmem:[%s0] sm:$0xf]
  %v32 = vld [vmem:[%s0 + $0x4] sm:$0xf]
  %v33 = vld [vmem:[%s0 + $0x8] sm:$0xf]
  %v34 = vld [vmem:[%s0 + $0xc] sm:$0xf]
  %v35 = vld [vmem:[%s0 + $0x10] sm:$0xf]
  %v36 = vld [vmem:[%s0 + $0x14] sm:$0xf]
  %v37 = vld [vmem:[%s0 + $0x18] sm:$0xf]
  %v38 = vld [vmem:[%s0 + $0x1c] sm:$0xf]
  %v39 = vld [vmem:[#allocation2] sm:$0xff]
  %v40 = vld [vmem:[#allocation2 + $0x8] sm:$0xff]
  %v41 = vld [vmem:[#allocation2 + $0x10] sm:$0xff]
  %v42 = vld [vmem:[#allocation2 + $0x18] sm:$0xff]
  %v43 = vld [vmem:[#allocation2 + $0x20] sm:$0xff]
  %v44 = vld [vmem:[#allocation2 + $0x28] sm:$0xff]
  %v45 = vld [vmem:[#allocation2 + $0x30] sm:$0xff]
  %v46 = vld [vmem:[#allocation2 + $0x38] sm:$0xff]
  %v47 = vld [vmem:[%s1] sm:$0xf]
  %v48 = vld [vmem:[%s1 + $0x4] sm:$0xf]
  %v49 = vld [vmem:[%s1 + $0x8] sm:$0xf]
  %v50 = vld [vmem:[%s1 + $0xc] sm:$0xf]
  %v51 = vld [vmem:[%s1 + $0x10] sm:$0xf]
  %v52 = vld [vmem:[%s1 + $0x14] sm:$0xf]
  %v53 = vld [vmem:[%s1 + $0x18] sm:$0xf]
  %v54 = vld [vmem:[%s1 + $0x1c] sm:$0xf]
  %v55 = vld [vmem:[%s1 + $0x20] sm:$0xf]
  %v56 = vld [vmem:[%s1 + $0x24] sm:$0xf]
  %v57 = vld [vmem:[%s1 + $0x28] sm:$0xf]
  %v58 = vld [vmem:[%s1 + $0x2c] sm:$0xf]
  %v59 = vld [vmem:[%s1 + $0x30] sm:$0xf]
  %v60 = vld [vmem:[%s1 + $0x34] sm:$0xf]
  %v61 = vld [vmem:[%s1 + $0x38] sm:$0xf]
  %v62 = vld [vmem:[%s1 + $0x3c] sm:$0xf]
  %v71 = vunpack.c.l.b16 %v31
  %v72 = vunpack.c.l.b16 %v32
  %v73 = vunpack.c.l.b16 %v33
  %v74 = vunpack.c.l.b16 %v34
  %v75 = vunpack.c.l.b16 %v35
  %v76 = vunpack.c.l.b16 %v36
  %v77 = vunpack.c.l.b16 %v37
  %v78 = vunpack.c.l.b16 %v38
  %v79 = vpack.c.b16 %v72, %v71
  %v80 = vpack.c.b16 %v74, %v73
  %v81 = vpack.c.b16 %v76, %v75
  %v82 = vpack.c.b16 %v78, %v77
  %v103 = vunpack.c.l.b16 %v47
  %v104 = vunpack.c.l.b16 %v48
  %v105 = vunpack.c.l.b16 %v49
  %v106 = vunpack.c.l.b16 %v50
  %v107 = vunpack.c.l.b16 %v51
  %v108 = vunpack.c.l.b16 %v52
  %v109 = vunpack.c.l.b16 %v53
  %v110 = vunpack.c.l.b16 %v54
  %v111 = vunpack.c.l.b16 %v55
  %v112 = vunpack.c.l.b16 %v56
  %v113 = vunpack.c.l.b16 %v57
  %v114 = vunpack.c.l.b16 %v58
  %v115 = vunpack.c.l.b16 %v59
  %v116 = vunpack.c.l.b16 %v60
  %v117 = vunpack.c.l.b16 %v61
  %v118 = vunpack.c.l.b16 %v62
  %v119 = vpack.c.b16 %v104, %v103
  %v120 = vpack.c.b16 %v106, %v105
  %v121 = vpack.c.b16 %v108, %v107
  %v122 = vpack.c.b16 %v110, %v109
  %v123 = vpack.c.b16 %v112, %v111
  %v124 = vpack.c.b16 %v114, %v113
  %v125 = vpack.c.b16 %v116, %v115
  %v126 = vpack.c.b16 %v118, %v117
  %135 = vmatprep.subr.bf16.mxu0 0
  %136 = vmatpush1.bf16.msra.mxu0 %v119
  %137 = vmatprep.subr.bf16.mxu0 0
  %138 = vmatpush1.bf16.msra.mxu0 %v120
  %139 = vmatprep.subr.bf16.mxu0 0
  %140 = vmatpush1.bf16.msra.mxu0 %v121
  %141 = vmatprep.subr.bf16.mxu0 0
  %142 = vmatpush1.bf16.msra.mxu0 %v122
  %143 = vmatprep.subr.bf16.mxu0 0
  %144 = vmatpush1.bf16.msra.mxu0 %v123
  %145 = vmatprep.subr.bf16.mxu0 0
  %146 = vmatpush1.bf16.msra.mxu0 %v124
  %147 = vmatprep.subr.bf16.mxu0 0
  %148 = vmatpush1.bf16.msra.mxu0 %v125
  %149 = vmatprep.subr.bf16.mxu0 0
  %150 = vmatpush1.bf16.msra.mxu0 %v126
  %151 = vmatprep.subr.bf16.mxu0 0
  %152 = vmatpush1.bf16.msra.mxu0 0
  %153 = vmatprep.subr.bf16.mxu0 0
  %154 = vmatpush1.bf16.msra.mxu0 0
  %155 = vmatprep.subr.bf16.mxu0 0
  %156 = vmatpush1.bf16.msra.mxu0 0
  %157 = vmatprep.subr.bf16.mxu0 0
  %158 = vmatpush1.bf16.msra.mxu0 0
  %159 = vmatprep.subr.bf16.mxu0 0
  %160 = vmatpush1.bf16.msra.mxu0 0
  %161 = vmatprep.subr.bf16.mxu0 0
  %162 = vmatpush1.bf16.msra.mxu0 0
  %163 = vmatprep.subr.bf16.mxu0 0
  %164 = vmatpush1.bf16.msra.mxu0 0
  %165 = vmatprep.subr.bf16.mxu0 0
  %166 = vmatpush1.bf16.msra.mxu0 0
  %167 = vmatprep.mubr.bf16.mxu0 0
  %168 = vmatmul.mubr.bf16.gmra.mrb[0].mxu0 %v79
  %v169 = vpop.f32.mrb[0].mxu0
  %v170 = vadd.f32 0.0, %v169
  %v171 = vpop.f32.mrb[0].mxu0
  %v172 = vpop.f32.mrb[0].mxu0
  %v173 = vadd.f32 0.0, %v172
  %v174 = vpop.f32.mrb[0].mxu0
  %175 = vmatprep.mubr.bf16.mxu0 0
  %176 = vmatmul.mubr.bf16.gmra.mrb[0].mxu0 %v80
  %v177 = vpop.f32.mrb[0].mxu0
  %v178 = vadd.f32 0.0, %v177
  %v179 = vpop.f32.mrb[0].mxu0
  %v180 = vpop.f32.mrb[0].mxu0
  %v181 = vadd.f32 0.0, %v180
  %v182 = vpop.f32.mrb[0].mxu0
  %183 = vmatprep.mubr.bf16.mxu0 0
  %184 = vmatmul.mubr.bf16.gmra.mrb[0].mxu0 %v81
  %v185 = vpop.f32.mrb[0].mxu0
  %v186 = vadd.f32 0.0, %v185
  %v187 = vpop.f32.mrb[0].mxu0
  %v188 = vpop.f32.mrb[0].mxu0
  %v189 = vadd.f32 0.0, %v188
  %v190 = vpop.f32.mrb[0].mxu0
  %191 = vmatprep.mubr.bf16.mxu0 0
  %192 = vmatmul.mubr.bf16.gmra.mrb[0].mxu0 %v82
  %v193 = vpop.f32.mrb[0].mxu0
  %v194 = vadd.f32 0.0, %v193
  %v195 = vpop.f32.mrb[0].mxu0
  %v196 = vpop.f32.mrb[0].mxu0
  %v197 = vadd.f32 0.0, %v196
  %v198 = vpop.f32.mrb[0].mxu0
  %199 = vdwg.mxu0
  %v200 = vadd.f32 %v39, %v170
  %v201 = vadd.f32 %v40, %v173
  %v202 = vadd.f32 %v41, %v178
  %v203 = vadd.f32 %v42, %v181
  %v204 = vadd.f32 %v43, %v186
  %v205 = vadd.f32 %v44, %v189
  %v206 = vadd.f32 %v45, %v194
  %v207 = vadd.f32 %v46, %v197
  %vm208 = vcmask 261120
  %209 = vst.msk [vmem:[#allocation2] sm:$0xff] %vm208, %v200
  %210 = vst.msk [vmem:[#allocation2 + $0x8] sm:$0xff] %vm208, %v201
  %211 = vst.msk [vmem:[#allocation2 + $0x10] sm:$0xff] %vm208, %v202
  %212 = vst.msk [vmem:[#allocation2 + $0x18] sm:$0xff] %vm208, %v203
  %213 = vst.msk [vmem:[#allocation2 + $0x20] sm:$0xff] %vm208, %v204
  %214 = vst.msk [vmem:[#allocation2 + $0x28] sm:$0xff] %vm208, %v205
  %215 = vst.msk [vmem:[#allocation2 + $0x30] sm:$0xff] %vm208, %v206
  %216 = vst.msk [vmem:[#allocation2 + $0x38] sm:$0xff] %vm208, %v207
  // Predicated region
  $region22: #{vit_forward.14} parent=0 // pred_check
    %p217 = pneg %p18
  $region23: #{vit_forward.14} parent=0 // pred_check_branch
    %219 = sbr.rel (%p217) target = $region25
  $region24: #{vit_forward.14} parent=0 // pred_region
    %v220 = vld [vmem:[#allocation2] sm:$0xff]
    %v221 = vld [vmem:[#allocation2 + $0x8] sm:$0xff]
    %v222 = vld [vmem:[#allocation2 + $0x10] sm:$0xff]
    %v223 = vld [vmem:[#allocation2 + $0x18] sm:$0xff]
    %v224 = vld [vmem:[#allocation2 + $0x20] sm:$0xff]
    %v225 = vld [vmem:[#allocation2 + $0x28] sm:$0xff]
    %v226 = vld [vmem:[#allocation2 + $0x30] sm:$0xff]
    %v227 = vld [vmem:[#allocation2 + $0x38] sm:$0xff]
    %v228 = vld [vmem:[%s2] sm:$0x1]
    %v230 = vlaneseq
    %v231 = vshrl.u32 %v230, 7
    %v232 = vsub.s32 0, %v231
    %v233 = vrot.slane %v228, %v232
    %v235 = vadd.f32 %v220, %v233
    %v236 = vadd.f32 %v221, %v233
    %v237 = vadd.f32 %v222, %v233
    %v238 = vadd.f32 %v223, %v233
    %v239 = vadd.f32 %v224, %v233
    %v240 = vadd.f32 %v225, %v233
    %v241 = vadd.f32 %v226, %v233
    %v242 = vadd.f32 %v227, %v233
    %v243 = vld [vmem:[%s3] sm:$0xff]
    %v244 = vld [vmem:[%s3 + $0x8] sm:$0xff]
    %v245 = vld [vmem:[%s3 + $0x10] sm:$0xff]
    %v246 = vld [vmem:[%s3 + $0x18] sm:$0xff]
    %v247 = vld [vmem:[%s3 + $0x20] sm:$0xff]
    %v248 = vld [vmem:[%s3 + $0x28] sm:$0xff]
    %v249 = vld [vmem:[%s3 + $0x30] sm:$0xff]
    %v250 = vld [vmem:[%s3 + $0x38] sm:$0xff]
    %v251 = vadd.f32 %v235, %v243
    %v252 = vadd.f32 %v236, %v244
    %v253 = vadd.f32 %v237, %v245
    %v254 = vadd.f32 %v238, %v246
    %v255 = vadd.f32 %v239, %v247
    %v256 = vadd.f32 %v240, %v248
    %v257 = vadd.f32 %v241, %v249
    %v258 = vadd.f32 %v242, %v250
    %259 = vst.msk [vmem:[%s4] sm:$0xff] %vm208, %v251
    %260 = vst.msk [vmem:[%s4 + $0x8] sm:$0xff] %vm208, %v252
    %261 = vst.msk [vmem:[%s4 + $0x10] sm:$0xff] %vm208, %v253
    %262 = vst.msk [vmem:[%s4 + $0x18] sm:$0xff] %vm208, %v254
    %263 = vst.msk [vmem:[%s4 + $0x20] sm:$0xff] %vm208, %v255
    %264 = vst.msk [vmem:[%s4 + $0x28] sm:$0xff] %vm208, %v256
    %265 = vst.msk [vmem:[%s4 + $0x30] sm:$0xff] %vm208, %v257
    %266 = vst.msk [vmem:[%s4 + $0x38] sm:$0xff] %vm208, %v258
  $region25: #{vit_forward.14} parent=0 // pred_fallthru
    _
  // Predicated region
  $region26: #{vit_forward.14} parent=0 // pred_check
    _
  $region27: #{vit_forward.14} parent=0 // pred_check_branch
    %268 = sbr.rel (0) target = $region29
  $region28: #{vit_forward.14} parent=0 // pred_region
    _
  $region29: #{vit_forward.14} parent=0 // pred_fallthru
    _
  // Predicated region
  $region30: #{vit_forward.14} parent=0 // pred_check
    _
  $region31: #{vit_forward.14} parent=0 // pred_check_branch
    %270 = sbr.rel (0) target = $region33
  $region32: #{vit_forward.14} parent=0 // pred_region
    _
  $region33: #{vit_forward.14} parent=0 // pred_fallthru
    _

// kernel: vit_forward.19
$region0: #{vit_forward.19}
  #allocation0 [shape = 'u32[]', space=smem, size = 0x4, offset = 0x4, fixed_abs, tag = 'smem constant byte address 0x4 - core index']
  #allocation1 [shape = 'u32[144,128]{1,0:T(1,128)}', space=vmem, size = 0x12000, scoped, tag = 'internal scratch']
  #allocation2 [shape = 'bf16[2,32]{1,0:T(2,128)(2,1)}', space=vmem, size = 0x200, scoped, tag = 'scratch operand']
  %s0 = inlined_call_operand.vmem [shape: f32[2,32], index: 0, kind: input, shape index: {}]
  %s1 = inlined_call_operand.vmem [shape: f32[1,32], index: 1, kind: input, shape index: {}]
  %s2 = inlined_call_operand.vmem [shape: f32[1,32], index: 2, kind: input, shape index: {}]
  %s3 = inlined_call_operand.vmem [shape: bf16[32,128], index: 3, kind: input, shape index: {}]
  %s4 = inlined_call_operand.vmem [shape: f32[1,128], index: 4, kind: input, shape index: {}]
  %s5 = inlined_call_operand.hbm [shape: f32[2,128], index: 5, kind: output, shape index: {}]
  %s6 = sld [smem:[#allocation0]]
  $region34: #{vit_forward.19} parent=0
    _
  %s8 = ssub.s32 1, %s6
  %s9 = scalar_select 0, %s8, %s6
  $region1: #{vit_forward.19} parent=0
    #allocation3 [shape = 'u8[1024]{0}', space=vmem, size = 0x400, scoped, tag = 'output window, operand 0, single buffered']
    #allocation4 [shape = 's32[1]{0}', space=sflag, size = 0x4, scoped, tag = 'scoped memory for vit_forward.19']
    %10 = vsyncpa [#allocation4], 0
    // Predicated region
    $region2: #{vit_forward.19} parent=1 // pred_check
      _
    $region3: #{vit_forward.19} parent=1 // pred_check_branch
      %12 = sbr.rel (0) target = $region5
    $region4: #{vit_forward.19} parent=1 // pred_region
      _
    $region5: #{vit_forward.19} parent=1 // pred_fallthru
      _
    // Predicated region
    $region6: #{vit_forward.19} parent=1 // pred_check
      _
    $region7: #{vit_forward.19} parent=1 // pred_check_branch
      %14 = sbr.rel (0) target = $region9
    $region8: #{vit_forward.19} parent=1 // pred_region
      _
    $region9: #{vit_forward.19} parent=1 // pred_fallthru
      _
    // Predicated region
    $region10: #{vit_forward.19} parent=1 // pred_check
      _
    $region11: #{vit_forward.19} parent=1 // pred_check_branch
      %16 = sbr.rel (0) target = $region13
    $region12: #{vit_forward.19} parent=1 // pred_region
      _
    $region13: #{vit_forward.19} parent=1 // pred_fallthru
      _
    // Predicated region
    $region14: #{vit_forward.19} parent=1 // pred_check
      _
    $region15: #{vit_forward.19} parent=1 // pred_check_branch
      %18 = sbr.rel (0) target = $region17
    $region16: #{vit_forward.19} parent=1 // pred_region
      _
    $region17: #{vit_forward.19} parent=1 // pred_fallthru
      _
    // Predicated region
    $region18: #{vit_forward.19} parent=1 // pred_check
      _
    $region19: #{vit_forward.19} parent=1 // pred_check_branch
      %20 = sbr.rel (0) target = $region21
    $region20: #{vit_forward.19} parent=1 // pred_region
      _
    $region21: #{vit_forward.19} parent=1 // pred_fallthru
      _
    %p22 = scmp.eq.s32.totalorder 0, 0
    // Predicated region
    $region22: #{vit_forward.19} parent=1 // pred_check
      %p23 = pneg %p22
    $region23: #{vit_forward.19} parent=1 // pred_check_branch
      %25 = sbr.rel (%p23) target = $region25
    $region24: #{vit_forward.19} parent=1 // pred_region
      %v26 = vld [vmem:[%s0] sm:$0x3]
      %vm27 = vcmask 254976
      %v28 = vsel %vm27, %v26, 0.0
      %29 = vadd.xlane.f32.xlu0 %v28
      %v30 = vpop.xlane.xlu0 %29
      %v31 = vrcp.pop 32.0
      %v32 = vmul.f32 %v30, %v31
      %v33 = vsub.f32 %v26, %v32
      %v34 = vmul.f32 %v33, %v33
      %v35 = vsel %vm27, %v34, 0.0
      %36 = vadd.xlane.f32.xlu0 %v35
      %v37 = vpop.xlane.xlu0 %36
      %v38 = vmul.f32 %v37, %v31
      %v39 = vadd.f32 %v38, 1e-06
      %v40 = vrsqrt.pop %v39
      %v41 = vmul.f32 %v33, %v40
      %v42 = vld [vmem:[%s1] sm:$0x1]
      %v44 = vlaneseq
      %v45 = vshrl.u32 %v44, 7
      %v46 = vsub.s32 0, %v45
      %v47 = vrot.slane %v42, %v46
      %v49 = vmul.f32 %v41, %v47
      %v50 = vld [vmem:[%s2] sm:$0x1]
      %v52 = vlaneseq
      %v53 = vshrl.u32 %v52, 7
      %v54 = vsub.s32 0, %v53
      %v55 = vrot.slane %v50, %v54
      %v57 = vadd.f32 %v49, %v55
      %v58 = vpack.c.bf16 %v57, %v57
      %vm59 = vcmask 253952
      %60 = vst.msk [vmem:[#allocation2] sm:$0x1] %vm59, %v58
    $region25: #{vit_forward.19} parent=1 // pred_fallthru
      _
    %v61 = vld [vmem:[#allocation2] sm:$0x1]
    %v62 = vld [vmem:[%s3] sm:$0xf]
    %v63 = vld [vmem:[%s3 + $0x4] sm:$0xf]
    %v64 = vld [vmem:[%s3 + $0x8] sm:$0xf]
    %v65 = vld [vmem:[%s3 + $0xc] sm:$0xf]
    %v66 = vld [vmem:[%s4] sm:$0x1]
    %v68 = vlaneseq
    %v69 = vshrl.u32 %v68, 7
    %v70 = vsub.s32 0, %v69
    %v71 = vrot.slane %v66, %v70
    %v77 = vunpack.c.l.b16 %v62
    %v78 = vunpack.c.l.b16 %v63
    %v79 = vunpack.c.l.b16 %v64
    %v80 = vunpack.c.l.b16 %v65
    %v81 = vpack.c.b16 %v78, %v77
    %v82 = vpack.c.b16 %v80, %v79
    %vm85 = vcmask 261120
    %v87 = vsel %vm85, %v61, 0
    %89 = vmatprep.subr.bf16.mxu0 0
    %90 = vmatpush1.bf16.msra.mxu0 %v81
    %91 = vmatprep.subr.bf16.mxu0 0
    %92 = vmatpush1.bf16.msra.mxu0 %v82
    %93 = vmatprep.subr.bf16.mxu0 0
    %94 = vmatpush1.bf16.msra.mxu0 0
    %95 = vmatprep.subr.bf16.mxu0 0
    %96 = vmatpush1.bf16.msra.mxu0 0
    %97 = vmatprep.subr.bf16.mxu0 0
    %98 = vmatpush1.bf16.msra.mxu0 0
    %99 = vmatprep.subr.bf16.mxu0 0
    %100 = vmatpush1.bf16.msra.mxu0 0
    %101 = vmatprep.subr.bf16.mxu0 0
    %102 = vmatpush1.bf16.msra.mxu0 0
    %103 = vmatprep.subr.bf16.mxu0 0
    %104 = vmatpush1.bf16.msra.mxu0 0
    %105 = vmatprep.subr.bf16.mxu0 0
    %106 = vmatpush1.bf16.msra.mxu0 0
    %107 = vmatprep.subr.bf16.mxu0 0
    %108 = vmatpush1.bf16.msra.mxu0 0
    %109 = vmatprep.subr.bf16.mxu0 0
    %110 = vmatpush1.bf16.msra.mxu0 0
    %111 = vmatprep.subr.bf16.mxu0 0
    %112 = vmatpush1.bf16.msra.mxu0 0
    %113 = vmatprep.subr.bf16.mxu0 0
    %114 = vmatpush1.bf16.msra.mxu0 0
    %115 = vmatprep.subr.bf16.mxu0 0
    %116 = vmatpush1.bf16.msra.mxu0 0
    %117 = vmatprep.subr.bf16.mxu0 0
    %118 = vmatpush1.bf16.msra.mxu0 0
    %119 = vmatprep.subr.bf16.mxu0 0
    %120 = vmatpush1.bf16.msra.mxu0 0
    %121 = vmatprep.mubr.bf16.mxu0 0
    %122 = vmatmul.mubr.bf16.gmra.mrb[0].mxu0 %v87
    %v123 = vpop.f32.mrb[0].mxu0
    %v124 = vadd.f32 %v71, %v123
    %v125 = vpop.f32.mrb[0].mxu0
    %v126 = vpop.f32.mrb[0].mxu0
    %v127 = vpop.f32.mrb[0].mxu0
    %128 = vdwg.mxu0
    %129 = vst [vmem:[#allocation3] sm:$0x3] %v124
    // Predicated region
    $region26: #{vit_forward.19} parent=1 // pred_check
      _
    $region27: #{vit_forward.19} parent=1 // pred_check_branch
      %131 = sbr.rel (0) target = $region29
    $region28: #{vit_forward.19} parent=1 // pred_region
      %s133 = ssub.s32 32, 32
      %134 = vsyncadd [#allocation4], %s133
      %s136 = sshll.u32 [#allocation3], 4
      %s137 = int_to_ptr.vmem [resolvable:$true] %s136
      %139 = dma.vmem_to_hbm [thread:$0]  %s137, 32, %s5, [#allocation4]
    $region29: #{vit_forward.19} parent=1 // pred_fallthru
      _
    // Predicated region
    $region30: #{vit_forward.19} parent=1 // pred_check
      _
    $region31: #{vit_forward.19} parent=1 // pred_check_branch
      %141 = sbr.rel (0) target = $region33
    $region32: #{vit_forward.19} parent=1 // pred_region
      %142 = dma.done [#allocation4], 32
    $region33: #{vit_forward.19} parent=1 // pred_fallthru
      _
    %143 = vsyncpa [#allocation4], 1

</llo_original>
